<compile_context>
chip_gen: v7x
topology: tpu7x:2x2x1
jax: 0.10.0
libtpu: 0.0.40
codegen_flags: <defaults>
</compile_context>

<pallas_src>
import functools

import jax
import jax.numpy as jnp
from jax.experimental import pallas as pl
from jax.experimental.pallas import tpu as pltpu


# -----------------------------------------------------------------------------
# Hardware-aware sizing helpers
# -----------------------------------------------------------------------------
@functools.lru_cache(maxsize=None)
def _vmem_capacity_bytes():
    try:
        info = pltpu.get_tpu_info()
        cap = int(getattr(info, "vmem_capacity_bytes", 0) or 0)
        if cap > 0:
            return cap
    except Exception:
        pass
    return 64 * 1024 * 1024  # conservative fallback (safe on every generation)


def _vmem_limit_bytes():
    cap = _vmem_capacity_bytes()
    # Leave ~1/8 headroom for compiler-internal scratch; cap at 112 MiB.
    return min(cap - cap // 8, 112 * 1024 * 1024)


def _target_rows():
    # Bigger row tiles on 128 MiB parts (v5e/v6e), smaller on 64 MiB (v7x).
    return 2048 if _vmem_capacity_bytes() >= 96 * 1024 * 1024 else 1024


def _pick_row_block(h, w, *, target_rows, max_rows=None):
    """Largest divisor of H with rows*W <= target_rows and rows <= max_rows."""
    max_rows = h if max_rows is None else max_rows
    best = 1
    for d in range(1, h + 1):
        if h % d == 0 and d <= max_rows and d * w <= target_rows:
            best = d
    return best


@functools.lru_cache(maxsize=None)
def _roll_mode():
    """Sign convention of pltpu.roll on the sublane axis, resolved once.

    Returns +1 if pltpu.roll(x, 1, 0)[i] == x[i-1] (jnp.roll convention),
    -1 if reversed, 0 if unavailable (kernel falls back to slice shifts).
    """
    try:
        def k(x_ref, o_ref):
            o_ref[...] = pltpu.roll(x_ref[...], 1, 0)

        x = jnp.arange(24 * 128, dtype=jnp.float32).reshape(24, 128)
        y = pl.pallas_call(
            k, out_shape=jax.ShapeDtypeStruct((24, 128), jnp.float32))(x)
        if bool(jnp.all(y[1] == x[0])):
            return 1
        if bool(jnp.all(y[0] == x[1])):
            return -1
        return 0
    except Exception:
        return 0


# -----------------------------------------------------------------------------
# Kernel A: GroupNorm partial statistics (sum, sum of squares) per row tile
# -----------------------------------------------------------------------------
def _gn_partial_stats_kernel(x_ref, o_ref):
    x = x_ref[0].astype(jnp.float32)                 # (chunk, C)
    s = jnp.sum(x, axis=0, keepdims=True)            # (1, C)
    q = jnp.sum(x * x, axis=0, keepdims=True)        # (1, C)
    o_ref[0, 0] = jnp.concatenate([s, q], axis=0)    # (2, C)


def groupnorm_partial_stats(x2, *, chunk):
    """x2: (N, HW, C) -> (N, HW//chunk, 2, C) fp32 partial sums / sumsq."""
    n, hw, c = x2.shape
    assert hw % chunk == 0
    t = hw // chunk
    return pl.pallas_call(
        _gn_partial_stats_kernel,
        out_shape=jax.ShapeDtypeStruct((n, t, 2, c), jnp.float32),
        grid=(n, t),
        in_specs=[pl.BlockSpec((1, chunk, c), lambda i, j: (i, j, 0))],
        out_specs=pl.BlockSpec((1, 1, 2, c), lambda i, j: (i, j, 0, 0)),
        compiler_params=pltpu.CompilerParams(
            dimension_semantics=("parallel", "parallel"),
            vmem_limit_bytes=_vmem_limit_bytes()),
    )(x2)


def _scale_shift_from_partials(partials, gamma, beta, *, groups, eps, hw):
    """Tiny O(N*C) plain-JAX finalize: partial sums -> per-channel (scale, shift)."""
    n, _, _, c = partials.shape
    assert c % groups == 0
    cpg = c // groups
    s = partials.sum(axis=1)                               # (N, 2, C)
    sum_g = s[:, 0, :].reshape(n, groups, cpg).sum(-1)     # (N, G)
    sq_g = s[:, 1, :].reshape(n, groups, cpg).sum(-1)      # (N, G)
    cnt = jnp.float32(hw * cpg)
    mean_g = sum_g / cnt
    var_g = jnp.maximum(sq_g / cnt - mean_g * mean_g, 0.0)  # clamp >= 0
    rstd_g = jax.lax.rsqrt(var_g + eps)
    mean_c = jnp.repeat(mean_g, cpg, axis=-1)              # (N, C)
    rstd_c = jnp.repeat(rstd_g, cpg, axis=-1)              # (N, C)
    scale = gamma[None, :].astype(jnp.float32) * rstd_c
    shift = beta[None, :].astype(jnp.float32) - mean_c * scale
    return jnp.stack([scale, shift], axis=1)               # (N, 2, C) fp32


# -----------------------------------------------------------------------------
# Kernel B: fused (normalize + SiLU) -> 3x3 conv (stride 1, pad 1)
#           + optional partial statistics of the output for the next GroupNorm
# -----------------------------------------------------------------------------
def _gn_silu_conv3x3_kernel(xm_ref, xt_ref, xb_ref, ss_ref, w_ref, b_ref,
                            o_ref, *st_refs, W, TR, roll_mode):
    j = pl.program_id(1)
    nj = pl.num_programs(1)

    scale = ss_ref[0, 0:1, :]                 # (1, Cin) f32
    shift = ss_ref[0, 1:2, :]                 # (1, Cin) f32
    cdt = w_ref.dtype                         # MXU operand dtype (bf16)

    def norm_act(v):                          # GroupNorm-apply + SiLU, in fp32
        t = v.astype(jnp.float32) * scale + shift
        return t * jax.nn.sigmoid(t)

    # Assemble the vertically-haloed activation tile; halo rows zeroed at the
    # image borders (the conv zero-pads the *activation*, not the raw input).
    top = norm_act(xt_ref[0]) * (j > 0).astype(jnp.float32)          # (W, Cin)
    bot = norm_act(xb_ref[0]) * (j < nj - 1).astype(jnp.float32)     # (W, Cin)
    mid = norm_act(xm_ref[0])                                        # (TR*W, Cin)
    y = jnp.concatenate([top, mid, bot], axis=0)                     # (rows, Cin)
    rows, _ = y.shape

    # Horizontal neighbours (kx = 0 / 2).  Rolls run on the XLU; the wrapped /
    # cross-image-row pixels are zeroed by the (rows, 1) border mask.
    if roll_mode != 0:
        sh_prev = 1 if roll_mode > 0 else rows - 1       # brings y[i-1] to row i
        sh_next = rows - 1 if roll_mode > 0 else 1       # brings y[i+1] to row i
        prev = pltpu.roll(y, sh_prev, 0)
        nxt = pltpu.roll(y, sh_next, 0)
    else:  # fallback: slice-based shifts
        zrow = jnp.zeros((1, y.shape[1]), jnp.float32)
        prev = jnp.concatenate([zrow, y[:-1, :]], axis=0)
        nxt = jnp.concatenate([y[1:, :], zrow], axis=0)

    wcol = jax.lax.broadcasted_iota(jnp.int32, (rows, 1), 0) % W     # (rows, 1)
    prev = jnp.where(wcol == 0, 0.0, prev).astype(cdt)
    nxt = jnp.where(wcol == W - 1, 0.0, nxt).astype(cdt)
    cent = y.astype(cdt)

    # Patch matrix: channels ordered [kx=0 | kx=1 | kx=2], K = 3*Cin (bf16).
    r2 = jnp.concatenate([prev, cent, nxt], axis=-1)                 # (rows, 3Cin)

    # ky handled by aligned row windows (offsets 0, W, 2W) -> 3 big-K matmuls.
    acc = jnp.dot(r2[0:TR * W, :], w_ref[0], preferred_element_type=jnp.float32)
    acc = acc + jnp.dot(r2[W:(TR + 1) * W, :], w_ref[1],
                        preferred_element_type=jnp.float32)
    acc = acc + jnp.dot(r2[2 * W:(TR + 2) * W, :], w_ref[2],
                        preferred_element_type=jnp.float32)
    acc = acc + b_ref[...].astype(jnp.float32)
    o_ref[0] = acc.astype(o_ref.dtype)

    # Fused partial statistics of the conv output for the *next* GroupNorm
    # (saves a full HBM read of h1 by the stats kernel).
    if st_refs:
        (st_ref,) = st_refs
        s = jnp.sum(acc, axis=0, keepdims=True)
        q = jnp.sum(acc * acc, axis=0, keepdims=True)
        st_ref[0, 0] = jnp.concatenate([s, q], axis=0)               # (2, Cout)


def gn_silu_conv3x3(x_nhwc, ss, w_folded, bias, *, row_block=None,
                    emit_stats=False):
    """x: (N,H,W,Cin) (bf16); ss: (N,2,Cin) f32; w_folded: (3, 3*Cin, Cout)."""
    n, h, w, cin = x_nhwc.shape
    cout = w_folded.shape[-1]
    assert w_folded.shape == (3, 3 * cin, cout)
    pack = 4 // x_nhwc.dtype.itemsize           # 1 for f32, 2 for bf16
    assert w % (8 * pack) == 0, "W must match TPU sublane packing (8*pack)"

    if row_block and h % row_block == 0:
        tr = row_block
    else:
        tr = _pick_row_block(h, w, target_rows=_target_rows(),
                             max_rows=h if n > 1 else max(h // 2, 1))
    nj = h // tr
    hw = h * w
    x2 = x_nhwc.reshape(n, hw, cin)             # free reshape (view)

    kern = functools.partial(_gn_silu_conv3x3_kernel, W=w, TR=tr,
                             roll_mode=_roll_mode())

    out_shape = jax.ShapeDtypeStruct((n, hw, cout), x_nhwc.dtype)
    out_specs = pl.BlockSpec((1, tr * w, cout), lambda i, j: (i, j, 0))
    if emit_stats:
        out_shape = (out_shape,
                     jax.ShapeDtypeStruct((n, nj, 2, cout), jnp.float32))
        out_specs = (out_specs,
                     pl.BlockSpec((1, 1, 2, cout), lambda i, j: (i, j, 0, 0)))

    # TODO(synk): for very large layers (Cin=Cout>=1024 on v7x) add a Cout tile
    # axis to the grid so weights + activations stay under the 64 MiB VMEM.
    res = pl.pallas_call(
        kern,
        out_shape=out_shape,
        grid=(n, nj),
        in_specs=[
            # main rows of the tile
            pl.BlockSpec((1, tr * w, cin), lambda i, j: (i, j, 0)),
            # one-row top halo (clamped at the image edge; zeroed in-kernel)
            pl.BlockSpec((1, w, cin),
                         lambda i, j: (i, jnp.maximum(j * tr - 1, 0), 0)),
            # one-row bottom halo (clamped at the image edge; zeroed in-kernel)
            pl.BlockSpec((1, w, cin),
                         lambda i, j: (i, jnp.minimum((j + 1) * tr, h - 1), 0)),
            # per-channel GN scale/shift
            pl.BlockSpec((1, 2, cin), lambda i, j: (i, 0, 0)),
            # folded conv weights (constant index_map -> resident)
            pl.BlockSpec((3, 3 * cin, cout), lambda i, j: (0, 0, 0)),
            # bias
            pl.BlockSpec((1, cout), lambda i, j: (0, 0)),
        ],
        out_specs=out_specs,
        compiler_params=pltpu.CompilerParams(
            dimension_semantics=("parallel", "parallel"),
            vmem_limit_bytes=_vmem_limit_bytes()),
    )(x2, x2, x2, ss, w_folded, bias.reshape(1, cout))

    if emit_stats:
        y, st = res
        return y.reshape(n, h, w, cout), st
    return res.reshape(n, h, w, cout)


# -----------------------------------------------------------------------------
# ResnetBlock forward
# -----------------------------------------------------------------------------
def resnet_block_nhwc(x_nhwc, params, *, groups=32, eps=1e-5, row_block=None):
    """Hot-path API: NHWC in / NHWC out (callers should pass bf16)."""
    cdt = params["conv1_w"].dtype
    if x_nhwc.dtype != cdt:
        x_nhwc = x_nhwc.astype(cdt)
    n, h, w, cin = x_nhwc.shape
    hw = h * w

    if row_block and h % row_block == 0:
        tr = row_block
    else:
        tr = _pick_row_block(h, w, target_rows=_target_rows(),
                             max_rows=h if n > 1 else max(h // 2, 1))

    # GroupNorm1 stats: one HBM pass over x.
    p1 = groupnorm_partial_stats(x_nhwc.reshape(n, hw, cin), chunk=tr * w)
    ss1 = _scale_shift_from_partials(p1, params["gn1_g"], params["gn1_b"],
                                     groups=groups, eps=eps, hw=hw)
    # conv1 fused with GN1-apply + SiLU; also emits GroupNorm2 partial stats.
    h1, p2 = gn_silu_conv3x3(x_nhwc, ss1, params["conv1_w"], params["conv1_b"],
                             row_block=tr, emit_stats=True)
    ss2 = _scale_shift_from_partials(p2, params["gn2_g"], params["gn2_b"],
                                     groups=groups, eps=eps, hw=hw)
    # conv2 fused with GN2-apply + SiLU.
    out = gn_silu_conv3x3(h1, ss2, params["conv2_w"], params["conv2_b"],
                          row_block=tr, emit_stats=False)
    return out
    # nin_shortcut / residual add are never used by the reference forward().


def resnet_block(x_nchw, params, **kw):
    # PyTorch-layout wrapper (layout transpose + bf16 cast live off the NHWC
    # hot path, only in this compatibility wrapper).
    cdt = params["conv1_w"].dtype
    x = jnp.transpose(x_nchw, (0, 2, 3, 1)).astype(cdt)
    y = resnet_block_nhwc(x, params, **kw)
    return jnp.transpose(y, (0, 3, 1, 2))


# -----------------------------------------------------------------------------
# Parameters
# -----------------------------------------------------------------------------
def fold_conv_weights(w_oihw):
    """(O, I, 3, 3) -> (3, 3*I, O): ky-major, inner rows ordered [kx=0|kx=1|kx=2]."""
    o_, i_, kh, kw = w_oihw.shape
    return jnp.transpose(w_oihw, (2, 3, 1, 0)).reshape(kh, kw * i_, o_)


def make_params(key, cin, cout, *, compute_dtype=jnp.bfloat16):
    ks = jax.random.split(key, 8)
    w1 = 0.05 * jax.random.normal(ks[0], (cout, cin, 3, 3), jnp.float32)   # OIHW
    b1 = 0.01 * jax.random.normal(ks[1], (cout,), jnp.float32)
    w2 = 0.05 * jax.random.normal(ks[2], (cout, cout, 3, 3), jnp.float32)
    b2 = 0.01 * jax.random.normal(ks[3], (cout,), jnp.float32)
    g1 = 1.0 + 0.1 * jax.random.normal(ks[4], (cin,), jnp.float32)
    be1 = 0.1 * jax.random.normal(ks[5], (cin,), jnp.float32)
    g2 = 1.0 + 0.1 * jax.random.normal(ks[6], (cout,), jnp.float32)
    be2 = 0.1 * jax.random.normal(ks[7], (cout,), jnp.float32)
    return dict(
        gn1_g=g1, gn1_b=be1, gn2_g=g2, gn2_b=be2,
        # bf16 MXU operands (fp32 accumulation happens in-kernel).
        conv1_w=fold_conv_weights(w1).astype(compute_dtype), conv1_b=b1,
        conv2_w=fold_conv_weights(w2).astype(compute_dtype), conv2_b=b2,
        conv1_w_oihw=w1, conv2_w_oihw=w2,          # fp32, for the reference only
    )


# -----------------------------------------------------------------------------
# Pure-JAX fp32 reference (correctness check)
# -----------------------------------------------------------------------------
def _ref_groupnorm(x, g, b, groups=32, eps=1e-5):
    n, c, h, w = x.shape
    xg = x.reshape(n, groups, c // groups, h, w)
    m = xg.mean(axis=(2, 3, 4), keepdims=True)
    v = ((xg - m) ** 2).mean(axis=(2, 3, 4), keepdims=True)
    xn = ((xg - m) / jnp.sqrt(v + eps)).reshape(n, c, h, w)
    return xn * g[None, :, None, None] + b[None, :, None, None]


def _ref_conv3x3(x, w_oihw, b):
    y = jax.lax.conv_general_dilated(
        x, w_oihw, window_strides=(1, 1), padding=((1, 1), (1, 1)),
        dimension_numbers=("NCHW", "OIHW", "NCHW"))
    return y + b[None, :, None, None]


def resnet_block_ref(x, p):
    silu = lambda t: t * jax.nn.sigmoid(t)
    h = _ref_conv3x3(silu(_ref_groupnorm(x, p["gn1_g"], p["gn1_b"])),
                     p["conv1_w_oihw"], p["conv1_b"])
    h = _ref_conv3x3(silu(_ref_groupnorm(h, p["gn2_g"], p["gn2_b"])),
                     p["conv2_w_oihw"], p["conv2_b"])
    return h


# -----------------------------------------------------------------------------
if __name__ == "__main__":
    key = jax.random.PRNGKey(0)
    kx, kp = jax.random.split(key)

    # GroupNorm(32, C) requires C % 32 == 0; small spatial keeps the test fast.
    N, C_IN, C_OUT, H, W = 2, 32, 64, 16, 16
    x = jax.random.normal(kx, (N, C_IN, H, W), jnp.float32)
    params = make_params(kp, C_IN, C_OUT)

    # row_block=8 -> 2 row tiles per image, exercising the halo/tiling path.
    fwd = jax.jit(functools.partial(resnet_block, row_block=8))
    out = jax.block_until_ready(fwd(x, params))

    ref = resnet_block_ref(x, params)
    assert out.shape == (N, C_OUT, H, W), out.shape
    out32 = out.astype(jnp.float32)
    err = float(jnp.max(jnp.abs(out32 - ref)))
    mag = float(jnp.max(jnp.abs(ref)))
    # bf16 activations + bf16 MXU operands (fp32 accumulation): expect a few
    # tenths of a percent relative error per layer; this bound is ~3x margin.
    assert err <= 0.05 * mag + 0.02, f"max abs err {err} (ref magnitude {mag})"

    print("KERNEL_OK")
</pallas_src>

<mosaic_0001>
module attributes {stable_mosaic.version = 11 : i64} {
  func.func @_gn_partial_stats_kernel(%arg0: i32, %arg1: i32, %arg2: memref<1x128x32xbf16, #tpu.memory_space<vmem>>, %arg3: memref<1x1x2x32xf32, #tpu.memory_space<vmem>>) attributes {dimension_semantics = [#tpu.dimension_semantics<parallel>, #tpu.dimension_semantics<parallel>], iteration_bounds = array<i64: 2, 2>, scalar_prefetch = 0 : i64, scratch_operands = 0 : i64, tpu.core_type = #tpu.core_type<tc>, window_params = [{transform_indices = @transform_0, window_bounds = array<i64: 1, 128, 32>}, {transform_indices = @transform_1, window_bounds = array<i64: 1, 1, 2, 32>}]} {
    %c0 = arith.constant 0 : index
    %c0_0 = arith.constant 0 : index
    %c0_1 = arith.constant 0 : index
    %0 = vector.load %arg2[%c0, %c0_0, %c0_1] : memref<1x128x32xbf16, #tpu.memory_space<vmem>>, vector<1x128x32xbf16>
    %1 = vector.shape_cast %0 : vector<1x128x32xbf16> to vector<128x32xbf16>
    %2 = arith.extf %1 : vector<128x32xbf16> to vector<128x32xf32>
    %cst = arith.constant dense<0.000000e+00> : vector<32xf32>
    %3 = vector.multi_reduction <add>, %2, %cst [0] : vector<128x32xf32> to vector<32xf32>
    %4 = vector.shape_cast %3 : vector<32xf32> to vector<1x32xf32>
    %5 = arith.mulf %2, %2 : vector<128x32xf32>
    %cst_2 = arith.constant dense<0.000000e+00> : vector<32xf32>
    %6 = vector.multi_reduction <add>, %5, %cst_2 [0] : vector<128x32xf32> to vector<32xf32>
    %7 = vector.shape_cast %6 : vector<32xf32> to vector<1x32xf32>
    %8 = tpu.concatenate %4, %7 in 0 : vector<1x32xf32>, vector<1x32xf32> -> vector<2x32xf32>
    %c0_3 = arith.constant 0 : index
    %c0_4 = arith.constant 0 : index
    %c0_5 = arith.constant 0 : index
    %c0_6 = arith.constant 0 : index
    %9 = vector.load %arg3[%c0_3, %c0_4, %c0_5, %c0_6] : memref<1x1x2x32xf32, #tpu.memory_space<vmem>>, vector<1x1x2x32xf32>
    %10 = vector.shape_cast %9 : vector<1x1x2x32xf32> to vector<2x32xf32>
    %11 = vector.shape_cast %8 : vector<2x32xf32> to vector<1x1x2x32xf32>
    tpu.vector_store %arg3[%c0_3, %c0_4, %c0_5, %c0_6], %11 {strides = array<i32>} : memref<1x1x2x32xf32, #tpu.memory_space<vmem>>, vector<1x1x2x32xf32>,
    return
  }
  func.func @transform_0(%arg0: i32, %arg1: i32) -> (i32, i32, i32) {
    %c0_i32 = arith.constant 0 : i32
    %c0_i32_0 = arith.constant 0 : i32
    return %arg0, %arg1, %c0_i32 : i32, i32, i32
  }
  func.func @transform_1(%arg0: i32, %arg1: i32) -> (i32, i32, i32, i32) {
    %c0_i32 = arith.constant 0 : i32
    %c0_i32_0 = arith.constant 0 : i32
    %c0_i32_1 = arith.constant 0 : i32
    return %arg0, %arg1, %c0_i32, %c0_i32_0 : i32, i32, i32, i32
  }
}

module attributes {stable_mosaic.version = 11 : i64} {
  func.func @_gn_silu_conv3x3_kernel(%arg0: i32, %arg1: i32, %arg2: memref<1x128x32xbf16, #tpu.memory_space<vmem>>, %arg3: memref<1x16x32xbf16, #tpu.memory_space<vmem>>, %arg4: memref<1x16x32xbf16, #tpu.memory_space<vmem>>, %arg5: memref<1x2x32xf32, #tpu.memory_space<vmem>>, %arg6: memref<3x96x64xbf16, #tpu.memory_space<vmem>>, %arg7: memref<1x64xf32, #tpu.memory_space<vmem>>, %arg8: memref<1x128x64xbf16, #tpu.memory_space<vmem>>, %arg9: memref<1x1x2x64xf32, #tpu.memory_space<vmem>>) attributes {dimension_semantics = [#tpu.dimension_semantics<parallel>, #tpu.dimension_semantics<parallel>], iteration_bounds = array<i64: 2, 2>, scalar_prefetch = 0 : i64, scratch_operands = 0 : i64, tpu.core_type = #tpu.core_type<tc>, window_params = [{transform_indices = @transform_0, window_bounds = array<i64: 1, 128, 32>}, {transform_indices = @transform_1, window_bounds = array<i64: 1, 16, 32>}, {transform_indices = @transform_2, window_bounds = array<i64: 1, 16, 32>}, {transform_indices = @transform_3, window_bounds = array<i64: 1, 2, 32>}, {pipeline_mode = #tpu.pipeline_mode<synchronous>, transform_indices = @transform_4, window_bounds = array<i64: 3, 96, 64>}, {pipeline_mode = #tpu.pipeline_mode<synchronous>, transform_indices = @transform_5, window_bounds = array<i64: 1, 64>}, {transform_indices = @transform_6, window_bounds = array<i64: 1, 128, 64>}, {transform_indices = @transform_7, window_bounds = array<i64: 1, 1, 2, 64>}]} {
    %c0 = arith.constant 0 : index
    %c0_0 = arith.constant 0 : index
    %c0_1 = arith.constant 0 : index
    %0 = vector.load %arg5[%c0, %c0_0, %c0_1] : memref<1x2x32xf32, #tpu.memory_space<vmem>>, vector<1x1x32xf32>
    %1 = vector.shape_cast %0 : vector<1x1x32xf32> to vector<1x32xf32>
    %c0_2 = arith.constant 0 : index
    %c1 = arith.constant 1 : index
    %c0_3 = arith.constant 0 : index
    %2 = vector.load %arg5[%c0_2, %c1, %c0_3] : memref<1x2x32xf32, #tpu.memory_space<vmem>>, vector<1x1x32xf32>
    %3 = vector.shape_cast %2 : vector<1x1x32xf32> to vector<1x32xf32>
    %c0_4 = arith.constant 0 : index
    %c0_5 = arith.constant 0 : index
    %c0_6 = arith.constant 0 : index
    %4 = vector.load %arg3[%c0_4, %c0_5, %c0_6] : memref<1x16x32xbf16, #tpu.memory_space<vmem>>, vector<1x16x32xbf16>
    %5 = vector.shape_cast %4 : vector<1x16x32xbf16> to vector<16x32xbf16>
    %6 = arith.extf %5 : vector<16x32xbf16> to vector<16x32xf32>
    %7 = vector.broadcast %1 : vector<1x32xf32> to vector<16x32xf32>
    %8 = arith.mulf %6, %7 : vector<16x32xf32>
    %9 = vector.broadcast %3 : vector<1x32xf32> to vector<16x32xf32>
    %10 = arith.addf %8, %9 : vector<16x32xf32>
    %11 = arith.negf %10 : vector<16x32xf32>
    %12 = math.exp %11 : vector<16x32xf32>
    %cst = arith.constant 1.000000e+00 : f32
    %13 = vector.broadcast %cst : f32 to vector<16x32xf32>
    %14 = arith.addf %13, %12 : vector<16x32xf32>
    %15 = arith.divf %13, %14 : vector<16x32xf32>
    %16 = arith.mulf %10, %15 : vector<16x32xf32>
    %c0_i32 = arith.constant 0 : i32
    %17 = arith.cmpi sgt, %arg1, %c0_i32 : i32
    %18 = arith.extui %17 : i1 to i32
    %19 = arith.sitofp %18 : i32 to f32
    %20 = vector.broadcast %19 : f32 to vector<16x32xf32>
    %21 = arith.mulf %16, %20 : vector<16x32xf32>
    %c0_7 = arith.constant 0 : index
    %c0_8 = arith.constant 0 : index
    %c0_9 = arith.constant 0 : index
    %22 = vector.load %arg4[%c0_7, %c0_8, %c0_9] : memref<1x16x32xbf16, #tpu.memory_space<vmem>>, vector<1x16x32xbf16>
    %23 = vector.shape_cast %22 : vector<1x16x32xbf16> to vector<16x32xbf16>
    %24 = arith.extf %23 : vector<16x32xbf16> to vector<16x32xf32>
    %25 = vector.broadcast %1 : vector<1x32xf32> to vector<16x32xf32>
    %26 = arith.mulf %24, %25 : vector<16x32xf32>
    %27 = vector.broadcast %3 : vector<1x32xf32> to vector<16x32xf32>
    %28 = arith.addf %26, %27 : vector<16x32xf32>
    %29 = arith.negf %28 : vector<16x32xf32>
    %30 = math.exp %29 : vector<16x32xf32>
    %cst_10 = arith.constant 1.000000e+00 : f32
    %31 = vector.broadcast %cst_10 : f32 to vector<16x32xf32>
    %32 = arith.addf %31, %30 : vector<16x32xf32>
    %33 = arith.divf %31, %32 : vector<16x32xf32>
    %34 = arith.mulf %28, %33 : vector<16x32xf32>
    %c1_i32 = arith.constant 1 : i32
    %35 = arith.cmpi slt, %arg1, %c1_i32 : i32
    %36 = arith.extui %35 : i1 to i32
    %37 = arith.sitofp %36 : i32 to f32
    %38 = vector.broadcast %37 : f32 to vector<16x32xf32>
    %39 = arith.mulf %34, %38 : vector<16x32xf32>
    %c0_11 = arith.constant 0 : index
    %c0_12 = arith.constant 0 : index
    %c0_13 = arith.constant 0 : index
    %40 = vector.load %arg2[%c0_11, %c0_12, %c0_13] : memref<1x128x32xbf16, #tpu.memory_space<vmem>>, vector<1x128x32xbf16>
    %41 = vector.shape_cast %40 : vector<1x128x32xbf16> to vector<128x32xbf16>
    %42 = arith.extf %41 : vector<128x32xbf16> to vector<128x32xf32>
    %43 = vector.broadcast %1 : vector<1x32xf32> to vector<128x32xf32>
    %44 = arith.mulf %42, %43 : vector<128x32xf32>
    %45 = vector.broadcast %3 : vector<1x32xf32> to vector<128x32xf32>
    %46 = arith.addf %44, %45 : vector<128x32xf32>
    %47 = arith.negf %46 : vector<128x32xf32>
    %48 = math.exp %47 : vector<128x32xf32>
    %cst_14 = arith.constant 1.000000e+00 : f32
    %49 = vector.broadcast %cst_14 : f32 to vector<128x32xf32>
    %50 = arith.addf %49, %48 : vector<128x32xf32>
    %51 = arith.divf %49, %50 : vector<128x32xf32>
    %52 = arith.mulf %46, %51 : vector<128x32xf32>
    %53 = tpu.concatenate %21, %52, %39 in 0 : vector<16x32xf32>, vector<128x32xf32>, vector<16x32xf32> -> vector<160x32xf32>
    %cst_15 = arith.constant 0.000000e+00 : f32
    %54 = vector.broadcast %cst_15 : f32 to vector<1x32xf32>
    %55 = vector.extract_strided_slice %53 {offsets = [0, 0], sizes = [159, 32], strides = [1, 1]} : vector<160x32xf32> to vector<159x32xf32>
    %56 = tpu.concatenate %54, %55 in 0 : vector<1x32xf32>, vector<159x32xf32> -> vector<160x32xf32>
    %57 = vector.extract_strided_slice %53 {offsets = [1, 0], sizes = [159, 32], strides = [1, 1]} : vector<160x32xf32> to vector<159x32xf32>
    %58 = tpu.concatenate %57, %54 in 0 : vector<159x32xf32>, vector<1x32xf32> -> vector<160x32xf32>
    %59 = tpu.iota {dimensions = array<i32: 0>} : vector<160x1xi32>
    %c16_i32 = arith.constant 16 : i32
    %c0_i32_16 = arith.constant 0 : i32
    %60 = arith.cmpi eq, %c16_i32, %c0_i32_16 : i32
    %c1_i32_17 = arith.constant 1 : i32
    %61 = arith.select %60, %c1_i32_17, %c16_i32 : i32
    %62 = vector.broadcast %61 : i32 to vector<160x1xi32>
    %63 = arith.remsi %59, %62 : vector<160x1xi32>
    %c0_i32_18 = arith.constant 0 : i32
    %64 = vector.broadcast %c0_i32_18 : i32 to vector<160x1xi32>
    %65 = arith.cmpi ne, %63, %64 : vector<160x1xi32>
    %c0_i32_19 = arith.constant 0 : i32
    %66 = vector.broadcast %c0_i32_19 : i32 to vector<160x1xi32>
    %67 = arith.cmpi slt, %63, %66 : vector<160x1xi32>
    %c0_i32_20 = arith.constant 0 : i32
    %68 = arith.cmpi slt, %61, %c0_i32_20 : i32
    %69 = vector.broadcast %68 : i1 to vector<160x1xi1>
    %70 = vector.broadcast %69 : vector<160x1xi1> to vector<160x1xi1>
    %71 = arith.xori %67, %70 : vector<160x1xi1>
    %72 = arith.andi %71, %65 : vector<160x1xi1>
    %73 = vector.broadcast %61 : i32 to vector<160x1xi32>
    %74 = arith.addi %63, %73 : vector<160x1xi32>
    %75 = arith.select %72, %74, %63 : vector<160x1xi1>, vector<160x1xi32>
    %c0_i32_21 = arith.constant 0 : i32
    %76 = vector.broadcast %c0_i32_21 : i32 to vector<160x1xi32>
    %77 = arith.cmpi eq, %75, %76 : vector<160x1xi32>
    %cst_22 = arith.constant 0.000000e+00 : f32
    %78 = vector.shape_cast %77 : vector<160x1xi1> to vector<160x1xi1>
    %79 = vector.broadcast %78 : vector<160x1xi1> to vector<160x32xi1>
    %80 = vector.broadcast %cst_22 : f32 to vector<160x32xf32>
    %81 = arith.select %79, %80, %56 : vector<160x32xi1>, vector<160x32xf32>
    %82 = arith.truncf %81 : vector<160x32xf32> to vector<160x32xbf16>
    %c15_i32 = arith.constant 15 : i32
    %83 = vector.broadcast %c15_i32 : i32 to vector<160x1xi32>
    %84 = arith.cmpi eq, %75, %83 : vector<160x1xi32>
    %cst_23 = arith.constant 0.000000e+00 : f32
    %85 = vector.shape_cast %84 : vector<160x1xi1> to vector<160x1xi1>
    %86 = vector.broadcast %85 : vector<160x1xi1> to vector<160x32xi1>
    %87 = vector.broadcast %cst_23 : f32 to vector<160x32xf32>
    %88 = arith.select %86, %87, %58 : vector<160x32xi1>, vector<160x32xf32>
    %89 = arith.truncf %88 : vector<160x32xf32> to vector<160x32xbf16>
    %90 = arith.truncf %53 : vector<160x32xf32> to vector<160x32xbf16>
    %91 = tpu.concatenate %82, %90, %89 in 1 : vector<160x32xbf16>, vector<160x32xbf16>, vector<160x32xbf16> -> vector<160x96xbf16>
    %92 = vector.extract_strided_slice %91 {offsets = [0, 0], sizes = [128, 96], strides = [1, 1]} : vector<160x96xbf16> to vector<128x96xbf16>
    %c0_24 = arith.constant 0 : index
    %c0_25 = arith.constant 0 : index
    %c0_26 = arith.constant 0 : index
    %93 = vector.load %arg6[%c0_24, %c0_25, %c0_26] : memref<3x96x64xbf16, #tpu.memory_space<vmem>>, vector<1x96x64xbf16>
    %94 = vector.shape_cast %93 : vector<1x96x64xbf16> to vector<96x64xbf16>
    %cst_27 = arith.constant dense<0.000000e+00> : vector<128x64xf32>
    %95 = tpu.matmul %92, %94, %cst_27 {dimension_numbers = #tpu.dot_dimension_numbers<[1], [0], [0], [1], [0, 0, 1, 1], [], []>} : vector<128x96xbf16>, vector<96x64xbf16>, vector<128x64xf32> -> vector<128x64xf32>
    %96 = vector.extract_strided_slice %91 {offsets = [16, 0], sizes = [128, 96], strides = [1, 1]} : vector<160x96xbf16> to vector<128x96xbf16>
    %c1_28 = arith.constant 1 : index
    %c0_29 = arith.constant 0 : index
    %c0_30 = arith.constant 0 : index
    %97 = vector.load %arg6[%c1_28, %c0_29, %c0_30] : memref<3x96x64xbf16, #tpu.memory_space<vmem>>, vector<1x96x64xbf16>
    %98 = vector.shape_cast %97 : vector<1x96x64xbf16> to vector<96x64xbf16>
    %cst_31 = arith.constant dense<0.000000e+00> : vector<128x64xf32>
    %99 = tpu.matmul %96, %98, %cst_31 {dimension_numbers = #tpu.dot_dimension_numbers<[1], [0], [0], [1], [0, 0, 1, 1], [], []>} : vector<128x96xbf16>, vector<96x64xbf16>, vector<128x64xf32> -> vector<128x64xf32>
    %100 = arith.addf %95, %99 : vector<128x64xf32>
    %101 = vector.extract_strided_slice %91 {offsets = [32, 0], sizes = [128, 96], strides = [1, 1]} : vector<160x96xbf16> to vector<128x96xbf16>
    %c2 = arith.constant 2 : index
    %c0_32 = arith.constant 0 : index
    %c0_33 = arith.constant 0 : index
    %102 = vector.load %arg6[%c2, %c0_32, %c0_33] : memref<3x96x64xbf16, #tpu.memory_space<vmem>>, vector<1x96x64xbf16>
    %103 = vector.shape_cast %102 : vector<1x96x64xbf16> to vector<96x64xbf16>
    %cst_34 = arith.constant dense<0.000000e+00> : vector<128x64xf32>
    %104 = tpu.matmul %101, %103, %cst_34 {dimension_numbers = #tpu.dot_dimension_numbers<[1], [0], [0], [1], [0, 0, 1, 1], [], []>} : vector<128x96xbf16>, vector<96x64xbf16>, vector<128x64xf32> -> vector<128x64xf32>
    %105 = arith.addf %100, %104 : vector<128x64xf32>
    %c0_35 = arith.constant 0 : index
    %c0_36 = arith.constant 0 : index
    %106 = vector.load %arg7[%c0_35, %c0_36] : memref<1x64xf32, #tpu.memory_space<vmem>>, vector<1x64xf32>
    %107 = vector.broadcast %106 : vector<1x64xf32> to vector<128x64xf32>
    %108 = arith.addf %105, %107 : vector<128x64xf32>
    %109 = arith.truncf %108 : vector<128x64xf32> to vector<128x64xbf16>
    %c0_37 = arith.constant 0 : index
    %c0_38 = arith.constant 0 : index
    %c0_39 = arith.constant 0 : index
    %110 = vector.load %arg8[%c0_37, %c0_38, %c0_39] : memref<1x128x64xbf16, #tpu.memory_space<vmem>>, vector<1x128x64xbf16>
    %111 = vector.shape_cast %110 : vector<1x128x64xbf16> to vector<128x64xbf16>
    %112 = vector.shape_cast %109 : vector<128x64xbf16> to vector<1x128x64xbf16>
    tpu.vector_store %arg8[%c0_37, %c0_38, %c0_39], %112 {strides = array<i32>} : memref<1x128x64xbf16, #tpu.memory_space<vmem>>, vector<1x128x64xbf16>,
    %cst_40 = arith.constant dense<0.000000e+00> : vector<64xf32>
    %113 = vector.multi_reduction <add>, %108, %cst_40 [0] : vector<128x64xf32> to vector<64xf32>
    %114 = vector.shape_cast %113 : vector<64xf32> to vector<1x64xf32>
    %115 = arith.mulf %108, %108 : vector<128x64xf32>
    %cst_41 = arith.constant dense<0.000000e+00> : vector<64xf32>
    %116 = vector.multi_reduction <add>, %115, %cst_41 [0] : vector<128x64xf32> to vector<64xf32>
    %117 = vector.shape_cast %116 : vector<64xf32> to vector<1x64xf32>
    %118 = tpu.concatenate %114, %117 in 0 : vector<1x64xf32>, vector<1x64xf32> -> vector<2x64xf32>
    %c0_42 = arith.constant 0 : index
    %c0_43 = arith.constant 0 : index
    %c0_44 = arith.constant 0 : index
    %c0_45 = arith.constant 0 : index
    %119 = vector.load %arg9[%c0_42, %c0_43, %c0_44, %c0_45] : memref<1x1x2x64xf32, #tpu.memory_space<vmem>>, vector<1x1x2x64xf32>
    %120 = vector.shape_cast %119 : vector<1x1x2x64xf32> to vector<2x64xf32>
    %121 = vector.shape_cast %118 : vector<2x64xf32> to vector<1x1x2x64xf32>
    tpu.vector_store %arg9[%c0_42, %c0_43, %c0_44, %c0_45], %121 {strides = array<i32>} : memref<1x1x2x64xf32, #tpu.memory_space<vmem>>, vector<1x1x2x64xf32>,
    return
  }
  func.func @transform_0(%arg0: i32, %arg1: i32) -> (i32, i32, i32) {
    %c0_i32 = arith.constant 0 : i32
    %c0_i32_0 = arith.constant 0 : i32
    return %arg0, %arg1, %c0_i32 : i32, i32, i32
  }
  func.func @transform_1(%arg0: i32, %arg1: i32) -> (i32, i32, i32) {
    %c8_i32 = arith.constant 8 : i32
    %0 = arith.muli %arg1, %c8_i32 : i32
    %c1_i32 = arith.constant 1 : i32
    %1 = arith.subi %0, %c1_i32 : i32
    %c0_i32 = arith.constant 0 : i32
    %2 = arith.maxsi %1, %c0_i32 : i32
    %c0_i32_0 = arith.constant 0 : i32
    %c0_i32_1 = arith.constant 0 : i32
    return %arg0, %2, %c0_i32_0 : i32, i32, i32
  }
  func.func @transform_2(%arg0: i32, %arg1: i32) -> (i32, i32, i32) {
    %c1_i32 = arith.constant 1 : i32
    %0 = arith.addi %arg1, %c1_i32 : i32
    %c8_i32 = arith.constant 8 : i32
    %1 = arith.muli %0, %c8_i32 : i32
    %c15_i32 = arith.constant 15 : i32
    %2 = arith.minsi %1, %c15_i32 : i32
    %c0_i32 = arith.constant 0 : i32
    %c0_i32_0 = arith.constant 0 : i32
    return %arg0, %2, %c0_i32 : i32, i32, i32
  }
  func.func @transform_3(%arg0: i32, %arg1: i32) -> (i32, i32, i32) {
    %c0_i32 = arith.constant 0 : i32
    %c0_i32_0 = arith.constant 0 : i32
    %c0_i32_1 = arith.constant 0 : i32
    return %arg0, %c0_i32, %c0_i32_0 : i32, i32, i32
  }
  func.func @transform_4(%arg0: i32, %arg1: i32) -> (i32, i32, i32) {
    %c0_i32 = arith.constant 0 : i32
    %c0_i32_0 = arith.constant 0 : i32
    %c0_i32_1 = arith.constant 0 : i32
    %c0_i32_2 = arith.constant 0 : i32
    return %c0_i32, %c0_i32_0, %c0_i32_1 : i32, i32, i32
  }
  func.func @transform_5(%arg0: i32, %arg1: i32) -> (i32, i32) {
    %c0_i32 = arith.constant 0 : i32
    %c0_i32_0 = arith.constant 0 : i32
    %c0_i32_1 = arith.constant 0 : i32
    return %c0_i32, %c0_i32_0 : i32, i32
  }
  func.func @transform_6(%arg0: i32, %arg1: i32) -> (i32, i32, i32) {
    %c0_i32 = arith.constant 0 : i32
    %c0_i32_0 = arith.constant 0 : i32
    return %arg0, %arg1, %c0_i32 : i32, i32, i32
  }
  func.func @transform_7(%arg0: i32, %arg1: i32) -> (i32, i32, i32, i32) {
    %c0_i32 = arith.constant 0 : i32
    %c0_i32_0 = arith.constant 0 : i32
    %c0_i32_1 = arith.constant 0 : i32
    return %arg0, %arg1, %c0_i32, %c0_i32_0 : i32, i32, i32, i32
  }
}

module attributes {stable_mosaic.version = 11 : i64} {
  func.func @_gn_silu_conv3x3_kernel(%arg0: i32, %arg1: i32, %arg2: memref<1x128x64xbf16, #tpu.memory_space<vmem>>, %arg3: memref<1x16x64xbf16, #tpu.memory_space<vmem>>, %arg4: memref<1x16x64xbf16, #tpu.memory_space<vmem>>, %arg5: memref<1x2x64xf32, #tpu.memory_space<vmem>>, %arg6: memref<3x192x64xbf16, #tpu.memory_space<vmem>>, %arg7: memref<1x64xf32, #tpu.memory_space<vmem>>, %arg8: memref<1x128x64xbf16, #tpu.memory_space<vmem>>) attributes {dimension_semantics = [#tpu.dimension_semantics<parallel>, #tpu.dimension_semantics<parallel>], iteration_bounds = array<i64: 2, 2>, scalar_prefetch = 0 : i64, scratch_operands = 0 : i64, tpu.core_type = #tpu.core_type<tc>, window_params = [{transform_indices = @transform_0, window_bounds = array<i64: 1, 128, 64>}, {transform_indices = @transform_1, window_bounds = array<i64: 1, 16, 64>}, {transform_indices = @transform_2, window_bounds = array<i64: 1, 16, 64>}, {transform_indices = @transform_3, window_bounds = array<i64: 1, 2, 64>}, {pipeline_mode = #tpu.pipeline_mode<synchronous>, transform_indices = @transform_4, window_bounds = array<i64: 3, 192, 64>}, {pipeline_mode = #tpu.pipeline_mode<synchronous>, transform_indices = @transform_5, window_bounds = array<i64: 1, 64>}, {transform_indices = @transform_6, window_bounds = array<i64: 1, 128, 64>}]} {
    %c0 = arith.constant 0 : index
    %c0_0 = arith.constant 0 : index
    %c0_1 = arith.constant 0 : index
    %0 = vector.load %arg5[%c0, %c0_0, %c0_1] : memref<1x2x64xf32, #tpu.memory_space<vmem>>, vector<1x1x64xf32>
    %1 = vector.shape_cast %0 : vector<1x1x64xf32> to vector<1x64xf32>
    %c0_2 = arith.constant 0 : index
    %c1 = arith.constant 1 : index
    %c0_3 = arith.constant 0 : index
    %2 = vector.load %arg5[%c0_2, %c1, %c0_3] : memref<1x2x64xf32, #tpu.memory_space<vmem>>, vector<1x1x64xf32>
    %3 = vector.shape_cast %2 : vector<1x1x64xf32> to vector<1x64xf32>
    %c0_4 = arith.constant 0 : index
    %c0_5 = arith.constant 0 : index
    %c0_6 = arith.constant 0 : index
    %4 = vector.load %arg3[%c0_4, %c0_5, %c0_6] : memref<1x16x64xbf16, #tpu.memory_space<vmem>>, vector<1x16x64xbf16>
    %5 = vector.shape_cast %4 : vector<1x16x64xbf16> to vector<16x64xbf16>
    %6 = arith.extf %5 : vector<16x64xbf16> to vector<16x64xf32>
    %7 = vector.broadcast %1 : vector<1x64xf32> to vector<16x64xf32>
    %8 = arith.mulf %6, %7 : vector<16x64xf32>
    %9 = vector.broadcast %3 : vector<1x64xf32> to vector<16x64xf32>
    %10 = arith.addf %8, %9 : vector<16x64xf32>
    %11 = arith.negf %10 : vector<16x64xf32>
    %12 = math.exp %11 : vector<16x64xf32>
    %cst = arith.constant 1.000000e+00 : f32
    %13 = vector.broadcast %cst : f32 to vector<16x64xf32>
    %14 = arith.addf %13, %12 : vector<16x64xf32>
    %15 = arith.divf %13, %14 : vector<16x64xf32>
    %16 = arith.mulf %10, %15 : vector<16x64xf32>
    %c0_i32 = arith.constant 0 : i32
    %17 = arith.cmpi sgt, %arg1, %c0_i32 : i32
    %18 = arith.extui %17 : i1 to i32
    %19 = arith.sitofp %18 : i32 to f32
    %20 = vector.broadcast %19 : f32 to vector<16x64xf32>
    %21 = arith.mulf %16, %20 : vector<16x64xf32>
    %c0_7 = arith.constant 0 : index
    %c0_8 = arith.constant 0 : index
    %c0_9 = arith.constant 0 : index
    %22 = vector.load %arg4[%c0_7, %c0_8, %c0_9] : memref<1x16x64xbf16, #tpu.memory_space<vmem>>, vector<1x16x64xbf16>
    %23 = vector.shape_cast %22 : vector<1x16x64xbf16> to vector<16x64xbf16>
    %24 = arith.extf %23 : vector<16x64xbf16> to vector<16x64xf32>
    %25 = vector.broadcast %1 : vector<1x64xf32> to vector<16x64xf32>
    %26 = arith.mulf %24, %25 : vector<16x64xf32>
    %27 = vector.broadcast %3 : vector<1x64xf32> to vector<16x64xf32>
    %28 = arith.addf %26, %27 : vector<16x64xf32>
    %29 = arith.negf %28 : vector<16x64xf32>
    %30 = math.exp %29 : vector<16x64xf32>
    %cst_10 = arith.constant 1.000000e+00 : f32
    %31 = vector.broadcast %cst_10 : f32 to vector<16x64xf32>
    %32 = arith.addf %31, %30 : vector<16x64xf32>
    %33 = arith.divf %31, %32 : vector<16x64xf32>
    %34 = arith.mulf %28, %33 : vector<16x64xf32>
    %c1_i32 = arith.constant 1 : i32
    %35 = arith.cmpi slt, %arg1, %c1_i32 : i32
    %36 = arith.extui %35 : i1 to i32
    %37 = arith.sitofp %36 : i32 to f32
    %38 = vector.broadcast %37 : f32 to vector<16x64xf32>
    %39 = arith.mulf %34, %38 : vector<16x64xf32>
    %c0_11 = arith.constant 0 : index
    %c0_12 = arith.constant 0 : index
    %c0_13 = arith.constant 0 : index
    %40 = vector.load %arg2[%c0_11, %c0_12, %c0_13] : memref<1x128x64xbf16, #tpu.memory_space<vmem>>, vector<1x128x64xbf16>
    %41 = vector.shape_cast %40 : vector<1x128x64xbf16> to vector<128x64xbf16>
    %42 = arith.extf %41 : vector<128x64xbf16> to vector<128x64xf32>
    %43 = vector.broadcast %1 : vector<1x64xf32> to vector<128x64xf32>
    %44 = arith.mulf %42, %43 : vector<128x64xf32>
    %45 = vector.broadcast %3 : vector<1x64xf32> to vector<128x64xf32>
    %46 = arith.addf %44, %45 : vector<128x64xf32>
    %47 = arith.negf %46 : vector<128x64xf32>
    %48 = math.exp %47 : vector<128x64xf32>
    %cst_14 = arith.constant 1.000000e+00 : f32
    %49 = vector.broadcast %cst_14 : f32 to vector<128x64xf32>
    %50 = arith.addf %49, %48 : vector<128x64xf32>
    %51 = arith.divf %49, %50 : vector<128x64xf32>
    %52 = arith.mulf %46, %51 : vector<128x64xf32>
    %53 = tpu.concatenate %21, %52, %39 in 0 : vector<16x64xf32>, vector<128x64xf32>, vector<16x64xf32> -> vector<160x64xf32>
    %cst_15 = arith.constant 0.000000e+00 : f32
    %54 = vector.broadcast %cst_15 : f32 to vector<1x64xf32>
    %55 = vector.extract_strided_slice %53 {offsets = [0, 0], sizes = [159, 64], strides = [1, 1]} : vector<160x64xf32> to vector<159x64xf32>
    %56 = tpu.concatenate %54, %55 in 0 : vector<1x64xf32>, vector<159x64xf32> -> vector<160x64xf32>
    %57 = vector.extract_strided_slice %53 {offsets = [1, 0], sizes = [159, 64], strides = [1, 1]} : vector<160x64xf32> to vector<159x64xf32>
    %58 = tpu.concatenate %57, %54 in 0 : vector<159x64xf32>, vector<1x64xf32> -> vector<160x64xf32>
    %59 = tpu.iota {dimensions = array<i32: 0>} : vector<160x1xi32>
    %c16_i32 = arith.constant 16 : i32
    %c0_i32_16 = arith.constant 0 : i32
    %60 = arith.cmpi eq, %c16_i32, %c0_i32_16 : i32
    %c1_i32_17 = arith.constant 1 : i32
    %61 = arith.select %60, %c1_i32_17, %c16_i32 : i32
    %62 = vector.broadcast %61 : i32 to vector<160x1xi32>
    %63 = arith.remsi %59, %62 : vector<160x1xi32>
    %c0_i32_18 = arith.constant 0 : i32
    %64 = vector.broadcast %c0_i32_18 : i32 to vector<160x1xi32>
    %65 = arith.cmpi ne, %63, %64 : vector<160x1xi32>
    %c0_i32_19 = arith.constant 0 : i32
    %66 = vector.broadcast %c0_i32_19 : i32 to vector<160x1xi32>
    %67 = arith.cmpi slt, %63, %66 : vector<160x1xi32>
    %c0_i32_20 = arith.constant 0 : i32
    %68 = arith.cmpi slt, %61, %c0_i32_20 : i32
    %69 = vector.broadcast %68 : i1 to vector<160x1xi1>
    %70 = vector.broadcast %69 : vector<160x1xi1> to vector<160x1xi1>
    %71 = arith.xori %67, %70 : vector<160x1xi1>
    %72 = arith.andi %71, %65 : vector<160x1xi1>
    %73 = vector.broadcast %61 : i32 to vector<160x1xi32>
    %74 = arith.addi %63, %73 : vector<160x1xi32>
    %75 = arith.select %72, %74, %63 : vector<160x1xi1>, vector<160x1xi32>
    %c0_i32_21 = arith.constant 0 : i32
    %76 = vector.broadcast %c0_i32_21 : i32 to vector<160x1xi32>
    %77 = arith.cmpi eq, %75, %76 : vector<160x1xi32>
    %cst_22 = arith.constant 0.000000e+00 : f32
    %78 = vector.shape_cast %77 : vector<160x1xi1> to vector<160x1xi1>
    %79 = vector.broadcast %78 : vector<160x1xi1> to vector<160x64xi1>
    %80 = vector.broadcast %cst_22 : f32 to vector<160x64xf32>
    %81 = arith.select %79, %80, %56 : vector<160x64xi1>, vector<160x64xf32>
    %82 = arith.truncf %81 : vector<160x64xf32> to vector<160x64xbf16>
    %c15_i32 = arith.constant 15 : i32
    %83 = vector.broadcast %c15_i32 : i32 to vector<160x1xi32>
    %84 = arith.cmpi eq, %75, %83 : vector<160x1xi32>
    %cst_23 = arith.constant 0.000000e+00 : f32
    %85 = vector.shape_cast %84 : vector<160x1xi1> to vector<160x1xi1>
    %86 = vector.broadcast %85 : vector<160x1xi1> to vector<160x64xi1>
    %87 = vector.broadcast %cst_23 : f32 to vector<160x64xf32>
    %88 = arith.select %86, %87, %58 : vector<160x64xi1>, vector<160x64xf32>
    %89 = arith.truncf %88 : vector<160x64xf32> to vector<160x64xbf16>
    %90 = arith.truncf %53 : vector<160x64xf32> to vector<160x64xbf16>
    %91 = tpu.concatenate %82, %90, %89 in 1 : vector<160x64xbf16>, vector<160x64xbf16>, vector<160x64xbf16> -> vector<160x192xbf16>
    %92 = vector.extract_strided_slice %91 {offsets = [0, 0], sizes = [128, 192], strides = [1, 1]} : vector<160x192xbf16> to vector<128x192xbf16>
    %c0_24 = arith.constant 0 : index
    %c0_25 = arith.constant 0 : index
    %c0_26 = arith.constant 0 : index
    %93 = vector.load %arg6[%c0_24, %c0_25, %c0_26] : memref<3x192x64xbf16, #tpu.memory_space<vmem>>, vector<1x192x64xbf16>
    %94 = vector.shape_cast %93 : vector<1x192x64xbf16> to vector<192x64xbf16>
    %cst_27 = arith.constant dense<0.000000e+00> : vector<128x64xf32>
    %95 = tpu.matmul %92, %94, %cst_27 {dimension_numbers = #tpu.dot_dimension_numbers<[1], [0], [0], [1], [0, 0, 1, 1], [], []>} : vector<128x192xbf16>, vector<192x64xbf16>, vector<128x64xf32> -> vector<128x64xf32>
    %96 = vector.extract_strided_slice %91 {offsets = [16, 0], sizes = [128, 192], strides = [1, 1]} : vector<160x192xbf16> to vector<128x192xbf16>
    %c1_28 = arith.constant 1 : index
    %c0_29 = arith.constant 0 : index
    %c0_30 = arith.constant 0 : index
    %97 = vector.load %arg6[%c1_28, %c0_29, %c0_30] : memref<3x192x64xbf16, #tpu.memory_space<vmem>>, vector<1x192x64xbf16>
    %98 = vector.shape_cast %97 : vector<1x192x64xbf16> to vector<192x64xbf16>
    %cst_31 = arith.constant dense<0.000000e+00> : vector<128x64xf32>
    %99 = tpu.matmul %96, %98, %cst_31 {dimension_numbers = #tpu.dot_dimension_numbers<[1], [0], [0], [1], [0, 0, 1, 1], [], []>} : vector<128x192xbf16>, vector<192x64xbf16>, vector<128x64xf32> -> vector<128x64xf32>
    %100 = arith.addf %95, %99 : vector<128x64xf32>
    %101 = vector.extract_strided_slice %91 {offsets = [32, 0], sizes = [128, 192], strides = [1, 1]} : vector<160x192xbf16> to vector<128x192xbf16>
    %c2 = arith.constant 2 : index
    %c0_32 = arith.constant 0 : index
    %c0_33 = arith.constant 0 : index
    %102 = vector.load %arg6[%c2, %c0_32, %c0_33] : memref<3x192x64xbf16, #tpu.memory_space<vmem>>, vector<1x192x64xbf16>
    %103 = vector.shape_cast %102 : vector<1x192x64xbf16> to vector<192x64xbf16>
    %cst_34 = arith.constant dense<0.000000e+00> : vector<128x64xf32>
    %104 = tpu.matmul %101, %103, %cst_34 {dimension_numbers = #tpu.dot_dimension_numbers<[1], [0], [0], [1], [0, 0, 1, 1], [], []>} : vector<128x192xbf16>, vector<192x64xbf16>, vector<128x64xf32> -> vector<128x64xf32>
    %105 = arith.addf %100, %104 : vector<128x64xf32>
    %c0_35 = arith.constant 0 : index
    %c0_36 = arith.constant 0 : index
    %106 = vector.load %arg7[%c0_35, %c0_36] : memref<1x64xf32, #tpu.memory_space<vmem>>, vector<1x64xf32>
    %107 = vector.broadcast %106 : vector<1x64xf32> to vector<128x64xf32>
    %108 = arith.addf %105, %107 : vector<128x64xf32>
    %109 = arith.truncf %108 : vector<128x64xf32> to vector<128x64xbf16>
    %c0_37 = arith.constant 0 : index
    %c0_38 = arith.constant 0 : index
    %c0_39 = arith.constant 0 : index
    %110 = vector.load %arg8[%c0_37, %c0_38, %c0_39] : memref<1x128x64xbf16, #tpu.memory_space<vmem>>, vector<1x128x64xbf16>
    %111 = vector.shape_cast %110 : vector<1x128x64xbf16> to vector<128x64xbf16>
    %112 = vector.shape_cast %109 : vector<128x64xbf16> to vector<1x128x64xbf16>
    tpu.vector_store %arg8[%c0_37, %c0_38, %c0_39], %112 {strides = array<i32>} : memref<1x128x64xbf16, #tpu.memory_space<vmem>>, vector<1x128x64xbf16>,
    return
  }
  func.func @transform_0(%arg0: i32, %arg1: i32) -> (i32, i32, i32) {
    %c0_i32 = arith.constant 0 : i32
    %c0_i32_0 = arith.constant 0 : i32
    return %arg0, %arg1, %c0_i32 : i32, i32, i32
  }
  func.func @transform_1(%arg0: i32, %arg1: i32) -> (i32, i32, i32) {
    %c8_i32 = arith.constant 8 : i32
    %0 = arith.muli %arg1, %c8_i32 : i32
    %c1_i32 = arith.constant 1 : i32
    %1 = arith.subi %0, %c1_i32 : i32
    %c0_i32 = arith.constant 0 : i32
    %2 = arith.maxsi %1, %c0_i32 : i32
    %c0_i32_0 = arith.constant 0 : i32
    %c0_i32_1 = arith.constant 0 : i32
    return %arg0, %2, %c0_i32_0 : i32, i32, i32
  }
  func.func @transform_2(%arg0: i32, %arg1: i32) -> (i32, i32, i32) {
    %c1_i32 = arith.constant 1 : i32
    %0 = arith.addi %arg1, %c1_i32 : i32
    %c8_i32 = arith.constant 8 : i32
    %1 = arith.muli %0, %c8_i32 : i32
    %c15_i32 = arith.constant 15 : i32
    %2 = arith.minsi %1, %c15_i32 : i32
    %c0_i32 = arith.constant 0 : i32
    %c0_i32_0 = arith.constant 0 : i32
    return %arg0, %2, %c0_i32 : i32, i32, i32
  }
  func.func @transform_3(%arg0: i32, %arg1: i32) -> (i32, i32, i32) {
    %c0_i32 = arith.constant 0 : i32
    %c0_i32_0 = arith.constant 0 : i32
    %c0_i32_1 = arith.constant 0 : i32
    return %arg0, %c0_i32, %c0_i32_0 : i32, i32, i32
  }
  func.func @transform_4(%arg0: i32, %arg1: i32) -> (i32, i32, i32) {
    %c0_i32 = arith.constant 0 : i32
    %c0_i32_0 = arith.constant 0 : i32
    %c0_i32_1 = arith.constant 0 : i32
    %c0_i32_2 = arith.constant 0 : i32
    return %c0_i32, %c0_i32_0, %c0_i32_1 : i32, i32, i32
  }
  func.func @transform_5(%arg0: i32, %arg1: i32) -> (i32, i32) {
    %c0_i32 = arith.constant 0 : i32
    %c0_i32_0 = arith.constant 0 : i32
    %c0_i32_1 = arith.constant 0 : i32
    return %c0_i32, %c0_i32_0 : i32, i32
  }
  func.func @transform_6(%arg0: i32, %arg1: i32) -> (i32, i32, i32) {
    %c0_i32 = arith.constant 0 : i32
    %c0_i32_0 = arith.constant 0 : i32
    return %arg0, %arg1, %c0_i32 : i32, i32, i32
  }
}

</mosaic_0001>

<llo_original>
// kernel: squeeze.7
$region0: #{squeeze.7}
  %s0 = inlined_call_operand.vmem [shape: f32[2,64], index: 0, kind: input, shape index: {}]
  %s1 = inlined_call_operand.vmem [shape: f32[2,32,2], index: 1, kind: output, shape index: {}]
  $region1: #{squeeze.7} parent=0
    #allocation0 [shape = 'u8[4096]{0}', space=vmem, size = 0x1000, scoped, tag = 'scoped mem for input reshape']
    %s3 = sshllo.u32 0, 2
    %v4 = vld [vmem:[%s0] sm:%s3]
    %5 = vst [vmem:[#allocation0] sm:%s3] %v4
    %v6 = vld [vmem:[#allocation0] sm:$0x3]
    %vm7 = vcmask 15360
    %8 = vst.msk [vmem:[%s1] sm:$0x1] %vm7, %v6
    %s9 = scalar_lea.vmem %s1, 31
    %10 = vst.msk [vmem:[%s9] sm:$0x2] %vm7, %v6
    %v11 = vld [vmem:[#allocation0] sm:$0x3]
    %12 = vrot.lane.b32.xlu0 %v11, 126
    %v13 = vpop.permute.xlu0 %12
    %vm14 = vcmask 15360
    %s15 = scalar_lea.vmem %s1, 1
    %16 = vst.msk [vmem:[%s15] sm:$0x1] %vm14, %v13
    %s17 = scalar_lea.vmem %s1, 32
    %18 = vst.msk [vmem:[%s17] sm:$0x2] %vm14, %v13
    %v19 = vld [vmem:[#allocation0] sm:$0x3]
    %20 = vrot.lane.b32.xlu0 %v19, 124
    %v21 = vpop.permute.xlu0 %20
    %vm22 = vcmask 15360
    %s23 = scalar_lea.vmem %s1, 2
    %24 = vst.msk [vmem:[%s23] sm:$0x1] %vm22, %v21
    %s25 = scalar_lea.vmem %s1, 33
    %26 = vst.msk [vmem:[%s25] sm:$0x2] %vm22, %v21
    %v27 = vld [vmem:[#allocation0] sm:$0x3]
    %28 = vrot.lane.b32.xlu0 %v27, 122
    %v29 = vpop.permute.xlu0 %28
    %vm30 = vcmask 15360
    %s31 = scalar_lea.vmem %s1, 3
    %32 = vst.msk [vmem:[%s31] sm:$0x1] %vm30, %v29
    %s33 = scalar_lea.vmem %s1, 34
    %34 = vst.msk [vmem:[%s33] sm:$0x2] %vm30, %v29
    %v35 = vld [vmem:[#allocation0] sm:$0x3]
    %36 = vrot.lane.b32.xlu0 %v35, 120
    %v37 = vpop.permute.xlu0 %36
    %vm38 = vcmask 15360
    %s39 = scalar_lea.vmem %s1, 4
    %40 = vst.msk [vmem:[%s39] sm:$0x1] %vm38, %v37
    %s41 = scalar_lea.vmem %s1, 35
    %42 = vst.msk [vmem:[%s41] sm:$0x2] %vm38, %v37
    %v43 = vld [vmem:[#allocation0] sm:$0x3]
    %44 = vrot.lane.b32.xlu0 %v43, 118
    %v45 = vpop.permute.xlu0 %44
    %vm46 = vcmask 15360
    %s47 = scalar_lea.vmem %s1, 5
    %48 = vst.msk [vmem:[%s47] sm:$0x1] %vm46, %v45
    %s49 = scalar_lea.vmem %s1, 36
    %50 = vst.msk [vmem:[%s49] sm:$0x2] %vm46, %v45
    %v51 = vld [vmem:[#allocation0] sm:$0x3]
    %52 = vrot.lane.b32.xlu0 %v51, 116
    %v53 = vpop.permute.xlu0 %52
    %vm54 = vcmask 15360
    %s55 = scalar_lea.vmem %s1, 6
    %56 = vst.msk [vmem:[%s55] sm:$0x1] %vm54, %v53
    %s57 = scalar_lea.vmem %s1, 37
    %58 = vst.msk [vmem:[%s57] sm:$0x2] %vm54, %v53
    %v59 = vld [vmem:[#allocation0] sm:$0x3]
    %60 = vrot.lane.b32.xlu0 %v59, 114
    %v61 = vpop.permute.xlu0 %60
    %vm62 = vcmask 15360
    %s63 = scalar_lea.vmem %s1, 7
    %64 = vst.msk [vmem:[%s63] sm:$0x1] %vm62, %v61
    %s65 = scalar_lea.vmem %s1, 38
    %66 = vst.msk [vmem:[%s65] sm:$0x2] %vm62, %v61
    %v67 = vld [vmem:[#allocation0] sm:$0x3]
    %68 = vrot.lane.b32.xlu0 %v67, 112
    %v69 = vpop.permute.xlu0 %68
    %vm70 = vcmask 15360
    %s71 = scalar_lea.vmem %s1, 8
    %72 = vst.msk [vmem:[%s71] sm:$0x1] %vm70, %v69
    %s73 = scalar_lea.vmem %s1, 39
    %74 = vst.msk [vmem:[%s73] sm:$0x2] %vm70, %v69
    %v75 = vld [vmem:[#allocation0] sm:$0x3]
    %76 = vrot.lane.b32.xlu0 %v75, 110
    %v77 = vpop.permute.xlu0 %76
    %vm78 = vcmask 15360
    %s79 = scalar_lea.vmem %s1, 9
    %80 = vst.msk [vmem:[%s79] sm:$0x1] %vm78, %v77
    %s81 = scalar_lea.vmem %s1, 40
    %82 = vst.msk [vmem:[%s81] sm:$0x2] %vm78, %v77
    %v83 = vld [vmem:[#allocation0] sm:$0x3]
    %84 = vrot.lane.b32.xlu0 %v83, 108
    %v85 = vpop.permute.xlu0 %84
    %vm86 = vcmask 15360
    %s87 = scalar_lea.vmem %s1, 10
    %88 = vst.msk [vmem:[%s87] sm:$0x1] %vm86, %v85
    %s89 = scalar_lea.vmem %s1, 41
    %90 = vst.msk [vmem:[%s89] sm:$0x2] %vm86, %v85
    %v91 = vld [vmem:[#allocation0] sm:$0x3]
    %92 = vrot.lane.b32.xlu0 %v91, 106
    %v93 = vpop.permute.xlu0 %92
    %vm94 = vcmask 15360
    %s95 = scalar_lea.vmem %s1, 11
    %96 = vst.msk [vmem:[%s95] sm:$0x1] %vm94, %v93
    %s97 = scalar_lea.vmem %s1, 42
    %98 = vst.msk [vmem:[%s97] sm:$0x2] %vm94, %v93
    %v99 = vld [vmem:[#allocation0] sm:$0x3]
    %100 = vrot.lane.b32.xlu0 %v99, 104
    %v101 = vpop.permute.xlu0 %100
    %vm102 = vcmask 15360
    %s103 = scalar_lea.vmem %s1, 12
    %104 = vst.msk [vmem:[%s103] sm:$0x1] %vm102, %v101
    %s105 = scalar_lea.vmem %s1, 43
    %106 = vst.msk [vmem:[%s105] sm:$0x2] %vm102, %v101
    %v107 = vld [vmem:[#allocation0] sm:$0x3]
    %108 = vrot.lane.b32.xlu0 %v107, 102
    %v109 = vpop.permute.xlu0 %108
    %vm110 = vcmask 15360
    %s111 = scalar_lea.vmem %s1, 13
    %112 = vst.msk [vmem:[%s111] sm:$0x1] %vm110, %v109
    %s113 = scalar_lea.vmem %s1, 44
    %114 = vst.msk [vmem:[%s113] sm:$0x2] %vm110, %v109
    %v115 = vld [vmem:[#allocation0] sm:$0x3]
    %116 = vrot.lane.b32.xlu0 %v115, 100
    %v117 = vpop.permute.xlu0 %116
    %vm118 = vcmask 15360
    %s119 = scalar_lea.vmem %s1, 14
    %120 = vst.msk [vmem:[%s119] sm:$0x1] %vm118, %v117
    %s121 = scalar_lea.vmem %s1, 45
    %122 = vst.msk [vmem:[%s121] sm:$0x2] %vm118, %v117
    %v123 = vld [vmem:[#allocation0] sm:$0x3]
    %124 = vrot.lane.b32.xlu0 %v123, 98
    %v125 = vpop.permute.xlu0 %124
    %vm126 = vcmask 15360
    %s127 = scalar_lea.vmem %s1, 15
    %128 = vst.msk [vmem:[%s127] sm:$0x1] %vm126, %v125
    %s129 = scalar_lea.vmem %s1, 46
    %130 = vst.msk [vmem:[%s129] sm:$0x2] %vm126, %v125
    %v131 = vld [vmem:[#allocation0] sm:$0x3]
    %132 = vrot.lane.b32.xlu0 %v131, 96
    %v133 = vpop.permute.xlu0 %132
    %vm134 = vcmask 15360
    %s135 = scalar_lea.vmem %s1, 16
    %136 = vst.msk [vmem:[%s135] sm:$0x1] %vm134, %v133
    %s137 = scalar_lea.vmem %s1, 47
    %138 = vst.msk [vmem:[%s137] sm:$0x2] %vm134, %v133
    %v139 = vld [vmem:[#allocation0] sm:$0x3]
    %140 = vrot.lane.b32.xlu0 %v139, 94
    %v141 = vpop.permute.xlu0 %140
    %vm142 = vcmask 15360
    %s143 = scalar_lea.vmem %s1, 17
    %144 = vst.msk [vmem:[%s143] sm:$0x1] %vm142, %v141
    %s145 = scalar_lea.vmem %s1, 48
    %146 = vst.msk [vmem:[%s145] sm:$0x2] %vm142, %v141
    %v147 = vld [vmem:[#allocation0] sm:$0x3]
    %148 = vrot.lane.b32.xlu0 %v147, 92
    %v149 = vpop.permute.xlu0 %148
    %vm150 = vcmask 15360
    %s151 = scalar_lea.vmem %s1, 18
    %152 = vst.msk [vmem:[%s151] sm:$0x1] %vm150, %v149
    %s153 = scalar_lea.vmem %s1, 49
    %154 = vst.msk [vmem:[%s153] sm:$0x2] %vm150, %v149
    %v155 = vld [vmem:[#allocation0] sm:$0x3]
    %156 = vrot.lane.b32.xlu0 %v155, 90
    %v157 = vpop.permute.xlu0 %156
    %vm158 = vcmask 15360
    %s159 = scalar_lea.vmem %s1, 19
    %160 = vst.msk [vmem:[%s159] sm:$0x1] %vm158, %v157
    %s161 = scalar_lea.vmem %s1, 50
    %162 = vst.msk [vmem:[%s161] sm:$0x2] %vm158, %v157
    %v163 = vld [vmem:[#allocation0] sm:$0x3]
    %164 = vrot.lane.b32.xlu0 %v163, 88
    %v165 = vpop.permute.xlu0 %164
    %vm166 = vcmask 15360
    %s167 = scalar_lea.vmem %s1, 20
    %168 = vst.msk [vmem:[%s167] sm:$0x1] %vm166, %v165
    %s169 = scalar_lea.vmem %s1, 51
    %170 = vst.msk [vmem:[%s169] sm:$0x2] %vm166, %v165
    %v171 = vld [vmem:[#allocation0] sm:$0x3]
    %172 = vrot.lane.b32.xlu0 %v171, 86
    %v173 = vpop.permute.xlu0 %172
    %vm174 = vcmask 15360
    %s175 = scalar_lea.vmem %s1, 21
    %176 = vst.msk [vmem:[%s175] sm:$0x1] %vm174, %v173
    %s177 = scalar_lea.vmem %s1, 52
    %178 = vst.msk [vmem:[%s177] sm:$0x2] %vm174, %v173
    %v179 = vld [vmem:[#allocation0] sm:$0x3]
    %180 = vrot.lane.b32.xlu0 %v179, 84
    %v181 = vpop.permute.xlu0 %180
    %vm182 = vcmask 15360
    %s183 = scalar_lea.vmem %s1, 22
    %184 = vst.msk [vmem:[%s183] sm:$0x1] %vm182, %v181
    %s185 = scalar_lea.vmem %s1, 53
    %186 = vst.msk [vmem:[%s185] sm:$0x2] %vm182, %v181
    %v187 = vld [vmem:[#allocation0] sm:$0x3]
    %188 = vrot.lane.b32.xlu0 %v187, 82
    %v189 = vpop.permute.xlu0 %188
    %vm190 = vcmask 15360
    %s191 = scalar_lea.vmem %s1, 23
    %192 = vst.msk [vmem:[%s191] sm:$0x1] %vm190, %v189
    %s193 = scalar_lea.vmem %s1, 54
    %194 = vst.msk [vmem:[%s193] sm:$0x2] %vm190, %v189
    %v195 = vld [vmem:[#allocation0] sm:$0x3]
    %196 = vrot.lane.b32.xlu0 %v195, 80
    %v197 = vpop.permute.xlu0 %196
    %vm198 = vcmask 15360
    %s199 = scalar_lea.vmem %s1, 24
    %200 = vst.msk [vmem:[%s199] sm:$0x1] %vm198, %v197
    %s201 = scalar_lea.vmem %s1, 55
    %202 = vst.msk [vmem:[%s201] sm:$0x2] %vm198, %v197
    %v203 = vld [vmem:[#allocation0] sm:$0x3]
    %204 = vrot.lane.b32.xlu0 %v203, 78
    %v205 = vpop.permute.xlu0 %204
    %vm206 = vcmask 15360
    %s207 = scalar_lea.vmem %s1, 25
    %208 = vst.msk [vmem:[%s207] sm:$0x1] %vm206, %v205
    %s209 = scalar_lea.vmem %s1, 56
    %210 = vst.msk [vmem:[%s209] sm:$0x2] %vm206, %v205
    %v211 = vld [vmem:[#allocation0] sm:$0x3]
    %212 = vrot.lane.b32.xlu0 %v211, 76
    %v213 = vpop.permute.xlu0 %212
    %vm214 = vcmask 15360
    %s215 = scalar_lea.vmem %s1, 26
    %216 = vst.msk [vmem:[%s215] sm:$0x1] %vm214, %v213
    %s217 = scalar_lea.vmem %s1, 57
    %218 = vst.msk [vmem:[%s217] sm:$0x2] %vm214, %v213
    %v219 = vld [vmem:[#allocation0] sm:$0x3]
    %220 = vrot.lane.b32.xlu0 %v219, 74
    %v221 = vpop.permute.xlu0 %220
    %vm222 = vcmask 15360
    %s223 = scalar_lea.vmem %s1, 27
    %224 = vst.msk [vmem:[%s223] sm:$0x1] %vm222, %v221
    %s225 = scalar_lea.vmem %s1, 58
    %226 = vst.msk [vmem:[%s225] sm:$0x2] %vm222, %v221
    %v227 = vld [vmem:[#allocation0] sm:$0x3]
    %228 = vrot.lane.b32.xlu0 %v227, 72
    %v229 = vpop.permute.xlu0 %228
    %vm230 = vcmask 15360
    %s231 = scalar_lea.vmem %s1, 28
    %232 = vst.msk [vmem:[%s231] sm:$0x1] %vm230, %v229
    %s233 = scalar_lea.vmem %s1, 59
    %234 = vst.msk [vmem:[%s233] sm:$0x2] %vm230, %v229
    %v235 = vld [vmem:[#allocation0] sm:$0x3]
    %236 = vrot.lane.b32.xlu0 %v235, 70
    %v237 = vpop.permute.xlu0 %236
    %vm238 = vcmask 15360
    %s239 = scalar_lea.vmem %s1, 29
    %240 = vst.msk [vmem:[%s239] sm:$0x1] %vm238, %v237
    %s241 = scalar_lea.vmem %s1, 60
    %242 = vst.msk [vmem:[%s241] sm:$0x2] %vm238, %v237
    %v243 = vld [vmem:[#allocation0] sm:$0x3]
    %244 = vrot.lane.b32.xlu0 %v243, 68
    %v245 = vpop.permute.xlu0 %244
    %vm246 = vcmask 15360
    %s247 = scalar_lea.vmem %s1, 30
    %248 = vst.msk [vmem:[%s247] sm:$0x1] %vm246, %v245
    %s249 = scalar_lea.vmem %s1, 61
    %250 = vst.msk [vmem:[%s249] sm:$0x2] %vm246, %v245
    %v251 = vld [vmem:[#allocation0] sm:$0x3]
    %252 = vrot.lane.b32.xlu0 %v251, 66
    %v253 = vpop.permute.xlu0 %252
    %vm254 = vcmask 15360
    %s255 = scalar_lea.vmem %s1, 31
    %256 = vst.msk [vmem:[%s255] sm:$0x1] %vm254, %v253
    %s257 = scalar_lea.vmem %s1, 62
    %258 = vst.msk [vmem:[%s257] sm:$0x2] %vm254, %v253

// kernel: resnet_block.3
$region0: #{resnet_block.3}
  #allocation0 [shape = 'u32[]', space=smem, size = 0x4, offset = 0x4, fixed_abs, tag = 'smem constant byte address 0x4 - core index']
  #allocation1 [shape = 'u32[144,128]{1,0:T(1,128)}', space=vmem, size = 0x12000, scoped, tag = 'internal scratch']
  %s0 = inlined_call_operand.vmem [shape: bf16[2,256,32], index: 0, kind: input, shape index: {}]
  %s1 = inlined_call_operand.vmem [shape: f32[2,2,2,32], index: 1, kind: output, shape index: {}]
  %s2 = sld [smem:[#allocation0]]
  $region37: #{resnet_block.3} parent=0
    _
  %s4 = ssub.s32 1, %s2
  %s5 = scalar_select 0, %s4, %s2
  loop: start=0, step=1, limit=6
  $region2: #{resnet_block.3} parent=0 // loop_pre_header
    _
  $region3: #{resnet_block.3} parent=0 // loop_header
    %s7 = sphi 0, %s11
    %p8 = scmp.ge.s32.totalorder %s7, 6
    %s14 = sphi 0, %s26
    %s15 = sphi 0, %s22
    %s16 = sphi 0, %s14
    %s17 = sphi 0, %s15
    %s18 = sphi 0, %s16
    %s19 = sphi 0, %s17
    %s31 = sphi 0, %s33
    %s34 = sphi 0, %s31
    %s35 = sphi 0, %s34
    %s51 = sphi 0, %s35
    %s59 = sphi 0, %s61
    %s62 = sphi 0, %s59
    %s63 = sphi 0, %s62
    %s79 = sphi 0, %s63
  $region4: #{resnet_block.3} parent=0 // loop_header_branch
    %10 = sbr.rel (%p8) target = $region8
  $region5: #{resnet_block.3} parent=0 // loop_body
    %s12 = ssub.s32 %s7, 1
    %s13 = ssub.s32 %s7, 2
    %s20 = sadd.s32 1, %s15
    %p21 = scmp.ge.s32.totalorder %s20, 2
    %s22 = scalar_select %p21, 0, %s20
    %s23 = sadd.s32 1, %s14
    %s24 = scalar_select %p21, %s23, %s14
    %p25 = scmp.ge.s32.totalorder %s24, 2
    %s26 = scalar_select %p25, 0, %s24
    %s27 = ssub.s32 %s14, %s26
    %s28 = ssub.s32 %s15, %s22
    %s29 = sor.u32 %s27, %s28
    %p30 = scmp.eq.s32.totalorder %s29, 0
    %s32 = sadd.s32 %s31, 1
    %s33 = scalar_select %p30, %s31, %s32
    %p36 = pneg %p30
    %p37 = scmp.eq.s32.totalorder %s7, 3
    %p38 = por %p36, %p37
    %p39 = scmp.ne.s32.totalorder %s31, %s34
    %p40 = scmp.eq.s32.totalorder %s7, 0
    %p41 = por %p39, %p40
    %p42 = scmp.ne.s32.totalorder %s31, %s34
    %p43 = scmp.eq.s32.totalorder %s12, 3
    %p44 = por %p42, %p43
    %p45 = scmp.ne.s32.totalorder %s34, %s35
    %p46 = scmp.eq.s32.totalorder %s12, 0
    %p47 = por %p45, %p46
    %p48 = scmp.ne.s32.totalorder %s34, %s35
    %p49 = scmp.eq.s32.totalorder %s13, 3
    %p50 = por %p48, %p49
    %p52 = scmp.ne.s32.totalorder %s35, %s51
    %p53 = scmp.eq.s32.totalorder %s13, 0
    %p54 = por %p52, %p53
    %s55 = ssub.s32 %s14, %s26
    %s56 = ssub.s32 %s15, %s22
    %s57 = sor.u32 %s55, %s56
    %p58 = scmp.eq.s32.totalorder %s57, 0
    %s60 = sadd.s32 %s59, 1
    %s61 = scalar_select %p58, %s59, %s60
    %p64 = pneg %p58
    %p65 = scmp.eq.s32.totalorder %s7, 3
    %p66 = por %p64, %p65
    %p67 = scmp.ne.s32.totalorder %s59, %s62
    %p68 = scmp.eq.s32.totalorder %s7, 0
    %p69 = por %p67, %p68
    %p70 = scmp.ne.s32.totalorder %s59, %s62
    %p71 = scmp.eq.s32.totalorder %s12, 3
    %p72 = por %p70, %p71
    %p73 = scmp.ne.s32.totalorder %s62, %s63
    %p74 = scmp.eq.s32.totalorder %s12, 0
    %p75 = por %p73, %p74
    %p76 = scmp.ne.s32.totalorder %s62, %s63
    %p77 = scmp.eq.s32.totalorder %s13, 3
    %p78 = por %p76, %p77
    %p80 = scmp.ne.s32.totalorder %s63, %s79
    %p81 = scmp.eq.s32.totalorder %s13, 0
    %p82 = por %p80, %p81
    %p83 = scmp.le.s32.totalorder 1, %s7
    %p84 = scmp.lt.s32.totalorder %s7, 5
    %p85 = pnand %p83, %p84
    %p86 = pneg %p85
    // Predicated region
    $region9: #{resnet_block.3} parent=5 // pred_check
      _
    $region10: #{resnet_block.3} parent=5 // pred_check_branch
      %88 = sbr.rel (%p85) target = $region12
    $region11: #{resnet_block.3} parent=5 // pred_region
      %s89 = ssub.s32 %s7, 1
    $region12: #{resnet_block.3} parent=5 // pred_fallthru
      _
    %p90 = scmp.lt.s32.totalorder %s7, 4
    // Predicated region
    $region13: #{resnet_block.3} parent=5 // pred_check
      %p91 = pneg %p90
    $region14: #{resnet_block.3} parent=5 // pred_check_branch
      %93 = sbr.rel (%p91) target = $region16
    $region15: #{resnet_block.3} parent=5 // pred_region
      // Predicated region
      $region17: #{resnet_block.3} parent=15 // pred_check
        %p94 = pneg %p41
      $region18: #{resnet_block.3} parent=15 // pred_check_branch
        %96 = sbr.rel (%p94) target = $region20
      $region19: #{resnet_block.3} parent=15 // pred_region
        %s97 = smul.u32 16, %s15
        %p98 = scmp.lt.s32.totalorder %s14, 1
        %s99 = scalar_select %p98, %s14, 1
        %p100 = scmp.lt.s32.totalorder %s97, 31
        %s101 = scalar_select %p100, %s97, 31
        %s102 = smul.addr %s99, 32
        %s103 = sadd.s32 %s101, %s102
        %s104 = smul.addr %s103, 4
        %s105 = scalar_lea.vmem %s0, %s104
        %s106 = smul.u32 16, %s15
      $region20: #{resnet_block.3} parent=15 // pred_fallthru
        _
    $region16: #{resnet_block.3} parent=5 // pred_fallthru
      _
    %p107 = scmp.le.s32.totalorder 1, %s7
    %p108 = scmp.lt.s32.totalorder %s7, 5
    %p109 = pnand %p107, %p108
    %p110 = pneg %p109
    // Predicated region
    $region21: #{resnet_block.3} parent=5 // pred_check
      _
    $region22: #{resnet_block.3} parent=5 // pred_check_branch
      %112 = sbr.rel (%p109) target = $region24
    $region23: #{resnet_block.3} parent=5 // pred_region
      %s113 = ssub.s32 %s7, 1
      %s114 = smul.u32 16, %s17
      %p115 = scmp.lt.s32.totalorder %s16, 1
      %s116 = scalar_select %p115, %s16, 1
      %p117 = scmp.lt.s32.totalorder %s114, 31
      %s118 = scalar_select %p117, %s114, 31
      %s119 = smul.addr %s116, 32
      %s120 = sadd.s32 %s118, %s119
      %s121 = smul.addr %s120, 4
      %s122 = scalar_lea.vmem %s0, %s121
      %p123 = pneg %p47
      %p124 = pneg %p44
      %p125 = pneg %p75
      %p126 = pneg %p72
      %p127 = scmp.lt.s32.totalorder %s16, 1
      %s128 = scalar_select %p127, %s16, 1
      %p129 = scmp.lt.s32.totalorder %s17, 1
      %s130 = scalar_select %p129, %s17, 1
      %s131 = smul.addr %s128, 2
      %s132 = sadd.s32 %s130, %s131
      %s133 = smul.addr %s132, 2
      %s134 = scalar_lea.vmem %s1, %s133
      %s135 = smul.u32 16, %s17
      %p136 = scmp.lt.s32.totalorder %s16, 1
      %s137 = scalar_select %p136, %s16, 1
      %p138 = scmp.lt.s32.totalorder %s135, 31
      %s139 = scalar_select %p138, %s135, 31
      %s140 = smul.addr %s137, 32
      %s141 = sadd.s32 %s139, %s140
      %s142 = smul.addr %s141, 4
      %s143 = scalar_lea.vmem %s0, %s142
      %s144 = smul.u32 16, %s17
      %p145 = scmp.lt.s32.totalorder %s16, 1
      %s146 = scalar_select %p145, %s16, 1
      %p147 = scmp.lt.s32.totalorder %s17, 1
      %s148 = scalar_select %p147, %s17, 1
      %s149 = smul.addr %s146, 2
      %s150 = sadd.s32 %s148, %s149
      %s151 = smul.addr %s150, 2
      %s152 = scalar_lea.vmem %s1, %s151
      %v153 = vld [vmem:[%s143] sm:$0xf]
      %v154 = vld [vmem:[%s143 + $0x4] sm:$0xf]
      %v155 = vld [vmem:[%s143 + $0x8] sm:$0xf]
      %v156 = vld [vmem:[%s143 + $0xc] sm:$0xf]
      %v157 = vld [vmem:[%s143 + $0x10] sm:$0xf]
      %v158 = vld [vmem:[%s143 + $0x14] sm:$0xf]
      %v159 = vld [vmem:[%s143 + $0x18] sm:$0xf]
      %v160 = vld [vmem:[%s143 + $0x1c] sm:$0xf]
      %v161 = vld [vmem:[%s143 + $0x20] sm:$0xf]
      %v162 = vld [vmem:[%s143 + $0x24] sm:$0xf]
      %v163 = vld [vmem:[%s143 + $0x28] sm:$0xf]
      %v164 = vld [vmem:[%s143 + $0x2c] sm:$0xf]
      %v165 = vld [vmem:[%s143 + $0x30] sm:$0xf]
      %v166 = vld [vmem:[%s143 + $0x34] sm:$0xf]
      %v167 = vld [vmem:[%s143 + $0x38] sm:$0xf]
      %v168 = vld [vmem:[%s143 + $0x3c] sm:$0xf]
      %v169 = vunpack.c.l.bf16 %v153
      %v170 = vunpack.c.l.bf16 %v154
      %v171 = vunpack.c.l.bf16 %v155
      %v172 = vunpack.c.l.bf16 %v156
      %v173 = vunpack.c.l.bf16 %v157
      %v174 = vunpack.c.l.bf16 %v158
      %v175 = vunpack.c.l.bf16 %v159
      %v176 = vunpack.c.l.bf16 %v160
      %v177 = vunpack.c.l.bf16 %v161
      %v178 = vunpack.c.l.bf16 %v162
      %v179 = vunpack.c.l.bf16 %v163
      %v180 = vunpack.c.l.bf16 %v164
      %v181 = vunpack.c.l.bf16 %v165
      %v182 = vunpack.c.l.bf16 %v166
      %v183 = vunpack.c.l.bf16 %v167
      %v184 = vunpack.c.l.bf16 %v168
      %vm185 = vcmask 261120
      %v186 = vsel %vm185, %v169, 0.0
      %v187 = vsel %vm185, %v170, 0.0
      %v188 = vadd.f32 %v186, %v187
      %v189 = vsel %vm185, %v171, 0.0
      %v190 = vadd.f32 %v188, %v189
      %v191 = vsel %vm185, %v172, 0.0
      %v192 = vadd.f32 %v190, %v191
      %v193 = vsel %vm185, %v173, 0.0
      %v194 = vadd.f32 %v192, %v193
      %v195 = vsel %vm185, %v174, 0.0
      %v196 = vadd.f32 %v194, %v195
      %v197 = vsel %vm185, %v175, 0.0
      %v198 = vadd.f32 %v196, %v197
      %v199 = vsel %vm185, %v176, 0.0
      %v200 = vadd.f32 %v198, %v199
      %v201 = vsel %vm185, %v177, 0.0
      %v202 = vadd.f32 %v200, %v201
      %v203 = vsel %vm185, %v178, 0.0
      %v204 = vadd.f32 %v202, %v203
      %v205 = vsel %vm185, %v179, 0.0
      %v206 = vadd.f32 %v204, %v205
      %v207 = vsel %vm185, %v180, 0.0
      %v208 = vadd.f32 %v206, %v207
      %v209 = vsel %vm185, %v181, 0.0
      %v210 = vadd.f32 %v208, %v209
      %v211 = vsel %vm185, %v182, 0.0
      %v212 = vadd.f32 %v210, %v211
      %v213 = vsel %vm185, %v183, 0.0
      %v214 = vadd.f32 %v212, %v213
      %v215 = vsel %vm185, %v184, 0.0
      %v216 = vadd.f32 %v214, %v215
      %v217 = vrot.slane %v216, 4
      %v218 = vadd.f32 %v216, %v217
      %v219 = vrot.slane %v218, 2
      %v220 = vadd.f32 %v218, %v219
      %v221 = vrot.slane %v220, 1
      %v222 = vadd.f32 %v220, %v221
      %v223 = vmul.f32 %v169, %v169
      %v224 = vmul.f32 %v170, %v170
      %v225 = vmul.f32 %v171, %v171
      %v226 = vmul.f32 %v172, %v172
      %v227 = vmul.f32 %v173, %v173
      %v228 = vmul.f32 %v174, %v174
      %v229 = vmul.f32 %v175, %v175
      %v230 = vmul.f32 %v176, %v176
      %v231 = vmul.f32 %v177, %v177
      %v232 = vmul.f32 %v178, %v178
      %v233 = vmul.f32 %v179, %v179
      %v234 = vmul.f32 %v180, %v180
      %v235 = vmul.f32 %v181, %v181
      %v236 = vmul.f32 %v182, %v182
      %v237 = vmul.f32 %v183, %v183
      %v238 = vmul.f32 %v184, %v184
      %v239 = vsel %vm185, %v223, 0.0
      %v240 = vsel %vm185, %v224, 0.0
      %v241 = vadd.f32 %v239, %v240
      %v242 = vsel %vm185, %v225, 0.0
      %v243 = vadd.f32 %v241, %v242
      %v244 = vsel %vm185, %v226, 0.0
      %v245 = vadd.f32 %v243, %v244
      %v246 = vsel %vm185, %v227, 0.0
      %v247 = vadd.f32 %v245, %v246
      %v248 = vsel %vm185, %v228, 0.0
      %v249 = vadd.f32 %v247, %v248
      %v250 = vsel %vm185, %v229, 0.0
      %v251 = vadd.f32 %v249, %v250
      %v252 = vsel %vm185, %v230, 0.0
      %v253 = vadd.f32 %v251, %v252
      %v254 = vsel %vm185, %v231, 0.0
      %v255 = vadd.f32 %v253, %v254
      %v256 = vsel %vm185, %v232, 0.0
      %v257 = vadd.f32 %v255, %v256
      %v258 = vsel %vm185, %v233, 0.0
      %v259 = vadd.f32 %v257, %v258
      %v260 = vsel %vm185, %v234, 0.0
      %v261 = vadd.f32 %v259, %v260
      %v262 = vsel %vm185, %v235, 0.0
      %v263 = vadd.f32 %v261, %v262
      %v264 = vsel %vm185, %v236, 0.0
      %v265 = vadd.f32 %v263, %v264
      %v266 = vsel %vm185, %v237, 0.0
      %v267 = vadd.f32 %v265, %v266
      %v268 = vsel %vm185, %v238, 0.0
      %v269 = vadd.f32 %v267, %v268
      %v270 = vrot.slane %v269, 4
      %v271 = vadd.f32 %v269, %v270
      %v272 = vrot.slane %v271, 2
      %v273 = vadd.f32 %v271, %v272
      %v274 = vrot.slane %v273, 1
      %v275 = vadd.f32 %v273, %v274
      %vm276 = vcmask 1040384
      %v277 = vsel %vm276, %v222, %v275
      %vm278 = vcmask 254976
      %279 = vst.msk [vmem:[%s152] sm:$0x3] %vm278, %v277
      %p280 = scmp.lt.s32.totalorder %s16, 1
      %s281 = scalar_select %p280, %s16, 1
      %p282 = scmp.lt.s32.totalorder %s17, 1
      %s283 = scalar_select %p282, %s17, 1
      %s284 = smul.addr %s281, 2
      %s285 = sadd.s32 %s283, %s284
      %s286 = smul.addr %s285, 2
      %s287 = scalar_lea.vmem %s1, %s286
      // Predicated region
      $region25: #{resnet_block.3} parent=23 // pred_check
        %p288 = pneg %p72
      $region26: #{resnet_block.3} parent=23 // pred_check_branch
        %290 = sbr.rel (%p288) target = $region28
      $region27: #{resnet_block.3} parent=23 // pred_region
        _
      $region28: #{resnet_block.3} parent=23 // pred_fallthru
        _
    $region24: #{resnet_block.3} parent=5 // pred_fallthru
      _
    %p291 = scmp.le.s32.totalorder 2, %s7
    // Predicated region
    $region29: #{resnet_block.3} parent=5 // pred_check
      %p292 = pneg %p291
    $region30: #{resnet_block.3} parent=5 // pred_check_branch
      %294 = sbr.rel (%p292) target = $region32
    $region31: #{resnet_block.3} parent=5 // pred_region
      %s295 = ssub.s32 %s7, 2
      // Predicated region
      $region33: #{resnet_block.3} parent=31 // pred_check
        %p296 = pneg %p78
      $region34: #{resnet_block.3} parent=31 // pred_check_branch
        %298 = sbr.rel (%p296) target = $region36
      $region35: #{resnet_block.3} parent=31 // pred_region
        %p299 = scmp.lt.s32.totalorder %s18, 1
        %s300 = scalar_select %p299, %s18, 1
        %p301 = scmp.lt.s32.totalorder %s19, 1
        %s302 = scalar_select %p301, %s19, 1
        %s303 = smul.addr %s300, 2
        %s304 = sadd.s32 %s302, %s303
        %s305 = smul.addr %s304, 2
        %s306 = scalar_lea.vmem %s1, %s305
      $region36: #{resnet_block.3} parent=31 // pred_fallthru
        _
    $region32: #{resnet_block.3} parent=5 // pred_fallthru
      _
  $region6: #{resnet_block.3} parent=0 // loop_footer
    %s11 = sadd.s32 1, %s7
  $region7: #{resnet_block.3} parent=0 // loop_footer_branch
    %6 = sbr.rel target = $region3
  $region8: #{resnet_block.3} parent=0 // loop_exit
    _

// kernel: resnet_block.4
$region0: #{resnet_block.4}
  #allocation0 [shape = 'u32[]', space=smem, size = 0x4, offset = 0x4, fixed_abs, tag = 'smem constant byte address 0x4 - core index']
  #allocation1 [shape = 'u32[144,128]{1,0:T(1,128)}', space=vmem, size = 0x12000, scoped, tag = 'internal scratch']
  %s0 = inlined_call_operand.vmem [shape: bf16[2,256,32], index: 0, kind: input, shape index: {}, may-alias: {0,1,2}]
  %s1 = inlined_call_operand.vmem [shape: bf16[2,256,32], index: 1, kind: input, shape index: {}, may-alias: {0,1,2}]
  %s2 = inlined_call_operand.vmem [shape: bf16[2,256,32], index: 2, kind: input, shape index: {}, may-alias: {0,1,2}]
  %s3 = inlined_call_operand.vmem [shape: f32[2,2,32], index: 3, kind: input, shape index: {}]
  %s4 = inlined_call_operand.vmem [shape: bf16[3,96,64], index: 4, kind: input, shape index: {}]
  %s5 = inlined_call_operand.vmem [shape: f32[1,64], index: 5, kind: input, shape index: {}]
  %s6 = inlined_call_operand.vmem [shape: bf16[2,256,64], index: 6, kind: output, shape index: {0}]
  %s7 = inlined_call_operand.vmem [shape: f32[2,2,2,64], index: 7, kind: output, shape index: {1}]
  %8 = xla_tuple %s6, %s7
  %s9 = sld [smem:[#allocation0]]
  $region65: #{resnet_block.4} parent=0
    _
  %s11 = ssub.s32 1, %s9
  %s12 = scalar_select 0, %s11, %s9
  loop: start=0, step=1, limit=6
  $region2: #{resnet_block.4} parent=0 // loop_pre_header
    _
  $region3: #{resnet_block.4} parent=0 // loop_header
    %s14 = sphi 0, %s18
    %p15 = scmp.ge.s32.totalorder %s14, 6
    %s21 = sphi 0, %s33
    %s22 = sphi 0, %s29
    %s23 = sphi 0, %s21
    %s24 = sphi 0, %s22
    %s25 = sphi 0, %s23
    %s26 = sphi 0, %s24
    %s38 = sphi 0, %s40
    %s41 = sphi 0, %s38
    %s42 = sphi 0, %s41
    %s58 = sphi 0, %s42
    %s74 = sphi 0, %s76
    %s77 = sphi 0, %s74
    %s78 = sphi 0, %s77
    %s94 = sphi 0, %s78
    %s110 = sphi 0, %s112
    %s113 = sphi 0, %s110
    %s114 = sphi 0, %s113
    %s130 = sphi 0, %s114
    %s136 = sphi 0, %s138
    %s139 = sphi 0, %s136
    %s140 = sphi 0, %s139
    %s156 = sphi 0, %s140
    %s160 = sphi 0, %s160
    %s162 = sphi 0, %s160
    %s163 = sphi 0, %s162
    %s177 = sphi 0, %s163
    %s181 = sphi 0, %s181
    %s183 = sphi 0, %s181
    %s184 = sphi 0, %s183
    %s198 = sphi 0, %s184
    %s206 = sphi 0, %s208
    %s209 = sphi 0, %s206
    %s210 = sphi 0, %s209
    %s226 = sphi 0, %s210
    %s234 = sphi 0, %s236
    %s237 = sphi 0, %s234
    %s238 = sphi 0, %s237
    %s254 = sphi 0, %s238
  $region4: #{resnet_block.4} parent=0 // loop_header_branch
    %17 = sbr.rel (%p15) target = $region8
  $region5: #{resnet_block.4} parent=0 // loop_body
    %s19 = ssub.s32 %s14, 1
    %s20 = ssub.s32 %s14, 2
    %s27 = sadd.s32 1, %s22
    %p28 = scmp.ge.s32.totalorder %s27, 2
    %s29 = scalar_select %p28, 0, %s27
    %s30 = sadd.s32 1, %s21
    %s31 = scalar_select %p28, %s30, %s21
    %p32 = scmp.ge.s32.totalorder %s31, 2
    %s33 = scalar_select %p32, 0, %s31
    %s34 = ssub.s32 %s21, %s33
    %s35 = ssub.s32 %s22, %s29
    %s36 = sor.u32 %s34, %s35
    %p37 = scmp.eq.s32.totalorder %s36, 0
    %s39 = sadd.s32 %s38, 1
    %s40 = scalar_select %p37, %s38, %s39
    %p43 = pneg %p37
    %p44 = scmp.eq.s32.totalorder %s14, 3
    %p45 = por %p43, %p44
    %p46 = scmp.ne.s32.totalorder %s38, %s41
    %p47 = scmp.eq.s32.totalorder %s14, 0
    %p48 = por %p46, %p47
    %p49 = scmp.ne.s32.totalorder %s38, %s41
    %p50 = scmp.eq.s32.totalorder %s19, 3
    %p51 = por %p49, %p50
    %p52 = scmp.ne.s32.totalorder %s41, %s42
    %p53 = scmp.eq.s32.totalorder %s19, 0
    %p54 = por %p52, %p53
    %p55 = scmp.ne.s32.totalorder %s41, %s42
    %p56 = scmp.eq.s32.totalorder %s20, 3
    %p57 = por %p55, %p56
    %p59 = scmp.ne.s32.totalorder %s42, %s58
    %p60 = scmp.eq.s32.totalorder %s20, 0
    %p61 = por %p59, %p60
    %s62 = smul.u32 %s22, 8
    %s63 = ssub.s32 %s62, 1
    %p64 = scmp.gt.s32.totalorder %s63, 0
    %s65 = scalar_select %p64, %s63, 0
    %s66 = smul.u32 %s29, 8
    %s67 = ssub.s32 %s66, 1
    %p68 = scmp.gt.s32.totalorder %s67, 0
    %s69 = scalar_select %p68, %s67, 0
    %s70 = ssub.s32 %s21, %s33
    %s71 = ssub.s32 %s65, %s69
    %s72 = sor.u32 %s70, %s71
    %p73 = scmp.eq.s32.totalorder %s72, 0
    %s75 = sadd.s32 %s74, 1
    %s76 = scalar_select %p73, %s74, %s75
    %p79 = pneg %p73
    %p80 = scmp.eq.s32.totalorder %s14, 3
    %p81 = por %p79, %p80
    %p82 = scmp.ne.s32.totalorder %s74, %s77
    %p83 = scmp.eq.s32.totalorder %s14, 0
    %p84 = por %p82, %p83
    %p85 = scmp.ne.s32.totalorder %s74, %s77
    %p86 = scmp.eq.s32.totalorder %s19, 3
    %p87 = por %p85, %p86
    %p88 = scmp.ne.s32.totalorder %s77, %s78
    %p89 = scmp.eq.s32.totalorder %s19, 0
    %p90 = por %p88, %p89
    %p91 = scmp.ne.s32.totalorder %s77, %s78
    %p92 = scmp.eq.s32.totalorder %s20, 3
    %p93 = por %p91, %p92
    %p95 = scmp.ne.s32.totalorder %s78, %s94
    %p96 = scmp.eq.s32.totalorder %s20, 0
    %p97 = por %p95, %p96
    %s98 = sadd.s32 %s22, 1
    %s99 = smul.u32 %s98, 8
    %p100 = scmp.lt.s32.totalorder %s99, 15
    %s101 = scalar_select %p100, %s99, 15
    %s102 = sadd.s32 %s29, 1
    %s103 = smul.u32 %s102, 8
    %p104 = scmp.lt.s32.totalorder %s103, 15
    %s105 = scalar_select %p104, %s103, 15
    %s106 = ssub.s32 %s21, %s33
    %s107 = ssub.s32 %s101, %s105
    %s108 = sor.u32 %s106, %s107
    %p109 = scmp.eq.s32.totalorder %s108, 0
    %s111 = sadd.s32 %s110, 1
    %s112 = scalar_select %p109, %s110, %s111
    %p115 = pneg %p109
    %p116 = scmp.eq.s32.totalorder %s14, 3
    %p117 = por %p115, %p116
    %p118 = scmp.ne.s32.totalorder %s110, %s113
    %p119 = scmp.eq.s32.totalorder %s14, 0
    %p120 = por %p118, %p119
    %p121 = scmp.ne.s32.totalorder %s110, %s113
    %p122 = scmp.eq.s32.totalorder %s19, 3
    %p123 = por %p121, %p122
    %p124 = scmp.ne.s32.totalorder %s113, %s114
    %p125 = scmp.eq.s32.totalorder %s19, 0
    %p126 = por %p124, %p125
    %p127 = scmp.ne.s32.totalorder %s113, %s114
    %p128 = scmp.eq.s32.totalorder %s20, 3
    %p129 = por %p127, %p128
    %p131 = scmp.ne.s32.totalorder %s114, %s130
    %p132 = scmp.eq.s32.totalorder %s20, 0
    %p133 = por %p131, %p132
    %s134 = ssub.s32 %s21, %s33
    %p135 = scmp.eq.s32.totalorder %s134, 0
    %s137 = sadd.s32 %s136, 1
    %s138 = scalar_select %p135, %s136, %s137
    %p141 = pneg %p135
    %p142 = scmp.eq.s32.totalorder %s14, 3
    %p143 = por %p141, %p142
    %p144 = scmp.ne.s32.totalorder %s136, %s139
    %p145 = scmp.eq.s32.totalorder %s14, 0
    %p146 = por %p144, %p145
    %p147 = scmp.ne.s32.totalorder %s136, %s139
    %p148 = scmp.eq.s32.totalorder %s19, 3
    %p149 = por %p147, %p148
    %p150 = scmp.ne.s32.totalorder %s139, %s140
    %p151 = scmp.eq.s32.totalorder %s19, 0
    %p152 = por %p150, %p151
    %p153 = scmp.ne.s32.totalorder %s139, %s140
    %p154 = scmp.eq.s32.totalorder %s20, 3
    %p155 = por %p153, %p154
    %p157 = scmp.ne.s32.totalorder %s140, %s156
    %p158 = scmp.eq.s32.totalorder %s20, 0
    %p159 = por %p157, %p158
    %s161 = sadd.s32 %s160, 1
    %p164 = scmp.eq.s32.totalorder %s14, 3
    %p165 = scmp.ne.s32.totalorder %s160, %s162
    %p166 = scmp.eq.s32.totalorder %s14, 0
    %p167 = por %p165, %p166
    %p168 = scmp.ne.s32.totalorder %s160, %s162
    %p169 = scmp.eq.s32.totalorder %s19, 3
    %p170 = por %p168, %p169
    %p171 = scmp.ne.s32.totalorder %s162, %s163
    %p172 = scmp.eq.s32.totalorder %s19, 0
    %p173 = por %p171, %p172
    %p174 = scmp.ne.s32.totalorder %s162, %s163
    %p175 = scmp.eq.s32.totalorder %s20, 3
    %p176 = por %p174, %p175
    %p178 = scmp.ne.s32.totalorder %s163, %s177
    %p179 = scmp.eq.s32.totalorder %s20, 0
    %p180 = por %p178, %p179
    %s182 = sadd.s32 %s181, 1
    %p185 = scmp.eq.s32.totalorder %s14, 3
    %p186 = scmp.ne.s32.totalorder %s181, %s183
    %p187 = scmp.eq.s32.totalorder %s14, 0
    %p188 = por %p186, %p187
    %p189 = scmp.ne.s32.totalorder %s181, %s183
    %p190 = scmp.eq.s32.totalorder %s19, 3
    %p191 = por %p189, %p190
    %p192 = scmp.ne.s32.totalorder %s183, %s184
    %p193 = scmp.eq.s32.totalorder %s19, 0
    %p194 = por %p192, %p193
    %p195 = scmp.ne.s32.totalorder %s183, %s184
    %p196 = scmp.eq.s32.totalorder %s20, 3
    %p197 = por %p195, %p196
    %p199 = scmp.ne.s32.totalorder %s184, %s198
    %p200 = scmp.eq.s32.totalorder %s20, 0
    %p201 = por %p199, %p200
    %s202 = ssub.s32 %s21, %s33
    %s203 = ssub.s32 %s22, %s29
    %s204 = sor.u32 %s202, %s203
    %p205 = scmp.eq.s32.totalorder %s204, 0
    %s207 = sadd.s32 %s206, 1
    %s208 = scalar_select %p205, %s206, %s207
    %p211 = pneg %p205
    %p212 = scmp.eq.s32.totalorder %s14, 3
    %p213 = por %p211, %p212
    %p214 = scmp.ne.s32.totalorder %s206, %s209
    %p215 = scmp.eq.s32.totalorder %s14, 0
    %p216 = por %p214, %p215
    %p217 = scmp.ne.s32.totalorder %s206, %s209
    %p218 = scmp.eq.s32.totalorder %s19, 3
    %p219 = por %p217, %p218
    %p220 = scmp.ne.s32.totalorder %s209, %s210
    %p221 = scmp.eq.s32.totalorder %s19, 0
    %p222 = por %p220, %p221
    %p223 = scmp.ne.s32.totalorder %s209, %s210
    %p224 = scmp.eq.s32.totalorder %s20, 3
    %p225 = por %p223, %p224
    %p227 = scmp.ne.s32.totalorder %s210, %s226
    %p228 = scmp.eq.s32.totalorder %s20, 0
    %p229 = por %p227, %p228
    %s230 = ssub.s32 %s21, %s33
    %s231 = ssub.s32 %s22, %s29
    %s232 = sor.u32 %s230, %s231
    %p233 = scmp.eq.s32.totalorder %s232, 0
    %s235 = sadd.s32 %s234, 1
    %s236 = scalar_select %p233, %s234, %s235
    %p239 = pneg %p233
    %p240 = scmp.eq.s32.totalorder %s14, 3
    %p241 = por %p239, %p240
    %p242 = scmp.ne.s32.totalorder %s234, %s237
    %p243 = scmp.eq.s32.totalorder %s14, 0
    %p244 = por %p242, %p243
    %p245 = scmp.ne.s32.totalorder %s234, %s237
    %p246 = scmp.eq.s32.totalorder %s19, 3
    %p247 = por %p245, %p246
    %p248 = scmp.ne.s32.totalorder %s237, %s238
    %p249 = scmp.eq.s32.totalorder %s19, 0
    %p250 = por %p248, %p249
    %p251 = scmp.ne.s32.totalorder %s237, %s238
    %p252 = scmp.eq.s32.totalorder %s20, 3
    %p253 = por %p251, %p252
    %p255 = scmp.ne.s32.totalorder %s238, %s254
    %p256 = scmp.eq.s32.totalorder %s20, 0
    %p257 = por %p255, %p256
    %p258 = scmp.le.s32.totalorder 1, %s14
    %p259 = scmp.lt.s32.totalorder %s14, 5
    %p260 = pnand %p258, %p259
    %p261 = pneg %p260
    // Predicated region
    $region9: #{resnet_block.4} parent=5 // pred_check
      _
    $region10: #{resnet_block.4} parent=5 // pred_check_branch
      %263 = sbr.rel (%p260) target = $region12
    $region11: #{resnet_block.4} parent=5 // pred_region
      %s264 = ssub.s32 %s14, 1
      // Predicated region
      $region13: #{resnet_block.4} parent=11 // pred_check
        %p265 = pneg %p173
      $region14: #{resnet_block.4} parent=11 // pred_check_branch
        %267 = sbr.rel (%p265) target = $region16
      $region15: #{resnet_block.4} parent=11 // pred_region
        _
      $region16: #{resnet_block.4} parent=11 // pred_fallthru
        _
      // Predicated region
      $region17: #{resnet_block.4} parent=11 // pred_check
        %p268 = pneg %p194
      $region18: #{resnet_block.4} parent=11 // pred_check_branch
        %270 = sbr.rel (%p268) target = $region20
      $region19: #{resnet_block.4} parent=11 // pred_region
        _
      $region20: #{resnet_block.4} parent=11 // pred_fallthru
        _
    $region12: #{resnet_block.4} parent=5 // pred_fallthru
      _
    %p271 = scmp.lt.s32.totalorder %s14, 4
    // Predicated region
    $region21: #{resnet_block.4} parent=5 // pred_check
      %p272 = pneg %p271
    $region22: #{resnet_block.4} parent=5 // pred_check_branch
      %274 = sbr.rel (%p272) target = $region24
    $region23: #{resnet_block.4} parent=5 // pred_region
      // Predicated region
      $region25: #{resnet_block.4} parent=23 // pred_check
        %p275 = pneg %p48
      $region26: #{resnet_block.4} parent=23 // pred_check_branch
        %277 = sbr.rel (%p275) target = $region28
      $region27: #{resnet_block.4} parent=23 // pred_region
        %s278 = smul.u32 16, %s22
        %p279 = scmp.lt.s32.totalorder %s21, 1
        %s280 = scalar_select %p279, %s21, 1
        %p281 = scmp.lt.s32.totalorder %s278, 31
        %s282 = scalar_select %p281, %s278, 31
        %s283 = smul.addr %s280, 32
        %s284 = sadd.s32 %s282, %s283
        %s285 = smul.addr %s284, 4
        %s286 = scalar_lea.vmem %s0, %s285
        %s287 = smul.u32 16, %s22
      $region28: #{resnet_block.4} parent=23 // pred_fallthru
        _
      // Predicated region
      $region29: #{resnet_block.4} parent=23 // pred_check
        %p288 = pneg %p84
      $region30: #{resnet_block.4} parent=23 // pred_check_branch
        %290 = sbr.rel (%p288) target = $region32
      $region31: #{resnet_block.4} parent=23 // pred_region
        %s291 = smul.u32 %s22, 8
        %s292 = ssub.s32 %s291, 1
        %p293 = scmp.gt.s32.totalorder %s292, 0
        %s294 = scalar_select %p293, %s292, 0
        %s295 = smul.u32 2, %s294
        %p296 = scmp.lt.s32.totalorder %s21, 1
        %s297 = scalar_select %p296, %s21, 1
        %p298 = scmp.lt.s32.totalorder %s295, 31
        %s299 = scalar_select %p298, %s295, 31
        %s300 = smul.addr %s297, 32
        %s301 = sadd.s32 %s299, %s300
        %s302 = smul.addr %s301, 4
        %s303 = scalar_lea.vmem %s1, %s302
        %s304 = smul.u32 %s22, 8
        %s305 = ssub.s32 %s304, 1
        %p306 = scmp.gt.s32.totalorder %s305, 0
        %s307 = scalar_select %p306, %s305, 0
        %s308 = smul.u32 2, %s307
      $region32: #{resnet_block.4} parent=23 // pred_fallthru
        _
      // Predicated region
      $region33: #{resnet_block.4} parent=23 // pred_check
        %p309 = pneg %p120
      $region34: #{resnet_block.4} parent=23 // pred_check_branch
        %311 = sbr.rel (%p309) target = $region36
      $region35: #{resnet_block.4} parent=23 // pred_region
        %s312 = sadd.s32 %s22, 1
        %s313 = smul.u32 %s312, 8
        %p314 = scmp.lt.s32.totalorder %s313, 15
        %s315 = scalar_select %p314, %s313, 15
        %s316 = smul.u32 2, %s315
        %p317 = scmp.lt.s32.totalorder %s21, 1
        %s318 = scalar_select %p317, %s21, 1
        %p319 = scmp.lt.s32.totalorder %s316, 31
        %s320 = scalar_select %p319, %s316, 31
        %s321 = smul.addr %s318, 32
        %s322 = sadd.s32 %s320, %s321
        %s323 = smul.addr %s322, 4
        %s324 = scalar_lea.vmem %s2, %s323
        %s325 = sadd.s32 %s22, 1
        %s326 = smul.u32 %s325, 8
        %p327 = scmp.lt.s32.totalorder %s326, 15
        %s328 = scalar_select %p327, %s326, 15
        %s329 = smul.u32 2, %s328
      $region36: #{resnet_block.4} parent=23 // pred_fallthru
        _
      // Predicated region
      $region37: #{resnet_block.4} parent=23 // pred_check
        %p330 = pneg %p146
      $region38: #{resnet_block.4} parent=23 // pred_check_branch
        %332 = sbr.rel (%p330) target = $region40
      $region39: #{resnet_block.4} parent=23 // pred_region
        %p333 = scmp.lt.s32.totalorder %s21, 1
        %s334 = scalar_select %p333, %s21, 1
        %s335 = smul.addr %s334, 2
        %s336 = scalar_lea.vmem %s3, %s335
      $region40: #{resnet_block.4} parent=23 // pred_fallthru
        _
    $region24: #{resnet_block.4} parent=5 // pred_fallthru
      _
    %p337 = scmp.le.s32.totalorder 1, %s14
    %p338 = scmp.lt.s32.totalorder %s14, 5
    %p339 = pnand %p337, %p338
    %p340 = pneg %p339
    // Predicated region
    $region41: #{resnet_block.4} parent=5 // pred_check
      _
    $region42: #{resnet_block.4} parent=5 // pred_check_branch
      %342 = sbr.rel (%p339) target = $region44
    $region43: #{resnet_block.4} parent=5 // pred_region
      %s343 = ssub.s32 %s14, 1
      %s344 = smul.u32 16, %s24
      %p345 = scmp.lt.s32.totalorder %s23, 1
      %s346 = scalar_select %p345, %s23, 1
      %p347 = scmp.lt.s32.totalorder %s344, 31
      %s348 = scalar_select %p347, %s344, 31
      %s349 = smul.addr %s346, 32
      %s350 = sadd.s32 %s348, %s349
      %s351 = smul.addr %s350, 4
      %s352 = scalar_lea.vmem %s0, %s351
      %p353 = pneg %p54
      %p354 = pneg %p51
      %s355 = smul.u32 %s24, 8
      %s356 = ssub.s32 %s355, 1
      %p357 = scmp.gt.s32.totalorder %s356, 0
      %s358 = scalar_select %p357, %s356, 0
      %s359 = smul.u32 2, %s358
      %p360 = scmp.lt.s32.totalorder %s23, 1
      %s361 = scalar_select %p360, %s23, 1
      %p362 = scmp.lt.s32.totalorder %s359, 31
      %s363 = scalar_select %p362, %s359, 31
      %s364 = smul.addr %s361, 32
      %s365 = sadd.s32 %s363, %s364
      %s366 = smul.addr %s365, 4
      %s367 = scalar_lea.vmem %s1, %s366
      %p368 = pneg %p90
      %p369 = pneg %p87
      %s370 = sadd.s32 %s24, 1
      %s371 = smul.u32 %s370, 8
      %p372 = scmp.lt.s32.totalorder %s371, 15
      %s373 = scalar_select %p372, %s371, 15
      %s374 = smul.u32 2, %s373
      %p375 = scmp.lt.s32.totalorder %s23, 1
      %s376 = scalar_select %p375, %s23, 1
      %p377 = scmp.lt.s32.totalorder %s374, 31
      %s378 = scalar_select %p377, %s374, 31
      %s379 = smul.addr %s376, 32
      %s380 = sadd.s32 %s378, %s379
      %s381 = smul.addr %s380, 4
      %s382 = scalar_lea.vmem %s2, %s381
      %p383 = pneg %p126
      %p384 = pneg %p123
      %p385 = scmp.lt.s32.totalorder %s23, 1
      %s386 = scalar_select %p385, %s23, 1
      %s387 = smul.addr %s386, 2
      %s388 = scalar_lea.vmem %s3, %s387
      %p389 = pneg %p152
      %p390 = pneg %p149
      %p391 = pneg %p173
      %p392 = pneg %p170
      %p393 = pneg %p194
      %p394 = pneg %p191
      %p395 = pneg %p222
      %p396 = pneg %p219
      %s397 = smul.u32 16, %s24
      %p398 = scmp.lt.s32.totalorder %s23, 1
      %s399 = scalar_select %p398, %s23, 1
      %p400 = scmp.lt.s32.totalorder %s397, 31
      %s401 = scalar_select %p400, %s397, 31
      %s402 = smul.addr %s399, 32
      %s403 = sadd.s32 %s401, %s402
      %s404 = smul.addr %s403, 4
      %s405 = scalar_lea.vmem %s6, %s404
      %p406 = pneg %p250
      %p407 = pneg %p247
      %p408 = scmp.lt.s32.totalorder %s23, 1
      %s409 = scalar_select %p408, %s23, 1
      %p410 = scmp.lt.s32.totalorder %s24, 1
      %s411 = scalar_select %p410, %s24, 1
      %s412 = smul.addr %s409, 2
      %s413 = sadd.s32 %s411, %s412
      %s414 = smul.addr %s413, 2
      %s415 = scalar_lea.vmem %s7, %s414
      %s416 = smul.u32 16, %s24
      %p417 = scmp.lt.s32.totalorder %s23, 1
      %s418 = scalar_select %p417, %s23, 1
      %p419 = scmp.lt.s32.totalorder %s416, 31
      %s420 = scalar_select %p419, %s416, 31
      %s421 = smul.addr %s418, 32
      %s422 = sadd.s32 %s420, %s421
      %s423 = smul.addr %s422, 4
      %s424 = scalar_lea.vmem %s0, %s423
      %s425 = smul.u32 16, %s24
      %s426 = smul.u32 %s24, 8
      %s427 = ssub.s32 %s426, 1
      %p428 = scmp.gt.s32.totalorder %s427, 0
      %s429 = scalar_select %p428, %s427, 0
      %s430 = smul.u32 2, %s429
      %p431 = scmp.lt.s32.totalorder %s23, 1
      %s432 = scalar_select %p431, %s23, 1
      %p433 = scmp.lt.s32.totalorder %s430, 31
      %s434 = scalar_select %p433, %s430, 31
      %s435 = smul.addr %s432, 32
      %s436 = sadd.s32 %s434, %s435
      %s437 = smul.addr %s436, 4
      %s438 = scalar_lea.vmem %s1, %s437
      %s439 = smul.u32 %s24, 8
      %s440 = ssub.s32 %s439, 1
      %p441 = scmp.gt.s32.totalorder %s440, 0
      %s442 = scalar_select %p441, %s440, 0
      %s443 = smul.u32 2, %s442
      %s444 = sadd.s32 %s24, 1
      %s445 = smul.u32 %s444, 8
      %p446 = scmp.lt.s32.totalorder %s445, 15
      %s447 = scalar_select %p446, %s445, 15
      %s448 = smul.u32 2, %s447
      %p449 = scmp.lt.s32.totalorder %s23, 1
      %s450 = scalar_select %p449, %s23, 1
      %p451 = scmp.lt.s32.totalorder %s448, 31
      %s452 = scalar_select %p451, %s448, 31
      %s453 = smul.addr %s450, 32
      %s454 = sadd.s32 %s452, %s453
      %s455 = smul.addr %s454, 4
      %s456 = scalar_lea.vmem %s2, %s455
      %s457 = sadd.s32 %s24, 1
      %s458 = smul.u32 %s457, 8
      %p459 = scmp.lt.s32.totalorder %s458, 15
      %s460 = scalar_select %p459, %s458, 15
      %s461 = smul.u32 2, %s460
      %p462 = scmp.lt.s32.totalorder %s23, 1
      %s463 = scalar_select %p462, %s23, 1
      %s464 = smul.addr %s463, 2
      %s465 = scalar_lea.vmem %s3, %s464
      %s466 = smul.u32 16, %s24
      %p467 = scmp.lt.s32.totalorder %s23, 1
      %s468 = scalar_select %p467, %s23, 1
      %p469 = scmp.lt.s32.totalorder %s466, 31
      %s470 = scalar_select %p469, %s466, 31
      %s471 = smul.addr %s468, 32
      %s472 = sadd.s32 %s470, %s471
      %s473 = smul.addr %s472, 4
      %s474 = scalar_lea.vmem %s6, %s473
      %s475 = smul.u32 16, %s24
      %p476 = scmp.lt.s32.totalorder %s23, 1
      %s477 = scalar_select %p476, %s23, 1
      %p478 = scmp.lt.s32.totalorder %s24, 1
      %s479 = scalar_select %p478, %s24, 1
      %s480 = smul.addr %s477, 2
      %s481 = sadd.s32 %s479, %s480
      %s482 = smul.addr %s481, 2
      %s483 = scalar_lea.vmem %s7, %s482
      %v485 = vld [vmem:[%s465] sm:$0x1]
      %v486 = vld [vmem:[%s465 + $0x1] sm:$0x1]
      %v487 = vld [vmem:[%s438] sm:$0xf]
      %v488 = vld [vmem:[%s438 + $0x4] sm:$0xf]
      %v489 = vunpack.c.l.bf16 %v487
      %v490 = vunpack.c.l.bf16 %v488
      %v491 = vlaneseq
      %v492 = vshrl.u32 %v491, 7
      %v493 = vsub.s32 0, %v492
      %v494 = vrot.slane %v485, %v493
      %v495 = vmul.f32 %v489, %v494
      %v496 = vmul.f32 %v490, %v494
      %v497 = vlaneseq
      %v498 = vshrl.u32 %v497, 7
      %v499 = vsub.s32 0, %v498
      %v500 = vrot.slane %v486, %v499
      %v501 = vadd.f32 %v495, %v500
      %v502 = vadd.f32 %v496, %v500
      %v503 = vxor.u32 %v501, 2147483648
      %v504 = vxor.u32 %v502, 2147483648
      %v505 = vmul.f32 %v503, 1.442695
      %v506 = vpow.pop %v505
      %v507 = vmul.f32 %v504, 1.442695
      %v508 = vpow.pop %v507
      %v509 = vadd.f32 %v506, 1.0
      %v510 = vadd.f32 %v508, 1.0
      %v511 = vrcp.pop %v509
      %v512 = vmul.f32 1.0, %v511
      %v513 = vrcp.pop %v510
      %v514 = vmul.f32 1.0, %v513
      %v515 = vmul.f32 %v501, %v512
      %v516 = vmul.f32 %v502, %v514
      %p517 = scmp.gt.s32.totalorder %s24, 0
      %s518 = scalar_select %p517, 1, 0
      %s519 = scvt.s32.f32 %s518
      %v520 = vstv %s519
      %v521 = vmul.f32 %v515, %v520
      %v522 = vmul.f32 %v516, %v520
      %v523 = vld [vmem:[%s456] sm:$0xf]
      %v524 = vld [vmem:[%s456 + $0x4] sm:$0xf]
      %v525 = vunpack.c.l.bf16 %v523
      %v526 = vunpack.c.l.bf16 %v524
      %v527 = vmul.f32 %v525, %v494
      %v528 = vmul.f32 %v526, %v494
      %v529 = vadd.f32 %v527, %v500
      %v530 = vadd.f32 %v528, %v500
      %v531 = vxor.u32 %v529, 2147483648
      %v532 = vxor.u32 %v530, 2147483648
      %v533 = vmul.f32 %v531, 1.442695
      %v534 = vpow.pop %v533
      %v535 = vmul.f32 %v532, 1.442695
      %v536 = vpow.pop %v535
      %v537 = vadd.f32 %v534, 1.0
      %v538 = vadd.f32 %v536, 1.0
      %v539 = vrcp.pop %v537
      %v540 = vmul.f32 1.0, %v539
      %v541 = vrcp.pop %v538
      %v542 = vmul.f32 1.0, %v541
      %v543 = vmul.f32 %v529, %v540
      %v544 = vmul.f32 %v530, %v542
      %p545 = scmp.lt.s32.totalorder %s24, 1
      %s546 = scalar_select %p545, 1, 0
      %s547 = scvt.s32.f32 %s546
      %v548 = vstv %s547
      %v549 = vmul.f32 %v543, %v548
      %v550 = vmul.f32 %v544, %v548
      %v551 = vld [vmem:[%s424] sm:$0xf]
      %v552 = vld [vmem:[%s424 + $0x4] sm:$0xf]
      %v553 = vld [vmem:[%s424 + $0x8] sm:$0xf]
      %v554 = vld [vmem:[%s424 + $0xc] sm:$0xf]
      %v555 = vld [vmem:[%s424 + $0x10] sm:$0xf]
      %v556 = vld [vmem:[%s424 + $0x14] sm:$0xf]
      %v557 = vld [vmem:[%s424 + $0x18] sm:$0xf]
      %v558 = vld [vmem:[%s424 + $0x1c] sm:$0xf]
      %v559 = vld [vmem:[%s424 + $0x20] sm:$0xf]
      %v560 = vld [vmem:[%s424 + $0x24] sm:$0xf]
      %v561 = vld [vmem:[%s424 + $0x28] sm:$0xf]
      %v562 = vld [vmem:[%s424 + $0x2c] sm:$0xf]
      %v563 = vld [vmem:[%s424 + $0x30] sm:$0xf]
      %v564 = vld [vmem:[%s424 + $0x34] sm:$0xf]
      %v565 = vld [vmem:[%s424 + $0x38] sm:$0xf]
      %v566 = vld [vmem:[%s424 + $0x3c] sm:$0xf]
      %v567 = vunpack.c.l.bf16 %v551
      %v568 = vunpack.c.l.bf16 %v552
      %v569 = vunpack.c.l.bf16 %v553
      %v570 = vunpack.c.l.bf16 %v554
      %v571 = vunpack.c.l.bf16 %v555
      %v572 = vunpack.c.l.bf16 %v556
      %v573 = vunpack.c.l.bf16 %v557
      %v574 = vunpack.c.l.bf16 %v558
      %v575 = vunpack.c.l.bf16 %v559
      %v576 = vunpack.c.l.bf16 %v560
      %v577 = vunpack.c.l.bf16 %v561
      %v578 = vunpack.c.l.bf16 %v562
      %v579 = vunpack.c.l.bf16 %v563
      %v580 = vunpack.c.l.bf16 %v564
      %v581 = vunpack.c.l.bf16 %v565
      %v582 = vunpack.c.l.bf16 %v566
      %v583 = vmul.f32 %v567, %v494
      %v584 = vmul.f32 %v568, %v494
      %v585 = vmul.f32 %v569, %v494
      %v586 = vmul.f32 %v570, %v494
      %v587 = vmul.f32 %v571, %v494
      %v588 = vmul.f32 %v572, %v494
      %v589 = vmul.f32 %v573, %v494
      %v590 = vmul.f32 %v574, %v494
      %v591 = vmul.f32 %v575, %v494
      %v592 = vmul.f32 %v576, %v494
      %v593 = vmul.f32 %v577, %v494
      %v594 = vmul.f32 %v578, %v494
      %v595 = vmul.f32 %v579, %v494
      %v596 = vmul.f32 %v580, %v494
      %v597 = vmul.f32 %v581, %v494
      %v598 = vmul.f32 %v582, %v494
      %v599 = vadd.f32 %v583, %v500
      %v600 = vadd.f32 %v584, %v500
      %v601 = vadd.f32 %v585, %v500
      %v602 = vadd.f32 %v586, %v500
      %v603 = vadd.f32 %v587, %v500
      %v604 = vadd.f32 %v588, %v500
      %v605 = vadd.f32 %v589, %v500
      %v606 = vadd.f32 %v590, %v500
      %v607 = vadd.f32 %v591, %v500
      %v608 = vadd.f32 %v592, %v500
      %v609 = vadd.f32 %v593, %v500
      %v610 = vadd.f32 %v594, %v500
      %v611 = vadd.f32 %v595, %v500
      %v612 = vadd.f32 %v596, %v500
      %v613 = vadd.f32 %v597, %v500
      %v614 = vadd.f32 %v598, %v500
      %v615 = vxor.u32 %v599, 2147483648
      %v616 = vxor.u32 %v600, 2147483648
      %v617 = vxor.u32 %v601, 2147483648
      %v618 = vxor.u32 %v602, 2147483648
      %v619 = vxor.u32 %v603, 2147483648
      %v620 = vxor.u32 %v604, 2147483648
      %v621 = vxor.u32 %v605, 2147483648
      %v622 = vxor.u32 %v606, 2147483648
      %v623 = vxor.u32 %v607, 2147483648
      %v624 = vxor.u32 %v608, 2147483648
      %v625 = vxor.u32 %v609, 2147483648
      %v626 = vxor.u32 %v610, 2147483648
      %v627 = vxor.u32 %v611, 2147483648
      %v628 = vxor.u32 %v612, 2147483648
      %v629 = vxor.u32 %v613, 2147483648
      %v630 = vxor.u32 %v614, 2147483648
      %v631 = vmul.f32 %v615, 1.442695
      %v632 = vpow.pop %v631
      %v633 = vmul.f32 %v616, 1.442695
      %v634 = vpow.pop %v633
      %v635 = vmul.f32 %v617, 1.442695
      %v636 = vpow.pop %v635
      %v637 = vmul.f32 %v618, 1.442695
      %v638 = vpow.pop %v637
      %v639 = vmul.f32 %v619, 1.442695
      %v640 = vpow.pop %v639
      %v641 = vmul.f32 %v620, 1.442695
      %v642 = vpow.pop %v641
      %v643 = vmul.f32 %v621, 1.442695
      %v644 = vpow.pop %v643
      %v645 = vmul.f32 %v622, 1.442695
      %v646 = vpow.pop %v645
      %v647 = vmul.f32 %v623, 1.442695
      %v648 = vpow.pop %v647
      %v649 = vmul.f32 %v624, 1.442695
      %v650 = vpow.pop %v649
      %v651 = vmul.f32 %v625, 1.442695
      %v652 = vpow.pop %v651
      %v653 = vmul.f32 %v626, 1.442695
      %v654 = vpow.pop %v653
      %v655 = vmul.f32 %v627, 1.442695
      %v656 = vpow.pop %v655
      %v657 = vmul.f32 %v628, 1.442695
      %v658 = vpow.pop %v657
      %v659 = vmul.f32 %v629, 1.442695
      %v660 = vpow.pop %v659
      %v661 = vmul.f32 %v630, 1.442695
      %v662 = vpow.pop %v661
      %v663 = vadd.f32 %v632, 1.0
      %v664 = vadd.f32 %v634, 1.0
      %v665 = vadd.f32 %v636, 1.0
      %v666 = vadd.f32 %v638, 1.0
      %v667 = vadd.f32 %v640, 1.0
      %v668 = vadd.f32 %v642, 1.0
      %v669 = vadd.f32 %v644, 1.0
      %v670 = vadd.f32 %v646, 1.0
      %v671 = vadd.f32 %v648, 1.0
      %v672 = vadd.f32 %v650, 1.0
      %v673 = vadd.f32 %v652, 1.0
      %v674 = vadd.f32 %v654, 1.0
      %v675 = vadd.f32 %v656, 1.0
      %v676 = vadd.f32 %v658, 1.0
      %v677 = vadd.f32 %v660, 1.0
      %v678 = vadd.f32 %v662, 1.0
      %v679 = vrcp.pop %v663
      %v680 = vmul.f32 1.0, %v679
      %v681 = vrcp.pop %v664
      %v682 = vmul.f32 1.0, %v681
      %v683 = vrcp.pop %v665
      %v684 = vmul.f32 1.0, %v683
      %v685 = vrcp.pop %v666
      %v686 = vmul.f32 1.0, %v685
      %v687 = vrcp.pop %v667
      %v688 = vmul.f32 1.0, %v687
      %v689 = vrcp.pop %v668
      %v690 = vmul.f32 1.0, %v689
      %v691 = vrcp.pop %v669
      %v692 = vmul.f32 1.0, %v691
      %v693 = vrcp.pop %v670
      %v694 = vmul.f32 1.0, %v693
      %v695 = vrcp.pop %v671
      %v696 = vmul.f32 1.0, %v695
      %v697 = vrcp.pop %v672
      %v698 = vmul.f32 1.0, %v697
      %v699 = vrcp.pop %v673
      %v700 = vmul.f32 1.0, %v699
      %v701 = vrcp.pop %v674
      %v702 = vmul.f32 1.0, %v701
      %v703 = vrcp.pop %v675
      %v704 = vmul.f32 1.0, %v703
      %v705 = vrcp.pop %v676
      %v706 = vmul.f32 1.0, %v705
      %v707 = vrcp.pop %v677
      %v708 = vmul.f32 1.0, %v707
      %v709 = vrcp.pop %v678
      %v710 = vmul.f32 1.0, %v709
      %v711 = vmul.f32 %v599, %v680
      %v712 = vmul.f32 %v600, %v682
      %v713 = vmul.f32 %v601, %v684
      %v714 = vmul.f32 %v602, %v686
      %v715 = vmul.f32 %v603, %v688
      %v716 = vmul.f32 %v604, %v690
      %v717 = vmul.f32 %v605, %v692
      %v718 = vmul.f32 %v606, %v694
      %v719 = vmul.f32 %v607, %v696
      %v720 = vmul.f32 %v608, %v698
      %v721 = vmul.f32 %v609, %v700
      %v722 = vmul.f32 %v610, %v702
      %v723 = vmul.f32 %v611, %v704
      %v724 = vmul.f32 %v612, %v706
      %v725 = vmul.f32 %v613, %v708
      %v726 = vmul.f32 %v614, %v710
      %vm747 = vcmask 1040384
      %v748 = vrot.slane %v521, 7
      %v749 = vrot.slane %v522, 7
      %v750 = vsel %vm747, %v748, %v749
      %v751 = vrot.slane %v711, 7
      %v752 = vsel %vm747, %v749, %v751
      %v753 = vrot.slane %v712, 7
      %v754 = vsel %vm747, %v751, %v753
      %v755 = vrot.slane %v713, 7
      %v756 = vsel %vm747, %v753, %v755
      %v757 = vrot.slane %v714, 7
      %v758 = vsel %vm747, %v755, %v757
      %v759 = vrot.slane %v715, 7
      %v760 = vsel %vm747, %v757, %v759
      %v761 = vrot.slane %v716, 7
      %v762 = vsel %vm747, %v759, %v761
      %v763 = vrot.slane %v717, 7
      %v764 = vsel %vm747, %v761, %v763
      %v765 = vrot.slane %v718, 7
      %v766 = vsel %vm747, %v763, %v765
      %v767 = vrot.slane %v719, 7
      %v768 = vsel %vm747, %v765, %v767
      %v769 = vrot.slane %v720, 7
      %v770 = vsel %vm747, %v767, %v769
      %v771 = vrot.slane %v721, 7
      %v772 = vsel %vm747, %v769, %v771
      %v773 = vrot.slane %v722, 7
      %v774 = vsel %vm747, %v771, %v773
      %v775 = vrot.slane %v723, 7
      %v776 = vsel %vm747, %v773, %v775
      %v777 = vrot.slane %v724, 7
      %v778 = vsel %vm747, %v775, %v777
      %v779 = vrot.slane %v725, 7
      %v780 = vsel %vm747, %v777, %v779
      %v781 = vrot.slane %v726, 7
      %v782 = vsel %vm747, %v779, %v781
      %v783 = vrot.slane %v549, 7
      %v784 = vsel %vm747, %v781, %v783
      %v785 = vrot.slane %v550, 7
      %v786 = vsel %vm747, %v783, %v785
      %v807 = vsel %vm747, 0.0, %v748
      %vm808 = vcmask 1046528
      %v809 = vrot.slane %v521, 1
      %v810 = vrot.slane %v522, 1
      %v811 = vsel %vm808, %v809, %v810
      %v812 = vrot.slane %v711, 1
      %v813 = vsel %vm808, %v810, %v812
      %v814 = vrot.slane %v712, 1
      %v815 = vsel %vm808, %v812, %v814
      %v816 = vrot.slane %v713, 1
      %v817 = vsel %vm808, %v814, %v816
      %v818 = vrot.slane %v714, 1
      %v819 = vsel %vm808, %v816, %v818
      %v820 = vrot.slane %v715, 1
      %v821 = vsel %vm808, %v818, %v820
      %v822 = vrot.slane %v716, 1
      %v823 = vsel %vm808, %v820, %v822
      %v824 = vrot.slane %v717, 1
      %v825 = vsel %vm808, %v822, %v824
      %v826 = vrot.slane %v718, 1
      %v827 = vsel %vm808, %v824, %v826
      %v828 = vrot.slane %v719, 1
      %v829 = vsel %vm808, %v826, %v828
      %v830 = vrot.slane %v720, 1
      %v831 = vsel %vm808, %v828, %v830
      %v832 = vrot.slane %v721, 1
      %v833 = vsel %vm808, %v830, %v832
      %v834 = vrot.slane %v722, 1
      %v835 = vsel %vm808, %v832, %v834
      %v836 = vrot.slane %v723, 1
      %v837 = vsel %vm808, %v834, %v836
      %v838 = vrot.slane %v724, 1
      %v839 = vsel %vm808, %v836, %v838
      %v840 = vrot.slane %v725, 1
      %v841 = vsel %vm808, %v838, %v840
      %v842 = vrot.slane %v726, 1
      %v843 = vsel %vm808, %v840, %v842
      %v844 = vrot.slane %v549, 1
      %v845 = vsel %vm808, %v842, %v844
      %v846 = vrot.slane %v550, 1
      %v847 = vsel %vm808, %v844, %v846
      %v868 = vsel %vm808, %v846, 0.0
      %v869 = vlaneseq
      %v870 = vshrl.u32 %v869, 7
      %v871 = vadd.s32 %v870, 8
      %v872 = vadd.s32 %v870, 16
      %v873 = vadd.s32 %v870, 24
      %v874 = vadd.s32 %v870, 32
      %v875 = vadd.s32 %v870, 40
      %v876 = vadd.s32 %v870, 48
      %v877 = vadd.s32 %v870, 56
      %v878 = vadd.s32 %v870, 64
      %v879 = vadd.s32 %v870, 72
      %v880 = vadd.s32 %v870, 80
      %v881 = vadd.s32 %v870, 88
      %v882 = vadd.s32 %v870, 96
      %v883 = vadd.s32 %v870, 104
      %v884 = vadd.s32 %v870, 112
      %v885 = vadd.s32 %v870, 120
      %v886 = vadd.s32 %v870, 128
      %v887 = vadd.s32 %v870, 136
      %v888 = vadd.s32 %v870, 144
      %v889 = vadd.s32 %v870, 152
      %vm890 = vcmp.lt.s32.totalorder %v870, 0
      %v891 = vsub.s32 0, %v870
      %v892 = vsel %vm890, %v891, %v870
      %v893 = vshrl.u32 %v892, 4
      %v894 = vand.u32 %v892, 15
      %v895 = vsub.s32 0, %v894
      %v896 = vsel %vm890, %v895, %v894
      %vm897 = vcmp.lt.s32.totalorder %v871, 0
      %v898 = vsub.s32 0, %v871
      %v899 = vsel %vm897, %v898, %v871
      %v900 = vshrl.u32 %v899, 4
      %v901 = vand.u32 %v899, 15
      %v902 = vsub.s32 0, %v901
      %v903 = vsel %vm897, %v902, %v901
      %vm904 = vcmp.lt.s32.totalorder %v872, 0
      %v905 = vsub.s32 0, %v872
      %v906 = vsel %vm904, %v905, %v872
      %v907 = vshrl.u32 %v906, 4
      %v908 = vand.u32 %v906, 15
      %v909 = vsub.s32 0, %v908
      %v910 = vsel %vm904, %v909, %v908
      %vm911 = vcmp.lt.s32.totalorder %v873, 0
      %v912 = vsub.s32 0, %v873
      %v913 = vsel %vm911, %v912, %v873
      %v914 = vshrl.u32 %v913, 4
      %v915 = vand.u32 %v913, 15
      %v916 = vsub.s32 0, %v915
      %v917 = vsel %vm911, %v916, %v915
      %vm918 = vcmp.lt.s32.totalorder %v874, 0
      %v919 = vsub.s32 0, %v874
      %v920 = vsel %vm918, %v919, %v874
      %v921 = vshrl.u32 %v920, 4
      %v922 = vand.u32 %v920, 15
      %v923 = vsub.s32 0, %v922
      %v924 = vsel %vm918, %v923, %v922
      %vm925 = vcmp.lt.s32.totalorder %v875, 0
      %v926 = vsub.s32 0, %v875
      %v927 = vsel %vm925, %v926, %v875
      %v928 = vshrl.u32 %v927, 4
      %v929 = vand.u32 %v927, 15
      %v930 = vsub.s32 0, %v929
      %v931 = vsel %vm925, %v930, %v929
      %vm932 = vcmp.lt.s32.totalorder %v876, 0
      %v933 = vsub.s32 0, %v876
      %v934 = vsel %vm932, %v933, %v876
      %v935 = vshrl.u32 %v934, 4
      %v936 = vand.u32 %v934, 15
      %v937 = vsub.s32 0, %v936
      %v938 = vsel %vm932, %v937, %v936
      %vm939 = vcmp.lt.s32.totalorder %v877, 0
      %v940 = vsub.s32 0, %v877
      %v941 = vsel %vm939, %v940, %v877
      %v942 = vshrl.u32 %v941, 4
      %v943 = vand.u32 %v941, 15
      %v944 = vsub.s32 0, %v943
      %v945 = vsel %vm939, %v944, %v943
      %vm946 = vcmp.lt.s32.totalorder %v878, 0
      %v947 = vsub.s32 0, %v878
      %v948 = vsel %vm946, %v947, %v878
      %v949 = vshrl.u32 %v948, 4
      %v950 = vand.u32 %v948, 15
      %v951 = vsub.s32 0, %v950
      %v952 = vsel %vm946, %v951, %v950
      %vm953 = vcmp.lt.s32.totalorder %v879, 0
      %v954 = vsub.s32 0, %v879
      %v955 = vsel %vm953, %v954, %v879
      %v956 = vshrl.u32 %v955, 4
      %v957 = vand.u32 %v955, 15
      %v958 = vsub.s32 0, %v957
      %v959 = vsel %vm953, %v958, %v957
      %vm960 = vcmp.lt.s32.totalorder %v880, 0
      %v961 = vsub.s32 0, %v880
      %v962 = vsel %vm960, %v961, %v880
      %v963 = vshrl.u32 %v962, 4
      %v964 = vand.u32 %v962, 15
      %v965 = vsub.s32 0, %v964
      %v966 = vsel %vm960, %v965, %v964
      %vm967 = vcmp.lt.s32.totalorder %v881, 0
      %v968 = vsub.s32 0, %v881
      %v969 = vsel %vm967, %v968, %v881
      %v970 = vshrl.u32 %v969, 4
      %v971 = vand.u32 %v969, 15
      %v972 = vsub.s32 0, %v971
      %v973 = vsel %vm967, %v972, %v971
      %vm974 = vcmp.lt.s32.totalorder %v882, 0
      %v975 = vsub.s32 0, %v882
      %v976 = vsel %vm974, %v975, %v882
      %v977 = vshrl.u32 %v976, 4
      %v978 = vand.u32 %v976, 15
      %v979 = vsub.s32 0, %v978
      %v980 = vsel %vm974, %v979, %v978
      %vm981 = vcmp.lt.s32.totalorder %v883, 0
      %v982 = vsub.s32 0, %v883
      %v983 = vsel %vm981, %v982, %v883
      %v984 = vshrl.u32 %v983, 4
      %v985 = vand.u32 %v983, 15
      %v986 = vsub.s32 0, %v985
      %v987 = vsel %vm981, %v986, %v985
      %vm988 = vcmp.lt.s32.totalorder %v884, 0
      %v989 = vsub.s32 0, %v884
      %v990 = vsel %vm988, %v989, %v884
      %v991 = vshrl.u32 %v990, 4
      %v992 = vand.u32 %v990, 15
      %v993 = vsub.s32 0, %v992
      %v994 = vsel %vm988, %v993, %v992
      %vm995 = vcmp.lt.s32.totalorder %v885, 0
      %v996 = vsub.s32 0, %v885
      %v997 = vsel %vm995, %v996, %v885
      %v998 = vshrl.u32 %v997, 4
      %v999 = vand.u32 %v997, 15
      %v1000 = vsub.s32 0, %v999
      %v1001 = vsel %vm995, %v1000, %v999
      %vm1002 = vcmp.lt.s32.totalorder %v886, 0
      %v1003 = vsub.s32 0, %v886
      %v1004 = vsel %vm1002, %v1003, %v886
      %v1005 = vshrl.u32 %v1004, 4
      %v1006 = vand.u32 %v1004, 15
      %v1007 = vsub.s32 0, %v1006
      %v1008 = vsel %vm1002, %v1007, %v1006
      %vm1009 = vcmp.lt.s32.totalorder %v887, 0
      %v1010 = vsub.s32 0, %v887
      %v1011 = vsel %vm1009, %v1010, %v887
      %v1012 = vshrl.u32 %v1011, 4
      %v1013 = vand.u32 %v1011, 15
      %v1014 = vsub.s32 0, %v1013
      %v1015 = vsel %vm1009, %v1014, %v1013
      %vm1016 = vcmp.lt.s32.totalorder %v888, 0
      %v1017 = vsub.s32 0, %v888
      %v1018 = vsel %vm1016, %v1017, %v888
      %v1019 = vshrl.u32 %v1018, 4
      %v1020 = vand.u32 %v1018, 15
      %v1021 = vsub.s32 0, %v1020
      %v1022 = vsel %vm1016, %v1021, %v1020
      %vm1023 = vcmp.lt.s32.totalorder %v889, 0
      %v1024 = vsub.s32 0, %v889
      %v1025 = vsel %vm1023, %v1024, %v889
      %v1026 = vshrl.u32 %v1025, 4
      %v1027 = vand.u32 %v1025, 15
      %v1028 = vsub.s32 0, %v1027
      %v1029 = vsel %vm1023, %v1028, %v1027
      %vm1030 = vcmp.ne.s32.totalorder %v896, 0
      %vm1031 = vcmp.ne.s32.totalorder %v903, 0
      %vm1032 = vcmp.ne.s32.totalorder %v910, 0
      %vm1033 = vcmp.ne.s32.totalorder %v917, 0
      %vm1034 = vcmp.ne.s32.totalorder %v924, 0
      %vm1035 = vcmp.ne.s32.totalorder %v931, 0
      %vm1036 = vcmp.ne.s32.totalorder %v938, 0
      %vm1037 = vcmp.ne.s32.totalorder %v945, 0
      %vm1038 = vcmp.ne.s32.totalorder %v952, 0
      %vm1039 = vcmp.ne.s32.totalorder %v959, 0
      %vm1040 = vcmp.ne.s32.totalorder %v966, 0
      %vm1041 = vcmp.ne.s32.totalorder %v973, 0
      %vm1042 = vcmp.ne.s32.totalorder %v980, 0
      %vm1043 = vcmp.ne.s32.totalorder %v987, 0
      %vm1044 = vcmp.ne.s32.totalorder %v994, 0
      %vm1045 = vcmp.ne.s32.totalorder %v1001, 0
      %vm1046 = vcmp.ne.s32.totalorder %v1008, 0
      %vm1047 = vcmp.ne.s32.totalorder %v1015, 0
      %vm1048 = vcmp.ne.s32.totalorder %v1022, 0
      %vm1049 = vcmp.ne.s32.totalorder %v1029, 0
      %vm1050 = vcmp.lt.s32.totalorder %v896, 0
      %vm1051 = vcmp.lt.s32.totalorder %v903, 0
      %vm1052 = vcmp.lt.s32.totalorder %v910, 0
      %vm1053 = vcmp.lt.s32.totalorder %v917, 0
      %vm1054 = vcmp.lt.s32.totalorder %v924, 0
      %vm1055 = vcmp.lt.s32.totalorder %v931, 0
      %vm1056 = vcmp.lt.s32.totalorder %v938, 0
      %vm1057 = vcmp.lt.s32.totalorder %v945, 0
      %vm1058 = vcmp.lt.s32.totalorder %v952, 0
      %vm1059 = vcmp.lt.s32.totalorder %v959, 0
      %vm1060 = vcmp.lt.s32.totalorder %v966, 0
      %vm1061 = vcmp.lt.s32.totalorder %v973, 0
      %vm1062 = vcmp.lt.s32.totalorder %v980, 0
      %vm1063 = vcmp.lt.s32.totalorder %v987, 0
      %vm1064 = vcmp.lt.s32.totalorder %v994, 0
      %vm1065 = vcmp.lt.s32.totalorder %v1001, 0
      %vm1066 = vcmp.lt.s32.totalorder %v1008, 0
      %vm1067 = vcmp.lt.s32.totalorder %v1015, 0
      %vm1068 = vcmp.lt.s32.totalorder %v1022, 0
      %vm1069 = vcmp.lt.s32.totalorder %v1029, 0
      %vm1070 = vmand %vm1050, %vm1030
      %vm1071 = vmand %vm1051, %vm1031
      %vm1072 = vmand %vm1052, %vm1032
      %vm1073 = vmand %vm1053, %vm1033
      %vm1074 = vmand %vm1054, %vm1034
      %vm1075 = vmand %vm1055, %vm1035
      %vm1076 = vmand %vm1056, %vm1036
      %vm1077 = vmand %vm1057, %vm1037
      %vm1078 = vmand %vm1058, %vm1038
      %vm1079 = vmand %vm1059, %vm1039
      %vm1080 = vmand %vm1060, %vm1040
      %vm1081 = vmand %vm1061, %vm1041
      %vm1082 = vmand %vm1062, %vm1042
      %vm1083 = vmand %vm1063, %vm1043
      %vm1084 = vmand %vm1064, %vm1044
      %vm1085 = vmand %vm1065, %vm1045
      %vm1086 = vmand %vm1066, %vm1046
      %vm1087 = vmand %vm1067, %vm1047
      %vm1088 = vmand %vm1068, %vm1048
      %vm1089 = vmand %vm1069, %vm1049
      %v1090 = vadd.s32 %v896, 16
      %v1091 = vadd.s32 %v903, 16
      %v1092 = vadd.s32 %v910, 16
      %v1093 = vadd.s32 %v917, 16
      %v1094 = vadd.s32 %v924, 16
      %v1095 = vadd.s32 %v931, 16
      %v1096 = vadd.s32 %v938, 16
      %v1097 = vadd.s32 %v945, 16
      %v1098 = vadd.s32 %v952, 16
      %v1099 = vadd.s32 %v959, 16
      %v1100 = vadd.s32 %v966, 16
      %v1101 = vadd.s32 %v973, 16
      %v1102 = vadd.s32 %v980, 16
      %v1103 = vadd.s32 %v987, 16
      %v1104 = vadd.s32 %v994, 16
      %v1105 = vadd.s32 %v1001, 16
      %v1106 = vadd.s32 %v1008, 16
      %v1107 = vadd.s32 %v1015, 16
      %v1108 = vadd.s32 %v1022, 16
      %v1109 = vadd.s32 %v1029, 16
      %v1110 = vsel %vm1070, %v1090, %v896
      %v1111 = vsel %vm1071, %v1091, %v903
      %v1112 = vsel %vm1072, %v1092, %v910
      %v1113 = vsel %vm1073, %v1093, %v917
      %v1114 = vsel %vm1074, %v1094, %v924
      %v1115 = vsel %vm1075, %v1095, %v931
      %v1116 = vsel %vm1076, %v1096, %v938
      %v1117 = vsel %vm1077, %v1097, %v945
      %v1118 = vsel %vm1078, %v1098, %v952
      %v1119 = vsel %vm1079, %v1099, %v959
      %v1120 = vsel %vm1080, %v1100, %v966
      %v1121 = vsel %vm1081, %v1101, %v973
      %v1122 = vsel %vm1082, %v1102, %v980
      %v1123 = vsel %vm1083, %v1103, %v987
      %v1124 = vsel %vm1084, %v1104, %v994
      %v1125 = vsel %vm1085, %v1105, %v1001
      %v1126 = vsel %vm1086, %v1106, %v1008
      %v1127 = vsel %vm1087, %v1107, %v1015
      %v1128 = vsel %vm1088, %v1108, %v1022
      %v1129 = vsel %vm1089, %v1109, %v1029
      %vm1130 = vcmp.eq.s32.totalorder %v1110, 0
      %vm1131 = vcmp.eq.s32.totalorder %v1111, 0
      %vm1132 = vcmp.eq.s32.totalorder %v1112, 0
      %vm1133 = vcmp.eq.s32.totalorder %v1113, 0
      %vm1134 = vcmp.eq.s32.totalorder %v1114, 0
      %vm1135 = vcmp.eq.s32.totalorder %v1115, 0
      %vm1136 = vcmp.eq.s32.totalorder %v1116, 0
      %vm1137 = vcmp.eq.s32.totalorder %v1117, 0
      %vm1138 = vcmp.eq.s32.totalorder %v1118, 0
      %vm1139 = vcmp.eq.s32.totalorder %v1119, 0
      %vm1140 = vcmp.eq.s32.totalorder %v1120, 0
      %vm1141 = vcmp.eq.s32.totalorder %v1121, 0
      %vm1142 = vcmp.eq.s32.totalorder %v1122, 0
      %vm1143 = vcmp.eq.s32.totalorder %v1123, 0
      %vm1144 = vcmp.eq.s32.totalorder %v1124, 0
      %vm1145 = vcmp.eq.s32.totalorder %v1125, 0
      %vm1146 = vcmp.eq.s32.totalorder %v1126, 0
      %vm1147 = vcmp.eq.s32.totalorder %v1127, 0
      %vm1148 = vcmp.eq.s32.totalorder %v1128, 0
      %vm1149 = vcmp.eq.s32.totalorder %v1129, 0
      %v1150 = vsel %vm1130, 1, 0
      %v1151 = vsel %vm1131, 1, 0
      %v1152 = vsel %vm1132, 1, 0
      %v1153 = vsel %vm1133, 1, 0
      %v1154 = vsel %vm1134, 1, 0
      %v1155 = vsel %vm1135, 1, 0
      %v1156 = vsel %vm1136, 1, 0
      %v1157 = vsel %vm1137, 1, 0
      %v1158 = vsel %vm1138, 1, 0
      %v1159 = vsel %vm1139, 1, 0
      %v1160 = vsel %vm1140, 1, 0
      %v1161 = vsel %vm1141, 1, 0
      %v1162 = vsel %vm1142, 1, 0
      %v1163 = vsel %vm1143, 1, 0
      %v1164 = vsel %vm1144, 1, 0
      %v1165 = vsel %vm1145, 1, 0
      %v1166 = vsel %vm1146, 1, 0
      %v1167 = vsel %vm1147, 1, 0
      %v1168 = vsel %vm1148, 1, 0
      %v1169 = vsel %vm1149, 1, 0
      %vm1170 = vcmp.eq.s32.totalorder %v1150, 1
      %vm1171 = vcmp.eq.s32.totalorder %v1151, 1
      %vm1172 = vcmp.eq.s32.totalorder %v1152, 1
      %vm1173 = vcmp.eq.s32.totalorder %v1153, 1
      %vm1174 = vcmp.eq.s32.totalorder %v1154, 1
      %vm1175 = vcmp.eq.s32.totalorder %v1155, 1
      %vm1176 = vcmp.eq.s32.totalorder %v1156, 1
      %vm1177 = vcmp.eq.s32.totalorder %v1157, 1
      %vm1178 = vcmp.eq.s32.totalorder %v1158, 1
      %vm1179 = vcmp.eq.s32.totalorder %v1159, 1
      %vm1180 = vcmp.eq.s32.totalorder %v1160, 1
      %vm1181 = vcmp.eq.s32.totalorder %v1161, 1
      %vm1182 = vcmp.eq.s32.totalorder %v1162, 1
      %vm1183 = vcmp.eq.s32.totalorder %v1163, 1
      %vm1184 = vcmp.eq.s32.totalorder %v1164, 1
      %vm1185 = vcmp.eq.s32.totalorder %v1165, 1
      %vm1186 = vcmp.eq.s32.totalorder %v1166, 1
      %vm1187 = vcmp.eq.s32.totalorder %v1167, 1
      %vm1188 = vcmp.eq.s32.totalorder %v1168, 1
      %vm1189 = vcmp.eq.s32.totalorder %v1169, 1
      %v1190 = vsel %vm1170, 0.0, %v807
      %v1191 = vsel %vm1171, 0.0, %v750
      %v1192 = vsel %vm1172, 0.0, %v752
      %v1193 = vsel %vm1173, 0.0, %v754
      %v1194 = vsel %vm1174, 0.0, %v756
      %v1195 = vsel %vm1175, 0.0, %v758
      %v1196 = vsel %vm1176, 0.0, %v760
      %v1197 = vsel %vm1177, 0.0, %v762
      %v1198 = vsel %vm1178, 0.0, %v764
      %v1199 = vsel %vm1179, 0.0, %v766
      %v1200 = vsel %vm1180, 0.0, %v768
      %v1201 = vsel %vm1181, 0.0, %v770
      %v1202 = vsel %vm1182, 0.0, %v772
      %v1203 = vsel %vm1183, 0.0, %v774
      %v1204 = vsel %vm1184, 0.0, %v776
      %v1205 = vsel %vm1185, 0.0, %v778
      %v1206 = vsel %vm1186, 0.0, %v780
      %v1207 = vsel %vm1187, 0.0, %v782
      %v1208 = vsel %vm1188, 0.0, %v784
      %v1209 = vsel %vm1189, 0.0, %v786
      %v1210 = vpack.c.bf16 %v1191, %v1190
      %v1211 = vpack.c.bf16 %v1193, %v1192
      %v1212 = vpack.c.bf16 %v1195, %v1194
      %v1213 = vpack.c.bf16 %v1197, %v1196
      %v1214 = vpack.c.bf16 %v1199, %v1198
      %v1215 = vpack.c.bf16 %v1201, %v1200
      %v1216 = vpack.c.bf16 %v1203, %v1202
      %v1217 = vpack.c.bf16 %v1205, %v1204
      %v1218 = vpack.c.bf16 %v1207, %v1206
      %v1219 = vpack.c.bf16 %v1209, %v1208
      %vm1220 = vcmp.eq.s32.totalorder %v1110, 15
      %vm1221 = vcmp.eq.s32.totalorder %v1111, 15
      %vm1222 = vcmp.eq.s32.totalorder %v1112, 15
      %vm1223 = vcmp.eq.s32.totalorder %v1113, 15
      %vm1224 = vcmp.eq.s32.totalorder %v1114, 15
      %vm1225 = vcmp.eq.s32.totalorder %v1115, 15
      %vm1226 = vcmp.eq.s32.totalorder %v1116, 15
      %vm1227 = vcmp.eq.s32.totalorder %v1117, 15
      %vm1228 = vcmp.eq.s32.totalorder %v1118, 15
      %vm1229 = vcmp.eq.s32.totalorder %v1119, 15
      %vm1230 = vcmp.eq.s32.totalorder %v1120, 15
      %vm1231 = vcmp.eq.s32.totalorder %v1121, 15
      %vm1232 = vcmp.eq.s32.totalorder %v1122, 15
      %vm1233 = vcmp.eq.s32.totalorder %v1123, 15
      %vm1234 = vcmp.eq.s32.totalorder %v1124, 15
      %vm1235 = vcmp.eq.s32.totalorder %v1125, 15
      %vm1236 = vcmp.eq.s32.totalorder %v1126, 15
      %vm1237 = vcmp.eq.s32.totalorder %v1127, 15
      %vm1238 = vcmp.eq.s32.totalorder %v1128, 15
      %vm1239 = vcmp.eq.s32.totalorder %v1129, 15
      %v1240 = vsel %vm1220, 1, 0
      %v1241 = vsel %vm1221, 1, 0
      %v1242 = vsel %vm1222, 1, 0
      %v1243 = vsel %vm1223, 1, 0
      %v1244 = vsel %vm1224, 1, 0
      %v1245 = vsel %vm1225, 1, 0
      %v1246 = vsel %vm1226, 1, 0
      %v1247 = vsel %vm1227, 1, 0
      %v1248 = vsel %vm1228, 1, 0
      %v1249 = vsel %vm1229, 1, 0
      %v1250 = vsel %vm1230, 1, 0
      %v1251 = vsel %vm1231, 1, 0
      %v1252 = vsel %vm1232, 1, 0
      %v1253 = vsel %vm1233, 1, 0
      %v1254 = vsel %vm1234, 1, 0
      %v1255 = vsel %vm1235, 1, 0
      %v1256 = vsel %vm1236, 1, 0
      %v1257 = vsel %vm1237, 1, 0
      %v1258 = vsel %vm1238, 1, 0
      %v1259 = vsel %vm1239, 1, 0
      %vm1260 = vcmp.eq.s32.totalorder %v1240, 1
      %vm1261 = vcmp.eq.s32.totalorder %v1241, 1
      %vm1262 = vcmp.eq.s32.totalorder %v1242, 1
      %vm1263 = vcmp.eq.s32.totalorder %v1243, 1
      %vm1264 = vcmp.eq.s32.totalorder %v1244, 1
      %vm1265 = vcmp.eq.s32.totalorder %v1245, 1
      %vm1266 = vcmp.eq.s32.totalorder %v1246, 1
      %vm1267 = vcmp.eq.s32.totalorder %v1247, 1
      %vm1268 = vcmp.eq.s32.totalorder %v1248, 1
      %vm1269 = vcmp.eq.s32.totalorder %v1249, 1
      %vm1270 = vcmp.eq.s32.totalorder %v1250, 1
      %vm1271 = vcmp.eq.s32.totalorder %v1251, 1
      %vm1272 = vcmp.eq.s32.totalorder %v1252, 1
      %vm1273 = vcmp.eq.s32.totalorder %v1253, 1
      %vm1274 = vcmp.eq.s32.totalorder %v1254, 1
      %vm1275 = vcmp.eq.s32.totalorder %v1255, 1
      %vm1276 = vcmp.eq.s32.totalorder %v1256, 1
      %vm1277 = vcmp.eq.s32.totalorder %v1257, 1
      %vm1278 = vcmp.eq.s32.totalorder %v1258, 1
      %vm1279 = vcmp.eq.s32.totalorder %v1259, 1
      %v1280 = vsel %vm1260, 0.0, %v811
      %v1281 = vsel %vm1261, 0.0, %v813
      %v1282 = vsel %vm1262, 0.0, %v815
      %v1283 = vsel %vm1263, 0.0, %v817
      %v1284 = vsel %vm1264, 0.0, %v819
      %v1285 = vsel %vm1265, 0.0, %v821
      %v1286 = vsel %vm1266, 0.0, %v823
      %v1287 = vsel %vm1267, 0.0, %v825
      %v1288 = vsel %vm1268, 0.0, %v827
      %v1289 = vsel %vm1269, 0.0, %v829
      %v1290 = vsel %vm1270, 0.0, %v831
      %v1291 = vsel %vm1271, 0.0, %v833
      %v1292 = vsel %vm1272, 0.0, %v835
      %v1293 = vsel %vm1273, 0.0, %v837
      %v1294 = vsel %vm1274, 0.0, %v839
      %v1295 = vsel %vm1275, 0.0, %v841
      %v1296 = vsel %vm1276, 0.0, %v843
      %v1297 = vsel %vm1277, 0.0, %v845
      %v1298 = vsel %vm1278, 0.0, %v847
      %v1299 = vsel %vm1279, 0.0, %v868
      %v1300 = vpack.c.bf16 %v1281, %v1280
      %v1301 = vpack.c.bf16 %v1283, %v1282
      %v1302 = vpack.c.bf16 %v1285, %v1284
      %v1303 = vpack.c.bf16 %v1287, %v1286
      %v1304 = vpack.c.bf16 %v1289, %v1288
      %v1305 = vpack.c.bf16 %v1291, %v1290
      %v1306 = vpack.c.bf16 %v1293, %v1292
      %v1307 = vpack.c.bf16 %v1295, %v1294
      %v1308 = vpack.c.bf16 %v1297, %v1296
      %v1309 = vpack.c.bf16 %v1299, %v1298
      %v1310 = vpack.c.bf16 %v522, %v521
      %v1311 = vpack.c.bf16 %v712, %v711
      %v1312 = vpack.c.bf16 %v714, %v713
      %v1313 = vpack.c.bf16 %v716, %v715
      %v1314 = vpack.c.bf16 %v718, %v717
      %v1315 = vpack.c.bf16 %v720, %v719
      %v1316 = vpack.c.bf16 %v722, %v721
      %v1317 = vpack.c.bf16 %v724, %v723
      %v1318 = vpack.c.bf16 %v726, %v725
      %v1319 = vpack.c.bf16 %v550, %v549
      %1330 = vrot.lane.b32.xlu0 %v1310, 32
      %v1331 = vpop.permute.xlu0 %1330
      %1332 = vrot.lane.b32.xlu0 %v1311, 32
      %v1333 = vpop.permute.xlu0 %1332
      %1334 = vrot.lane.b32.xlu0 %v1312, 32
      %v1335 = vpop.permute.xlu0 %1334
      %1336 = vrot.lane.b32.xlu0 %v1313, 32
      %v1337 = vpop.permute.xlu0 %1336
      %1338 = vrot.lane.b32.xlu0 %v1314, 32
      %v1339 = vpop.permute.xlu0 %1338
      %1340 = vrot.lane.b32.xlu0 %v1315, 32
      %v1341 = vpop.permute.xlu0 %1340
      %1342 = vrot.lane.b32.xlu0 %v1316, 32
      %v1343 = vpop.permute.xlu0 %1342
      %1344 = vrot.lane.b32.xlu0 %v1317, 32
      %v1345 = vpop.permute.xlu0 %1344
      %1346 = vrot.lane.b32.xlu0 %v1318, 32
      %v1347 = vpop.permute.xlu0 %1346
      %1348 = vrot.lane.b32.xlu0 %v1319, 32
      %v1349 = vpop.permute.xlu0 %1348
      %1360 = vrot.lane.b32.xlu0 %v1300, 64
      %v1361 = vpop.permute.xlu0 %1360
      %1362 = vrot.lane.b32.xlu0 %v1301, 64
      %v1363 = vpop.permute.xlu0 %1362
      %1364 = vrot.lane.b32.xlu0 %v1302, 64
      %v1365 = vpop.permute.xlu0 %1364
      %1366 = vrot.lane.b32.xlu0 %v1303, 64
      %v1367 = vpop.permute.xlu0 %1366
      %1368 = vrot.lane.b32.xlu0 %v1304, 64
      %v1369 = vpop.permute.xlu0 %1368
      %1370 = vrot.lane.b32.xlu0 %v1305, 64
      %v1371 = vpop.permute.xlu0 %1370
      %1372 = vrot.lane.b32.xlu0 %v1306, 64
      %v1373 = vpop.permute.xlu0 %1372
      %1374 = vrot.lane.b32.xlu0 %v1307, 64
      %v1375 = vpop.permute.xlu0 %1374
      %1376 = vrot.lane.b32.xlu0 %v1308, 64
      %v1377 = vpop.permute.xlu0 %1376
      %1378 = vrot.lane.b32.xlu0 %v1309, 64
      %v1379 = vpop.permute.xlu0 %1378
      %vm1380 = vcmask 261120
      %v1383 = vsel %vm1380, %v1210, %v1331
      %v1386 = vsel %vm1380, %v1211, %v1333
      %v1389 = vsel %vm1380, %v1212, %v1335
      %v1392 = vsel %vm1380, %v1213, %v1337
      %v1395 = vsel %vm1380, %v1214, %v1339
      %v1398 = vsel %vm1380, %v1215, %v1341
      %v1401 = vsel %vm1380, %v1216, %v1343
      %v1404 = vsel %vm1380, %v1217, %v1345
      %v1407 = vsel %vm1380, %v1218, %v1347
      %v1410 = vsel %vm1380, %v1219, %v1349
      %vm1411 = vcmask 523264
      %v1413 = vsel %vm1411, %v1383, %v1361
      %v1415 = vsel %vm1411, %v1386, %v1363
      %v1417 = vsel %vm1411, %v1389, %v1365
      %v1419 = vsel %vm1411, %v1392, %v1367
      %v1421 = vsel %vm1411, %v1395, %v1369
      %v1423 = vsel %vm1411, %v1398, %v1371
      %v1425 = vsel %vm1411, %v1401, %v1373
      %v1427 = vsel %vm1411, %v1404, %v1375
      %v1429 = vsel %vm1411, %v1407, %v1377
      %v1431 = vsel %vm1411, %v1410, %v1379
      %v1432 = vld [vmem:[%s4] sm:$0xf]
      %v1433 = vld [vmem:[%s4 + $0x4] sm:$0xf]
      %v1434 = vld [vmem:[%s4 + $0x8] sm:$0xf]
      %v1435 = vld [vmem:[%s4 + $0xc] sm:$0xf]
      %v1436 = vld [vmem:[%s4 + $0x10] sm:$0xf]
      %v1437 = vld [vmem:[%s4 + $0x14] sm:$0xf]
      %v1438 = vld [vmem:[%s4 + $0x18] sm:$0xf]
      %v1439 = vld [vmem:[%s4 + $0x1c] sm:$0xf]
      %v1440 = vld [vmem:[%s4 + $0x20] sm:$0xf]
      %v1441 = vld [vmem:[%s4 + $0x24] sm:$0xf]
      %v1442 = vld [vmem:[%s4 + $0x28] sm:$0xf]
      %v1443 = vld [vmem:[%s4 + $0x2c] sm:$0xf]
      %s1444 = scalar_lea.vmem %s4, 48
      %v1445 = vld [vmem:[%s1444] sm:$0xf]
      %v1446 = vld [vmem:[%s1444 + $0x4] sm:$0xf]
      %v1447 = vld [vmem:[%s1444 + $0x8] sm:$0xf]
      %v1448 = vld [vmem:[%s1444 + $0xc] sm:$0xf]
      %v1449 = vld [vmem:[%s1444 + $0x10] sm:$0xf]
      %v1450 = vld [vmem:[%s1444 + $0x14] sm:$0xf]
      %v1451 = vld [vmem:[%s1444 + $0x18] sm:$0xf]
      %v1452 = vld [vmem:[%s1444 + $0x1c] sm:$0xf]
      %v1453 = vld [vmem:[%s1444 + $0x20] sm:$0xf]
      %v1454 = vld [vmem:[%s1444 + $0x24] sm:$0xf]
      %v1455 = vld [vmem:[%s1444 + $0x28] sm:$0xf]
      %v1456 = vld [vmem:[%s1444 + $0x2c] sm:$0xf]
      %v1469 = vunpack.c.l.b16 %v1445
      %v1470 = vunpack.c.l.b16 %v1446
      %v1471 = vunpack.c.l.b16 %v1447
      %v1472 = vunpack.c.l.b16 %v1448
      %v1473 = vunpack.c.l.b16 %v1449
      %v1474 = vunpack.c.l.b16 %v1450
      %v1475 = vunpack.c.l.b16 %v1451
      %v1476 = vunpack.c.l.b16 %v1452
      %v1477 = vunpack.c.l.b16 %v1453
      %v1478 = vunpack.c.l.b16 %v1454
      %v1479 = vunpack.c.l.b16 %v1455
      %v1480 = vunpack.c.l.b16 %v1456
      %v1481 = vpack.c.b16 %v1470, %v1469
      %v1482 = vpack.c.b16 %v1472, %v1471
      %v1483 = vpack.c.b16 %v1474, %v1473
      %v1484 = vpack.c.b16 %v1476, %v1475
      %v1485 = vpack.c.b16 %v1478, %v1477
      %v1486 = vpack.c.b16 %v1480, %v1479
      %vm1493 = vcmask 785408
      %v1494 = vsel %vm1493, %v1415, 0
      %v1496 = vsel %vm1493, %v1417, 0
      %v1498 = vsel %vm1493, %v1419, 0
      %v1500 = vsel %vm1493, %v1421, 0
      %v1502 = vsel %vm1493, %v1423, 0
      %v1504 = vsel %vm1493, %v1425, 0
      %v1506 = vsel %vm1493, %v1427, 0
      %v1508 = vsel %vm1493, %v1429, 0
      %1510 = vmatprep.subr.bf16.mxu0 0
      %1511 = vmatpush1.bf16.msra.mxu0 %v1481
      %1512 = vmatprep.subr.bf16.mxu0 0
      %1513 = vmatpush1.bf16.msra.mxu0 %v1482
      %1514 = vmatprep.subr.bf16.mxu0 0
      %1515 = vmatpush1.bf16.msra.mxu0 %v1483
      %1516 = vmatprep.subr.bf16.mxu0 0
      %1517 = vmatpush1.bf16.msra.mxu0 %v1484
      %1518 = vmatprep.subr.bf16.mxu0 0
      %1519 = vmatpush1.bf16.msra.mxu0 %v1485
      %1520 = vmatprep.subr.bf16.mxu0 0
      %1521 = vmatpush1.bf16.msra.mxu0 %v1486
      %1522 = vmatprep.subr.bf16.mxu0 0
      %1523 = vmatpush1.bf16.msra.mxu0 0
      %1524 = vmatprep.subr.bf16.mxu0 0
      %1525 = vmatpush1.bf16.msra.mxu0 0
      %1526 = vmatprep.subr.bf16.mxu0 0
      %1527 = vmatpush1.bf16.msra.mxu0 0
      %1528 = vmatprep.subr.bf16.mxu0 0
      %1529 = vmatpush1.bf16.msra.mxu0 0
      %1530 = vmatprep.subr.bf16.mxu0 0
      %1531 = vmatpush1.bf16.msra.mxu0 0
      %1532 = vmatprep.subr.bf16.mxu0 0
      %1533 = vmatpush1.bf16.msra.mxu0 0
      %1534 = vmatprep.subr.bf16.mxu0 0
      %1535 = vmatpush1.bf16.msra.mxu0 0
      %1536 = vmatprep.subr.bf16.mxu0 0
      %1537 = vmatpush1.bf16.msra.mxu0 0
      %1538 = vmatprep.subr.bf16.mxu0 0
      %1539 = vmatpush1.bf16.msra.mxu0 0
      %1540 = vmatprep.subr.bf16.mxu0 0
      %1541 = vmatpush1.bf16.msra.mxu0 0
      %1542 = vmatprep.mubr.bf16.mxu0 0
      %1543 = vmatmul.mubr.bf16.gmra.mrb[0].mxu0 %v1494
      %v1544 = vpop.f32.mrb[0].mxu0
      %v1545 = vadd.f32 0.0, %v1544
      %v1546 = vpop.f32.mrb[0].mxu0
      %v1547 = vpop.f32.mrb[0].mxu0
      %v1548 = vadd.f32 0.0, %v1547
      %v1549 = vpop.f32.mrb[0].mxu0
      %1550 = vmatprep.mubr.bf16.mxu0 0
      %1551 = vmatmul.mubr.bf16.gmra.mrb[0].mxu0 %v1496
      %v1552 = vpop.f32.mrb[0].mxu0
      %v1553 = vadd.f32 0.0, %v1552
      %v1554 = vpop.f32.mrb[0].mxu0
      %v1555 = vpop.f32.mrb[0].mxu0
      %v1556 = vadd.f32 0.0, %v1555
      %v1557 = vpop.f32.mrb[0].mxu0
      %1558 = vmatprep.mubr.bf16.mxu0 0
      %1559 = vmatmul.mubr.bf16.gmra.mrb[0].mxu0 %v1498
      %v1560 = vpop.f32.mrb[0].mxu0
      %v1561 = vadd.f32 0.0, %v1560
      %v1562 = vpop.f32.mrb[0].mxu0
      %v1563 = vpop.f32.mrb[0].mxu0
      %v1564 = vadd.f32 0.0, %v1563
      %v1565 = vpop.f32.mrb[0].mxu0
      %1566 = vmatprep.mubr.bf16.mxu0 0
      %1567 = vmatmul.mubr.bf16.gmra.mrb[0].mxu0 %v1500
      %v1568 = vpop.f32.mrb[0].mxu0
      %v1569 = vadd.f32 0.0, %v1568
      %v1570 = vpop.f32.mrb[0].mxu0
      %v1571 = vpop.f32.mrb[0].mxu0
      %v1572 = vadd.f32 0.0, %v1571
      %v1573 = vpop.f32.mrb[0].mxu0
      %1574 = vmatprep.mubr.bf16.mxu0 0
      %1575 = vmatmul.mubr.bf16.gmra.mrb[0].mxu0 %v1502
      %v1576 = vpop.f32.mrb[0].mxu0
      %v1577 = vadd.f32 0.0, %v1576
      %v1578 = vpop.f32.mrb[0].mxu0
      %v1579 = vpop.f32.mrb[0].mxu0
      %v1580 = vadd.f32 0.0, %v1579
      %v1581 = vpop.f32.mrb[0].mxu0
      %1582 = vmatprep.mubr.bf16.mxu0 0
      %1583 = vmatmul.mubr.bf16.gmra.mrb[0].mxu0 %v1504
      %v1584 = vpop.f32.mrb[0].mxu0
      %v1585 = vadd.f32 0.0, %v1584
      %v1586 = vpop.f32.mrb[0].mxu0
      %v1587 = vpop.f32.mrb[0].mxu0
      %v1588 = vadd.f32 0.0, %v1587
      %v1589 = vpop.f32.mrb[0].mxu0
      %1590 = vmatprep.mubr.bf16.mxu0 0
      %1591 = vmatmul.mubr.bf16.gmra.mrb[0].mxu0 %v1506
      %v1592 = vpop.f32.mrb[0].mxu0
      %v1593 = vadd.f32 0.0, %v1592
      %v1594 = vpop.f32.mrb[0].mxu0
      %v1595 = vpop.f32.mrb[0].mxu0
      %v1596 = vadd.f32 0.0, %v1595
      %v1597 = vpop.f32.mrb[0].mxu0
      %1598 = vmatprep.mubr.bf16.mxu0 0
      %1599 = vmatmul.mubr.bf16.gmra.mrb[0].mxu0 %v1508
      %v1600 = vpop.f32.mrb[0].mxu0
      %v1601 = vadd.f32 0.0, %v1600
      %v1602 = vpop.f32.mrb[0].mxu0
      %v1603 = vpop.f32.mrb[0].mxu0
      %v1604 = vadd.f32 0.0, %v1603
      %v1605 = vpop.f32.mrb[0].mxu0
      %1606 = vdwg.mxu0
      %v1619 = vunpack.c.l.b16 %v1432
      %v1620 = vunpack.c.l.b16 %v1433
      %v1621 = vunpack.c.l.b16 %v1434
      %v1622 = vunpack.c.l.b16 %v1435
      %v1623 = vunpack.c.l.b16 %v1436
      %v1624 = vunpack.c.l.b16 %v1437
      %v1625 = vunpack.c.l.b16 %v1438
      %v1626 = vunpack.c.l.b16 %v1439
      %v1627 = vunpack.c.l.b16 %v1440
      %v1628 = vunpack.c.l.b16 %v1441
      %v1629 = vunpack.c.l.b16 %v1442
      %v1630 = vunpack.c.l.b16 %v1443
      %v1631 = vpack.c.b16 %v1620, %v1619
      %v1632 = vpack.c.b16 %v1622, %v1621
      %v1633 = vpack.c.b16 %v1624, %v1623
      %v1634 = vpack.c.b16 %v1626, %v1625
      %v1635 = vpack.c.b16 %v1628, %v1627
      %v1636 = vpack.c.b16 %v1630, %v1629
      %v1643 = vsel %vm1493, %v1413, 0
      %1645 = vmatprep.subr.bf16.mxu0 0
      %1646 = vmatpush1.bf16.msra.mxu0 %v1631
      %1647 = vmatprep.subr.bf16.mxu0 0
      %1648 = vmatpush1.bf16.msra.mxu0 %v1632
      %1649 = vmatprep.subr.bf16.mxu0 0
      %1650 = vmatpush1.bf16.msra.mxu0 %v1633
      %1651 = vmatprep.subr.bf16.mxu0 0
      %1652 = vmatpush1.bf16.msra.mxu0 %v1634
      %1653 = vmatprep.subr.bf16.mxu0 0
      %1654 = vmatpush1.bf16.msra.mxu0 %v1635
      %1655 = vmatprep.subr.bf16.mxu0 0
      %1656 = vmatpush1.bf16.msra.mxu0 %v1636
      %1657 = vmatprep.subr.bf16.mxu0 0
      %1658 = vmatpush1.bf16.msra.mxu0 0
      %1659 = vmatprep.subr.bf16.mxu0 0
      %1660 = vmatpush1.bf16.msra.mxu0 0
      %1661 = vmatprep.subr.bf16.mxu0 0
      %1662 = vmatpush1.bf16.msra.mxu0 0
      %1663 = vmatprep.subr.bf16.mxu0 0
      %1664 = vmatpush1.bf16.msra.mxu0 0
      %1665 = vmatprep.subr.bf16.mxu0 0
      %1666 = vmatpush1.bf16.msra.mxu0 0
      %1667 = vmatprep.subr.bf16.mxu0 0
      %1668 = vmatpush1.bf16.msra.mxu0 0
      %1669 = vmatprep.subr.bf16.mxu0 0
      %1670 = vmatpush1.bf16.msra.mxu0 0
      %1671 = vmatprep.subr.bf16.mxu0 0
      %1672 = vmatpush1.bf16.msra.mxu0 0
      %1673 = vmatprep.subr.bf16.mxu0 0
      %1674 = vmatpush1.bf16.msra.mxu0 0
      %1675 = vmatprep.subr.bf16.mxu0 0
      %1676 = vmatpush1.bf16.msra.mxu0 0
      %1677 = vmatprep.mubr.bf16.mxu0 0
      %1678 = vmatmul.mubr.bf16.gmra.mrb[0].mxu0 %v1643
      %v1679 = vpop.f32.mrb[0].mxu0
      %v1680 = vadd.f32 %v1545, %v1679
      %v1681 = vpop.f32.mrb[0].mxu0
      %v1682 = vpop.f32.mrb[0].mxu0
      %v1683 = vadd.f32 %v1548, %v1682
      %v1684 = vpop.f32.mrb[0].mxu0
      %1685 = vmatprep.mubr.bf16.mxu0 0
      %1686 = vmatmul.mubr.bf16.gmra.mrb[0].mxu0 %v1494
      %v1687 = vpop.f32.mrb[0].mxu0
      %v1688 = vadd.f32 %v1553, %v1687
      %v1689 = vpop.f32.mrb[0].mxu0
      %v1690 = vpop.f32.mrb[0].mxu0
      %v1691 = vadd.f32 %v1556, %v1690
      %v1692 = vpop.f32.mrb[0].mxu0
      %1693 = vmatprep.mubr.bf16.mxu0 0
      %1694 = vmatmul.mubr.bf16.gmra.mrb[0].mxu0 %v1496
      %v1695 = vpop.f32.mrb[0].mxu0
      %v1696 = vadd.f32 %v1561, %v1695
      %v1697 = vpop.f32.mrb[0].mxu0
      %v1698 = vpop.f32.mrb[0].mxu0
      %v1699 = vadd.f32 %v1564, %v1698
      %v1700 = vpop.f32.mrb[0].mxu0
      %1701 = vmatprep.mubr.bf16.mxu0 0
      %1702 = vmatmul.mubr.bf16.gmra.mrb[0].mxu0 %v1498
      %v1703 = vpop.f32.mrb[0].mxu0
      %v1704 = vadd.f32 %v1569, %v1703
      %v1705 = vpop.f32.mrb[0].mxu0
      %v1706 = vpop.f32.mrb[0].mxu0
      %v1707 = vadd.f32 %v1572, %v1706
      %v1708 = vpop.f32.mrb[0].mxu0
      %1709 = vmatprep.mubr.bf16.mxu0 0
      %1710 = vmatmul.mubr.bf16.gmra.mrb[0].mxu0 %v1500
      %v1711 = vpop.f32.mrb[0].mxu0
      %v1712 = vadd.f32 %v1577, %v1711
      %v1713 = vpop.f32.mrb[0].mxu0
      %v1714 = vpop.f32.mrb[0].mxu0
      %v1715 = vadd.f32 %v1580, %v1714
      %v1716 = vpop.f32.mrb[0].mxu0
      %1717 = vmatprep.mubr.bf16.mxu0 0
      %1718 = vmatmul.mubr.bf16.gmra.mrb[0].mxu0 %v1502
      %v1719 = vpop.f32.mrb[0].mxu0
      %v1720 = vadd.f32 %v1585, %v1719
      %v1721 = vpop.f32.mrb[0].mxu0
      %v1722 = vpop.f32.mrb[0].mxu0
      %v1723 = vadd.f32 %v1588, %v1722
      %v1724 = vpop.f32.mrb[0].mxu0
      %1725 = vmatprep.mubr.bf16.mxu0 0
      %1726 = vmatmul.mubr.bf16.gmra.mrb[0].mxu0 %v1504
      %v1727 = vpop.f32.mrb[0].mxu0
      %v1728 = vadd.f32 %v1593, %v1727
      %v1729 = vpop.f32.mrb[0].mxu0
      %v1730 = vpop.f32.mrb[0].mxu0
      %v1731 = vadd.f32 %v1596, %v1730
      %v1732 = vpop.f32.mrb[0].mxu0
      %1733 = vmatprep.mubr.bf16.mxu0 0
      %1734 = vmatmul.mubr.bf16.gmra.mrb[0].mxu0 %v1506
      %v1735 = vpop.f32.mrb[0].mxu0
      %v1736 = vadd.f32 %v1601, %v1735
      %v1737 = vpop.f32.mrb[0].mxu0
      %v1738 = vpop.f32.mrb[0].mxu0
      %v1739 = vadd.f32 %v1604, %v1738
      %v1740 = vpop.f32.mrb[0].mxu0
      %1741 = vdwg.mxu0
      %s1742 = scalar_lea.vmem %s4, 96
      %v1743 = vld [vmem:[%s1742] sm:$0xf]
      %v1744 = vld [vmem:[%s1742 + $0x4] sm:$0xf]
      %v1745 = vld [vmem:[%s1742 + $0x8] sm:$0xf]
      %v1746 = vld [vmem:[%s1742 + $0xc] sm:$0xf]
      %v1747 = vld [vmem:[%s1742 + $0x10] sm:$0xf]
      %v1748 = vld [vmem:[%s1742 + $0x14] sm:$0xf]
      %v1749 = vld [vmem:[%s1742 + $0x18] sm:$0xf]
      %v1750 = vld [vmem:[%s1742 + $0x1c] sm:$0xf]
      %v1751 = vld [vmem:[%s1742 + $0x20] sm:$0xf]
      %v1752 = vld [vmem:[%s1742 + $0x24] sm:$0xf]
      %v1753 = vld [vmem:[%s1742 + $0x28] sm:$0xf]
      %v1754 = vld [vmem:[%s1742 + $0x2c] sm:$0xf]
      %v1767 = vunpack.c.l.b16 %v1743
      %v1768 = vunpack.c.l.b16 %v1744
      %v1769 = vunpack.c.l.b16 %v1745
      %v1770 = vunpack.c.l.b16 %v1746
      %v1771 = vunpack.c.l.b16 %v1747
      %v1772 = vunpack.c.l.b16 %v1748
      %v1773 = vunpack.c.l.b16 %v1749
      %v1774 = vunpack.c.l.b16 %v1750
      %v1775 = vunpack.c.l.b16 %v1751
      %v1776 = vunpack.c.l.b16 %v1752
      %v1777 = vunpack.c.l.b16 %v1753
      %v1778 = vunpack.c.l.b16 %v1754
      %v1779 = vpack.c.b16 %v1768, %v1767
      %v1780 = vpack.c.b16 %v1770, %v1769
      %v1781 = vpack.c.b16 %v1772, %v1771
      %v1782 = vpack.c.b16 %v1774, %v1773
      %v1783 = vpack.c.b16 %v1776, %v1775
      %v1784 = vpack.c.b16 %v1778, %v1777
      %v1791 = vsel %vm1493, %v1431, 0
      %1793 = vmatprep.subr.bf16.mxu0 0
      %1794 = vmatpush1.bf16.msra.mxu0 %v1779
      %1795 = vmatprep.subr.bf16.mxu0 0
      %1796 = vmatpush1.bf16.msra.mxu0 %v1780
      %1797 = vmatprep.subr.bf16.mxu0 0
      %1798 = vmatpush1.bf16.msra.mxu0 %v1781
      %1799 = vmatprep.subr.bf16.mxu0 0
      %1800 = vmatpush1.bf16.msra.mxu0 %v1782
      %1801 = vmatprep.subr.bf16.mxu0 0
      %1802 = vmatpush1.bf16.msra.mxu0 %v1783
      %1803 = vmatprep.subr.bf16.mxu0 0
      %1804 = vmatpush1.bf16.msra.mxu0 %v1784
      %1805 = vmatprep.subr.bf16.mxu0 0
      %1806 = vmatpush1.bf16.msra.mxu0 0
      %1807 = vmatprep.subr.bf16.mxu0 0
      %1808 = vmatpush1.bf16.msra.mxu0 0
      %1809 = vmatprep.subr.bf16.mxu0 0
      %1810 = vmatpush1.bf16.msra.mxu0 0
      %1811 = vmatprep.subr.bf16.mxu0 0
      %1812 = vmatpush1.bf16.msra.mxu0 0
      %1813 = vmatprep.subr.bf16.mxu0 0
      %1814 = vmatpush1.bf16.msra.mxu0 0
      %1815 = vmatprep.subr.bf16.mxu0 0
      %1816 = vmatpush1.bf16.msra.mxu0 0
      %1817 = vmatprep.subr.bf16.mxu0 0
      %1818 = vmatpush1.bf16.msra.mxu0 0
      %1819 = vmatprep.subr.bf16.mxu0 0
      %1820 = vmatpush1.bf16.msra.mxu0 0
      %1821 = vmatprep.subr.bf16.mxu0 0
      %1822 = vmatpush1.bf16.msra.mxu0 0
      %1823 = vmatprep.subr.bf16.mxu0 0
      %1824 = vmatpush1.bf16.msra.mxu0 0
      %1825 = vmatprep.mubr.bf16.mxu0 0
      %1826 = vmatmul.mubr.bf16.gmra.mrb[0].mxu0 %v1496
      %v1827 = vpop.f32.mrb[0].mxu0
      %v1828 = vadd.f32 0.0, %v1827
      %v1829 = vpop.f32.mrb[0].mxu0
      %v1830 = vpop.f32.mrb[0].mxu0
      %v1831 = vadd.f32 0.0, %v1830
      %v1832 = vpop.f32.mrb[0].mxu0
      %1833 = vmatprep.mubr.bf16.mxu0 0
      %1834 = vmatmul.mubr.bf16.gmra.mrb[0].mxu0 %v1498
      %v1835 = vpop.f32.mrb[0].mxu0
      %v1836 = vadd.f32 0.0, %v1835
      %v1837 = vpop.f32.mrb[0].mxu0
      %v1838 = vpop.f32.mrb[0].mxu0
      %v1839 = vadd.f32 0.0, %v1838
      %v1840 = vpop.f32.mrb[0].mxu0
      %1841 = vmatprep.mubr.bf16.mxu0 0
      %1842 = vmatmul.mubr.bf16.gmra.mrb[0].mxu0 %v1500
      %v1843 = vpop.f32.mrb[0].mxu0
      %v1844 = vadd.f32 0.0, %v1843
      %v1845 = vpop.f32.mrb[0].mxu0
      %v1846 = vpop.f32.mrb[0].mxu0
      %v1847 = vadd.f32 0.0, %v1846
      %v1848 = vpop.f32.mrb[0].mxu0
      %1849 = vmatprep.mubr.bf16.mxu0 0
      %1850 = vmatmul.mubr.bf16.gmra.mrb[0].mxu0 %v1502
      %v1851 = vpop.f32.mrb[0].mxu0
      %v1852 = vadd.f32 0.0, %v1851
      %v1853 = vpop.f32.mrb[0].mxu0
      %v1854 = vpop.f32.mrb[0].mxu0
      %v1855 = vadd.f32 0.0, %v1854
      %v1856 = vpop.f32.mrb[0].mxu0
      %1857 = vmatprep.mubr.bf16.mxu0 0
      %1858 = vmatmul.mubr.bf16.gmra.mrb[0].mxu0 %v1504
      %v1859 = vpop.f32.mrb[0].mxu0
      %v1860 = vadd.f32 0.0, %v1859
      %v1861 = vpop.f32.mrb[0].mxu0
      %v1862 = vpop.f32.mrb[0].mxu0
      %v1863 = vadd.f32 0.0, %v1862
      %v1864 = vpop.f32.mrb[0].mxu0
      %1865 = vmatprep.mubr.bf16.mxu0 0
      %1866 = vmatmul.mubr.bf16.gmra.mrb[0].mxu0 %v1506
      %v1867 = vpop.f32.mrb[0].mxu0
      %v1868 = vadd.f32 0.0, %v1867
      %v1869 = vpop.f32.mrb[0].mxu0
      %v1870 = vpop.f32.mrb[0].mxu0
      %v1871 = vadd.f32 0.0, %v1870
      %v1872 = vpop.f32.mrb[0].mxu0
      %1873 = vmatprep.mubr.bf16.mxu0 0
      %1874 = vmatmul.mubr.bf16.gmra.mrb[0].mxu0 %v1508
      %v1875 = vpop.f32.mrb[0].mxu0
      %v1876 = vadd.f32 0.0, %v1875
      %v1877 = vpop.f32.mrb[0].mxu0
      %v1878 = vpop.f32.mrb[0].mxu0
      %v1879 = vadd.f32 0.0, %v1878
      %v1880 = vpop.f32.mrb[0].mxu0
      %1881 = vmatprep.mubr.bf16.mxu0 0
      %1882 = vmatmul.mubr.bf16.gmra.mrb[0].mxu0 %v1791
      %v1883 = vpop.f32.mrb[0].mxu0
      %v1884 = vadd.f32 0.0, %v1883
      %v1885 = vpop.f32.mrb[0].mxu0
      %v1886 = vpop.f32.mrb[0].mxu0
      %v1887 = vadd.f32 0.0, %v1886
      %v1888 = vpop.f32.mrb[0].mxu0
      %1889 = vdwg.mxu0
      %v1890 = vadd.f32 %v1680, %v1828
      %v1891 = vadd.f32 %v1683, %v1831
      %v1892 = vadd.f32 %v1688, %v1836
      %v1893 = vadd.f32 %v1691, %v1839
      %v1894 = vadd.f32 %v1696, %v1844
      %v1895 = vadd.f32 %v1699, %v1847
      %v1896 = vadd.f32 %v1704, %v1852
      %v1897 = vadd.f32 %v1707, %v1855
      %v1898 = vadd.f32 %v1712, %v1860
      %v1899 = vadd.f32 %v1715, %v1863
      %v1900 = vadd.f32 %v1720, %v1868
      %v1901 = vadd.f32 %v1723, %v1871
      %v1902 = vadd.f32 %v1728, %v1876
      %v1903 = vadd.f32 %v1731, %v1879
      %v1904 = vadd.f32 %v1736, %v1884
      %v1905 = vadd.f32 %v1739, %v1887
      %v1906 = vld [vmem:[%s5] sm:$0x1]
      %v1908 = vlaneseq
      %v1909 = vshrl.u32 %v1908, 7
      %v1910 = vsub.s32 0, %v1909
      %v1911 = vrot.slane %v1906, %v1910
      %v1913 = vadd.f32 %v1890, %v1911
      %v1914 = vadd.f32 %v1891, %v1911
      %v1915 = vadd.f32 %v1892, %v1911
      %v1916 = vadd.f32 %v1893, %v1911
      %v1917 = vadd.f32 %v1894, %v1911
      %v1918 = vadd.f32 %v1895, %v1911
      %v1919 = vadd.f32 %v1896, %v1911
      %v1920 = vadd.f32 %v1897, %v1911
      %v1921 = vadd.f32 %v1898, %v1911
      %v1922 = vadd.f32 %v1899, %v1911
      %v1923 = vadd.f32 %v1900, %v1911
      %v1924 = vadd.f32 %v1901, %v1911
      %v1925 = vadd.f32 %v1902, %v1911
      %v1926 = vadd.f32 %v1903, %v1911
      %v1927 = vadd.f32 %v1904, %v1911
      %v1928 = vadd.f32 %v1905, %v1911
      %v1929 = vpack.c.bf16 %v1914, %v1913
      %v1930 = vpack.c.bf16 %v1916, %v1915
      %v1931 = vpack.c.bf16 %v1918, %v1917
      %v1932 = vpack.c.bf16 %v1920, %v1919
      %v1933 = vpack.c.bf16 %v1922, %v1921
      %v1934 = vpack.c.bf16 %v1924, %v1923
      %v1935 = vpack.c.bf16 %v1926, %v1925
      %v1936 = vpack.c.bf16 %v1928, %v1927
      %v1945 = vunpack.c.l.b16 %v1929
      %v1946 = vunpack.c.h.b16 %v1929
      %v1947 = vunpack.c.l.b16 %v1930
      %v1948 = vunpack.c.h.b16 %v1930
      %v1949 = vunpack.c.l.b16 %v1931
      %v1950 = vunpack.c.h.b16 %v1931
      %v1951 = vunpack.c.l.b16 %v1932
      %v1952 = vunpack.c.h.b16 %v1932
      %v1953 = vunpack.c.l.b16 %v1933
      %v1954 = vunpack.c.h.b16 %v1933
      %v1955 = vunpack.c.l.b16 %v1934
      %v1956 = vunpack.c.h.b16 %v1934
      %v1957 = vunpack.c.l.b16 %v1935
      %v1958 = vunpack.c.h.b16 %v1935
      %v1959 = vunpack.c.l.b16 %v1936
      %v1960 = vunpack.c.h.b16 %v1936
      %v1961 = vpack.c.b16 %v1945, %v1945
      %v1962 = vpack.c.b16 %v1946, %v1946
      %v1963 = vpack.c.b16 %v1947, %v1947
      %v1964 = vpack.c.b16 %v1948, %v1948
      %v1965 = vpack.c.b16 %v1949, %v1949
      %v1966 = vpack.c.b16 %v1950, %v1950
      %v1967 = vpack.c.b16 %v1951, %v1951
      %v1968 = vpack.c.b16 %v1952, %v1952
      %v1969 = vpack.c.b16 %v1953, %v1953
      %v1970 = vpack.c.b16 %v1954, %v1954
      %v1971 = vpack.c.b16 %v1955, %v1955
      %v1972 = vpack.c.b16 %v1956, %v1956
      %v1973 = vpack.c.b16 %v1957, %v1957
      %v1974 = vpack.c.b16 %v1958, %v1958
      %v1975 = vpack.c.b16 %v1959, %v1959
      %v1976 = vpack.c.b16 %v1960, %v1960
      %vm1993 = vcmask 519168
      %1994 = vst.msk [vmem:[%s474] sm:$0xf] %vm1993, %v1961
      %1995 = vst.msk [vmem:[%s474 + $0x4] sm:$0xf] %vm1993, %v1962
      %1996 = vst.msk [vmem:[%s474 + $0x8] sm:$0xf] %vm1993, %v1963
      %1997 = vst.msk [vmem:[%s474 + $0xc] sm:$0xf] %vm1993, %v1964
      %1998 = vst.msk [vmem:[%s474 + $0x10] sm:$0xf] %vm1993, %v1965
      %1999 = vst.msk [vmem:[%s474 + $0x14] sm:$0xf] %vm1993, %v1966
      %2000 = vst.msk [vmem:[%s474 + $0x18] sm:$0xf] %vm1993, %v1967
      %2001 = vst.msk [vmem:[%s474 + $0x1c] sm:$0xf] %vm1993, %v1968
      %2002 = vst.msk [vmem:[%s474 + $0x20] sm:$0xf] %vm1993, %v1969
      %2003 = vst.msk [vmem:[%s474 + $0x24] sm:$0xf] %vm1993, %v1970
      %2004 = vst.msk [vmem:[%s474 + $0x28] sm:$0xf] %vm1993, %v1971
      %2005 = vst.msk [vmem:[%s474 + $0x2c] sm:$0xf] %vm1993, %v1972
      %2006 = vst.msk [vmem:[%s474 + $0x30] sm:$0xf] %vm1993, %v1973
      %2007 = vst.msk [vmem:[%s474 + $0x34] sm:$0xf] %vm1993, %v1974
      %2008 = vst.msk [vmem:[%s474 + $0x38] sm:$0xf] %vm1993, %v1975
      %2009 = vst.msk [vmem:[%s474 + $0x3c] sm:$0xf] %vm1993, %v1976
      %v2010 = vsel %vm1411, %v1913, 0.0
      %v2011 = vsel %vm1411, %v1914, 0.0
      %v2012 = vadd.f32 %v2010, %v2011
      %v2013 = vsel %vm1411, %v1915, 0.0
      %v2014 = vadd.f32 %v2012, %v2013
      %v2015 = vsel %vm1411, %v1916, 0.0
      %v2016 = vadd.f32 %v2014, %v2015
      %v2017 = vsel %vm1411, %v1917, 0.0
      %v2018 = vadd.f32 %v2016, %v2017
      %v2019 = vsel %vm1411, %v1918, 0.0
      %v2020 = vadd.f32 %v2018, %v2019
      %v2021 = vsel %vm1411, %v1919, 0.0
      %v2022 = vadd.f32 %v2020, %v2021
      %v2023 = vsel %vm1411, %v1920, 0.0
      %v2024 = vadd.f32 %v2022, %v2023
      %v2025 = vsel %vm1411, %v1921, 0.0
      %v2026 = vadd.f32 %v2024, %v2025
      %v2027 = vsel %vm1411, %v1922, 0.0
      %v2028 = vadd.f32 %v2026, %v2027
      %v2029 = vsel %vm1411, %v1923, 0.0
      %v2030 = vadd.f32 %v2028, %v2029
      %v2031 = vsel %vm1411, %v1924, 0.0
      %v2032 = vadd.f32 %v2030, %v2031
      %v2033 = vsel %vm1411, %v1925, 0.0
      %v2034 = vadd.f32 %v2032, %v2033
      %v2035 = vsel %vm1411, %v1926, 0.0
      %v2036 = vadd.f32 %v2034, %v2035
      %v2037 = vsel %vm1411, %v1927, 0.0
      %v2038 = vadd.f32 %v2036, %v2037
      %v2039 = vsel %vm1411, %v1928, 0.0
      %v2040 = vadd.f32 %v2038, %v2039
      %v2041 = vrot.slane %v2040, 4
      %v2042 = vadd.f32 %v2040, %v2041
      %v2043 = vrot.slane %v2042, 2
      %v2044 = vadd.f32 %v2042, %v2043
      %v2045 = vrot.slane %v2044, 1
      %v2046 = vadd.f32 %v2044, %v2045
      %v2047 = vmul.f32 %v1913, %v1913
      %v2048 = vmul.f32 %v1914, %v1914
      %v2049 = vmul.f32 %v1915, %v1915
      %v2050 = vmul.f32 %v1916, %v1916
      %v2051 = vmul.f32 %v1917, %v1917
      %v2052 = vmul.f32 %v1918, %v1918
      %v2053 = vmul.f32 %v1919, %v1919
      %v2054 = vmul.f32 %v1920, %v1920
      %v2055 = vmul.f32 %v1921, %v1921
      %v2056 = vmul.f32 %v1922, %v1922
      %v2057 = vmul.f32 %v1923, %v1923
      %v2058 = vmul.f32 %v1924, %v1924
      %v2059 = vmul.f32 %v1925, %v1925
      %v2060 = vmul.f32 %v1926, %v1926
      %v2061 = vmul.f32 %v1927, %v1927
      %v2062 = vmul.f32 %v1928, %v1928
      %v2063 = vsel %vm1411, %v2047, 0.0
      %v2064 = vsel %vm1411, %v2048, 0.0
      %v2065 = vadd.f32 %v2063, %v2064
      %v2066 = vsel %vm1411, %v2049, 0.0
      %v2067 = vadd.f32 %v2065, %v2066
      %v2068 = vsel %vm1411, %v2050, 0.0
      %v2069 = vadd.f32 %v2067, %v2068
      %v2070 = vsel %vm1411, %v2051, 0.0
      %v2071 = vadd.f32 %v2069, %v2070
      %v2072 = vsel %vm1411, %v2052, 0.0
      %v2073 = vadd.f32 %v2071, %v2072
      %v2074 = vsel %vm1411, %v2053, 0.0
      %v2075 = vadd.f32 %v2073, %v2074
      %v2076 = vsel %vm1411, %v2054, 0.0
      %v2077 = vadd.f32 %v2075, %v2076
      %v2078 = vsel %vm1411, %v2055, 0.0
      %v2079 = vadd.f32 %v2077, %v2078
      %v2080 = vsel %vm1411, %v2056, 0.0
      %v2081 = vadd.f32 %v2079, %v2080
      %v2082 = vsel %vm1411, %v2057, 0.0
      %v2083 = vadd.f32 %v2081, %v2082
      %v2084 = vsel %vm1411, %v2058, 0.0
      %v2085 = vadd.f32 %v2083, %v2084
      %v2086 = vsel %vm1411, %v2059, 0.0
      %v2087 = vadd.f32 %v2085, %v2086
      %v2088 = vsel %vm1411, %v2060, 0.0
      %v2089 = vadd.f32 %v2087, %v2088
      %v2090 = vsel %vm1411, %v2061, 0.0
      %v2091 = vadd.f32 %v2089, %v2090
      %v2092 = vsel %vm1411, %v2062, 0.0
      %v2093 = vadd.f32 %v2091, %v2092
      %v2094 = vrot.slane %v2093, 4
      %v2095 = vadd.f32 %v2093, %v2094
      %v2096 = vrot.slane %v2095, 2
      %v2097 = vadd.f32 %v2095, %v2096
      %v2098 = vrot.slane %v2097, 1
      %v2099 = vadd.f32 %v2097, %v2098
      %v2100 = vsel %vm747, %v2046, %v2099
      %vm2101 = vcmask 517120
      %2102 = vst.msk [vmem:[%s483] sm:$0x3] %vm2101, %v2100
      %s2103 = smul.u32 16, %s24
      %p2104 = scmp.lt.s32.totalorder %s23, 1
      %s2105 = scalar_select %p2104, %s23, 1
      %p2106 = scmp.lt.s32.totalorder %s2103, 31
      %s2107 = scalar_select %p2106, %s2103, 31
      %s2108 = smul.addr %s2105, 32
      %s2109 = sadd.s32 %s2107, %s2108
      %s2110 = smul.addr %s2109, 4
      %s2111 = scalar_lea.vmem %s6, %s2110
      %p2112 = scmp.lt.s32.totalorder %s23, 1
      %s2113 = scalar_select %p2112, %s23, 1
      %p2114 = scmp.lt.s32.totalorder %s24, 1
      %s2115 = scalar_select %p2114, %s24, 1
      %s2116 = smul.addr %s2113, 2
      %s2117 = sadd.s32 %s2115, %s2116
      %s2118 = smul.addr %s2117, 2
      %s2119 = scalar_lea.vmem %s7, %s2118
      // Predicated region
      $region45: #{resnet_block.4} parent=43 // pred_check
        %p2120 = pneg %p219
      $region46: #{resnet_block.4} parent=43 // pred_check_branch
        %2122 = sbr.rel (%p2120) target = $region48
      $region47: #{resnet_block.4} parent=43 // pred_region
        %s2123 = smul.u32 16, %s24
      $region48: #{resnet_block.4} parent=43 // pred_fallthru
        _
      // Predicated region
      $region49: #{resnet_block.4} parent=43 // pred_check
        %p2124 = pneg %p247
      $region50: #{resnet_block.4} parent=43 // pred_check_branch
        %2126 = sbr.rel (%p2124) target = $region52
      $region51: #{resnet_block.4} parent=43 // pred_region
        _
      $region52: #{resnet_block.4} parent=43 // pred_fallthru
        _
    $region44: #{resnet_block.4} parent=5 // pred_fallthru
      _
    %p2127 = scmp.le.s32.totalorder 2, %s14
    // Predicated region
    $region53: #{resnet_block.4} parent=5 // pred_check
      %p2128 = pneg %p2127
    $region54: #{resnet_block.4} parent=5 // pred_check_branch
      %2130 = sbr.rel (%p2128) target = $region56
    $region55: #{resnet_block.4} parent=5 // pred_region
      %s2131 = ssub.s32 %s14, 2
      // Predicated region
      $region57: #{resnet_block.4} parent=55 // pred_check
        %p2132 = pneg %p225
      $region58: #{resnet_block.4} parent=55 // pred_check_branch
        %2134 = sbr.rel (%p2132) target = $region60
      $region59: #{resnet_block.4} parent=55 // pred_region
        %s2135 = smul.u32 16, %s26
        %p2136 = scmp.lt.s32.totalorder %s25, 1
        %s2137 = scalar_select %p2136, %s25, 1
        %p2138 = scmp.lt.s32.totalorder %s2135, 31
        %s2139 = scalar_select %p2138, %s2135, 31
        %s2140 = smul.addr %s2137, 32
        %s2141 = sadd.s32 %s2139, %s2140
        %s2142 = smul.addr %s2141, 4
        %s2143 = scalar_lea.vmem %s6, %s2142
      $region60: #{resnet_block.4} parent=55 // pred_fallthru
        _
      // Predicated region
      $region61: #{resnet_block.4} parent=55 // pred_check
        %p2144 = pneg %p253
      $region62: #{resnet_block.4} parent=55 // pred_check_branch
        %2146 = sbr.rel (%p2144) target = $region64
      $region63: #{resnet_block.4} parent=55 // pred_region
        %p2147 = scmp.lt.s32.totalorder %s25, 1
        %s2148 = scalar_select %p2147, %s25, 1
        %p2149 = scmp.lt.s32.totalorder %s26, 1
        %s2150 = scalar_select %p2149, %s26, 1
        %s2151 = smul.addr %s2148, 2
        %s2152 = sadd.s32 %s2150, %s2151
        %s2153 = smul.addr %s2152, 2
        %s2154 = scalar_lea.vmem %s7, %s2153
      $region64: #{resnet_block.4} parent=55 // pred_fallthru
        _
    $region56: #{resnet_block.4} parent=5 // pred_fallthru
      _
  $region6: #{resnet_block.4} parent=0 // loop_footer
    %s18 = sadd.s32 1, %s14
  $region7: #{resnet_block.4} parent=0 // loop_footer_branch
    %13 = sbr.rel target = $region3
  $region8: #{resnet_block.4} parent=0 // loop_exit
    _

// kernel: resnet_block.5
$region0: #{resnet_block.5}
  #allocation0 [shape = 'u32[]', space=smem, size = 0x4, offset = 0x4, fixed_abs, tag = 'smem constant byte address 0x4 - core index']
  #allocation1 [shape = 'u32[144,128]{1,0:T(1,128)}', space=vmem, size = 0x12000, scoped, tag = 'internal scratch']
  %s0 = inlined_call_operand.vmem [shape: bf16[2,256,64], index: 0, kind: input, shape index: {}, may-alias: {0,1,2}]
  %s1 = inlined_call_operand.vmem [shape: bf16[2,256,64], index: 1, kind: input, shape index: {}, may-alias: {0,1,2}]
  %s2 = inlined_call_operand.vmem [shape: bf16[2,256,64], index: 2, kind: input, shape index: {}, may-alias: {0,1,2}]
  %s3 = inlined_call_operand.vmem [shape: f32[2,2,64], index: 3, kind: input, shape index: {}]
  %s4 = inlined_call_operand.vmem [shape: bf16[3,192,64], index: 4, kind: input, shape index: {}]
  %s5 = inlined_call_operand.vmem [shape: f32[1,64], index: 5, kind: input, shape index: {}]
  %s6 = inlined_call_operand.hbm [shape: bf16[2,256,64], index: 6, kind: output, shape index: {}]
  %s7 = sld [smem:[#allocation0]]
  $region57: #{resnet_block.5} parent=0
    _
  %s9 = ssub.s32 1, %s7
  %s10 = scalar_select 0, %s9, %s7
  $region1: #{resnet_block.5} parent=0
    #allocation2 [shape = 'u8[65536]{0}', space=vmem, size = 0x10000, scoped, tag = 'output window, operand 0']
    #allocation3 [shape = 's32[2]{0}', space=sflag, size = 0x8, scoped, tag = 'scoped memory for resnet_block.5']
    %11 = vsyncpa [#allocation3], 0
    %s12 = scalar_lea.sflag [#allocation3], 1
    %13 = vsyncpa %s12, 0
    loop: start=0, step=1, limit=6
    $region2: #{resnet_block.5} parent=1 // loop_pre_header
      _
    $region3: #{resnet_block.5} parent=1 // loop_header
      %s15 = sphi 0, %s19
      %p16 = scmp.ge.s32.totalorder %s15, 6
      %s22 = sphi 0, %s34
      %s23 = sphi 0, %s30
      %s24 = sphi 0, %s22
      %s25 = sphi 0, %s23
      %s26 = sphi 0, %s24
      %s27 = sphi 0, %s25
      %s39 = sphi 0, %s41
      %s42 = sphi 0, %s39
      %s43 = sphi 0, %s42
      %s59 = sphi 0, %s43
      %s75 = sphi 0, %s77
      %s78 = sphi 0, %s75
      %s79 = sphi 0, %s78
      %s95 = sphi 0, %s79
      %s111 = sphi 0, %s113
      %s114 = sphi 0, %s111
      %s115 = sphi 0, %s114
      %s131 = sphi 0, %s115
      %s137 = sphi 0, %s139
      %s140 = sphi 0, %s137
      %s141 = sphi 0, %s140
      %s157 = sphi 0, %s141
      %s161 = sphi 0, %s161
      %s163 = sphi 0, %s161
      %s164 = sphi 0, %s163
      %s178 = sphi 0, %s164
      %s182 = sphi 0, %s182
      %s184 = sphi 0, %s182
      %s185 = sphi 0, %s184
      %s199 = sphi 0, %s185
      %s207 = sphi 0, %s209
      %s210 = sphi 0, %s207
      %s211 = sphi 0, %s210
      %s227 = sphi 0, %s211
    $region4: #{resnet_block.5} parent=1 // loop_header_branch
      %18 = sbr.rel (%p16) target = $region8
    $region5: #{resnet_block.5} parent=1 // loop_body
      %s20 = ssub.s32 %s15, 1
      %s21 = ssub.s32 %s15, 2
      %s28 = sadd.s32 1, %s23
      %p29 = scmp.ge.s32.totalorder %s28, 2
      %s30 = scalar_select %p29, 0, %s28
      %s31 = sadd.s32 1, %s22
      %s32 = scalar_select %p29, %s31, %s22
      %p33 = scmp.ge.s32.totalorder %s32, 2
      %s34 = scalar_select %p33, 0, %s32
      %s35 = ssub.s32 %s22, %s34
      %s36 = ssub.s32 %s23, %s30
      %s37 = sor.u32 %s35, %s36
      %p38 = scmp.eq.s32.totalorder %s37, 0
      %s40 = sadd.s32 %s39, 1
      %s41 = scalar_select %p38, %s39, %s40
      %p44 = pneg %p38
      %p45 = scmp.eq.s32.totalorder %s15, 3
      %p46 = por %p44, %p45
      %p47 = scmp.ne.s32.totalorder %s39, %s42
      %p48 = scmp.eq.s32.totalorder %s15, 0
      %p49 = por %p47, %p48
      %p50 = scmp.ne.s32.totalorder %s39, %s42
      %p51 = scmp.eq.s32.totalorder %s20, 3
      %p52 = por %p50, %p51
      %p53 = scmp.ne.s32.totalorder %s42, %s43
      %p54 = scmp.eq.s32.totalorder %s20, 0
      %p55 = por %p53, %p54
      %p56 = scmp.ne.s32.totalorder %s42, %s43
      %p57 = scmp.eq.s32.totalorder %s21, 3
      %p58 = por %p56, %p57
      %p60 = scmp.ne.s32.totalorder %s43, %s59
      %p61 = scmp.eq.s32.totalorder %s21, 0
      %p62 = por %p60, %p61
      %s63 = smul.u32 %s23, 8
      %s64 = ssub.s32 %s63, 1
      %p65 = scmp.gt.s32.totalorder %s64, 0
      %s66 = scalar_select %p65, %s64, 0
      %s67 = smul.u32 %s30, 8
      %s68 = ssub.s32 %s67, 1
      %p69 = scmp.gt.s32.totalorder %s68, 0
      %s70 = scalar_select %p69, %s68, 0
      %s71 = ssub.s32 %s22, %s34
      %s72 = ssub.s32 %s66, %s70
      %s73 = sor.u32 %s71, %s72
      %p74 = scmp.eq.s32.totalorder %s73, 0
      %s76 = sadd.s32 %s75, 1
      %s77 = scalar_select %p74, %s75, %s76
      %p80 = pneg %p74
      %p81 = scmp.eq.s32.totalorder %s15, 3
      %p82 = por %p80, %p81
      %p83 = scmp.ne.s32.totalorder %s75, %s78
      %p84 = scmp.eq.s32.totalorder %s15, 0
      %p85 = por %p83, %p84
      %p86 = scmp.ne.s32.totalorder %s75, %s78
      %p87 = scmp.eq.s32.totalorder %s20, 3
      %p88 = por %p86, %p87
      %p89 = scmp.ne.s32.totalorder %s78, %s79
      %p90 = scmp.eq.s32.totalorder %s20, 0
      %p91 = por %p89, %p90
      %p92 = scmp.ne.s32.totalorder %s78, %s79
      %p93 = scmp.eq.s32.totalorder %s21, 3
      %p94 = por %p92, %p93
      %p96 = scmp.ne.s32.totalorder %s79, %s95
      %p97 = scmp.eq.s32.totalorder %s21, 0
      %p98 = por %p96, %p97
      %s99 = sadd.s32 %s23, 1
      %s100 = smul.u32 %s99, 8
      %p101 = scmp.lt.s32.totalorder %s100, 15
      %s102 = scalar_select %p101, %s100, 15
      %s103 = sadd.s32 %s30, 1
      %s104 = smul.u32 %s103, 8
      %p105 = scmp.lt.s32.totalorder %s104, 15
      %s106 = scalar_select %p105, %s104, 15
      %s107 = ssub.s32 %s22, %s34
      %s108 = ssub.s32 %s102, %s106
      %s109 = sor.u32 %s107, %s108
      %p110 = scmp.eq.s32.totalorder %s109, 0
      %s112 = sadd.s32 %s111, 1
      %s113 = scalar_select %p110, %s111, %s112
      %p116 = pneg %p110
      %p117 = scmp.eq.s32.totalorder %s15, 3
      %p118 = por %p116, %p117
      %p119 = scmp.ne.s32.totalorder %s111, %s114
      %p120 = scmp.eq.s32.totalorder %s15, 0
      %p121 = por %p119, %p120
      %p122 = scmp.ne.s32.totalorder %s111, %s114
      %p123 = scmp.eq.s32.totalorder %s20, 3
      %p124 = por %p122, %p123
      %p125 = scmp.ne.s32.totalorder %s114, %s115
      %p126 = scmp.eq.s32.totalorder %s20, 0
      %p127 = por %p125, %p126
      %p128 = scmp.ne.s32.totalorder %s114, %s115
      %p129 = scmp.eq.s32.totalorder %s21, 3
      %p130 = por %p128, %p129
      %p132 = scmp.ne.s32.totalorder %s115, %s131
      %p133 = scmp.eq.s32.totalorder %s21, 0
      %p134 = por %p132, %p133
      %s135 = ssub.s32 %s22, %s34
      %p136 = scmp.eq.s32.totalorder %s135, 0
      %s138 = sadd.s32 %s137, 1
      %s139 = scalar_select %p136, %s137, %s138
      %p142 = pneg %p136
      %p143 = scmp.eq.s32.totalorder %s15, 3
      %p144 = por %p142, %p143
      %p145 = scmp.ne.s32.totalorder %s137, %s140
      %p146 = scmp.eq.s32.totalorder %s15, 0
      %p147 = por %p145, %p146
      %p148 = scmp.ne.s32.totalorder %s137, %s140
      %p149 = scmp.eq.s32.totalorder %s20, 3
      %p150 = por %p148, %p149
      %p151 = scmp.ne.s32.totalorder %s140, %s141
      %p152 = scmp.eq.s32.totalorder %s20, 0
      %p153 = por %p151, %p152
      %p154 = scmp.ne.s32.totalorder %s140, %s141
      %p155 = scmp.eq.s32.totalorder %s21, 3
      %p156 = por %p154, %p155
      %p158 = scmp.ne.s32.totalorder %s141, %s157
      %p159 = scmp.eq.s32.totalorder %s21, 0
      %p160 = por %p158, %p159
      %s162 = sadd.s32 %s161, 1
      %p165 = scmp.eq.s32.totalorder %s15, 3
      %p166 = scmp.ne.s32.totalorder %s161, %s163
      %p167 = scmp.eq.s32.totalorder %s15, 0
      %p168 = por %p166, %p167
      %p169 = scmp.ne.s32.totalorder %s161, %s163
      %p170 = scmp.eq.s32.totalorder %s20, 3
      %p171 = por %p169, %p170
      %p172 = scmp.ne.s32.totalorder %s163, %s164
      %p173 = scmp.eq.s32.totalorder %s20, 0
      %p174 = por %p172, %p173
      %p175 = scmp.ne.s32.totalorder %s163, %s164
      %p176 = scmp.eq.s32.totalorder %s21, 3
      %p177 = por %p175, %p176
      %p179 = scmp.ne.s32.totalorder %s164, %s178
      %p180 = scmp.eq.s32.totalorder %s21, 0
      %p181 = por %p179, %p180
      %s183 = sadd.s32 %s182, 1
      %p186 = scmp.eq.s32.totalorder %s15, 3
      %p187 = scmp.ne.s32.totalorder %s182, %s184
      %p188 = scmp.eq.s32.totalorder %s15, 0
      %p189 = por %p187, %p188
      %p190 = scmp.ne.s32.totalorder %s182, %s184
      %p191 = scmp.eq.s32.totalorder %s20, 3
      %p192 = por %p190, %p191
      %p193 = scmp.ne.s32.totalorder %s184, %s185
      %p194 = scmp.eq.s32.totalorder %s20, 0
      %p195 = por %p193, %p194
      %p196 = scmp.ne.s32.totalorder %s184, %s185
      %p197 = scmp.eq.s32.totalorder %s21, 3
      %p198 = por %p196, %p197
      %p200 = scmp.ne.s32.totalorder %s185, %s199
      %p201 = scmp.eq.s32.totalorder %s21, 0
      %p202 = por %p200, %p201
      %s203 = ssub.s32 %s22, %s34
      %s204 = ssub.s32 %s23, %s30
      %s205 = sor.u32 %s203, %s204
      %p206 = scmp.eq.s32.totalorder %s205, 0
      %s208 = sadd.s32 %s207, 1
      %s209 = scalar_select %p206, %s207, %s208
      %p212 = pneg %p206
      %p213 = scmp.eq.s32.totalorder %s15, 3
      %p214 = por %p212, %p213
      %p215 = scmp.ne.s32.totalorder %s207, %s210
      %p216 = scmp.eq.s32.totalorder %s15, 0
      %p217 = por %p215, %p216
      %p218 = scmp.ne.s32.totalorder %s207, %s210
      %p219 = scmp.eq.s32.totalorder %s20, 3
      %p220 = por %p218, %p219
      %p221 = scmp.ne.s32.totalorder %s210, %s211
      %p222 = scmp.eq.s32.totalorder %s20, 0
      %p223 = por %p221, %p222
      %p224 = scmp.ne.s32.totalorder %s210, %s211
      %p225 = scmp.eq.s32.totalorder %s21, 3
      %p226 = por %p224, %p225
      %p228 = scmp.ne.s32.totalorder %s211, %s227
      %p229 = scmp.eq.s32.totalorder %s21, 0
      %p230 = por %p228, %p229
      %p231 = scmp.le.s32.totalorder 1, %s15
      %p232 = scmp.lt.s32.totalorder %s15, 5
      %p233 = pnand %p231, %p232
      %p234 = pneg %p233
      // Predicated region
      $region9: #{resnet_block.5} parent=5 // pred_check
        _
      $region10: #{resnet_block.5} parent=5 // pred_check_branch
        %236 = sbr.rel (%p233) target = $region12
      $region11: #{resnet_block.5} parent=5 // pred_region
        %s237 = ssub.s32 %s15, 1
        // Predicated region
        $region13: #{resnet_block.5} parent=11 // pred_check
          %p238 = pneg %p174
        $region14: #{resnet_block.5} parent=11 // pred_check_branch
          %240 = sbr.rel (%p238) target = $region16
        $region15: #{resnet_block.5} parent=11 // pred_region
          _
        $region16: #{resnet_block.5} parent=11 // pred_fallthru
          _
        // Predicated region
        $region17: #{resnet_block.5} parent=11 // pred_check
          %p241 = pneg %p195
        $region18: #{resnet_block.5} parent=11 // pred_check_branch
          %243 = sbr.rel (%p241) target = $region20
        $region19: #{resnet_block.5} parent=11 // pred_region
          _
        $region20: #{resnet_block.5} parent=11 // pred_fallthru
          _
      $region12: #{resnet_block.5} parent=5 // pred_fallthru
        _
      %p244 = scmp.lt.s32.totalorder %s15, 4
      // Predicated region
      $region21: #{resnet_block.5} parent=5 // pred_check
        %p245 = pneg %p244
      $region22: #{resnet_block.5} parent=5 // pred_check_branch
        %247 = sbr.rel (%p245) target = $region24
      $region23: #{resnet_block.5} parent=5 // pred_region
        // Predicated region
        $region25: #{resnet_block.5} parent=23 // pred_check
          %p248 = pneg %p49
        $region26: #{resnet_block.5} parent=23 // pred_check_branch
          %250 = sbr.rel (%p248) target = $region28
        $region27: #{resnet_block.5} parent=23 // pred_region
          %s251 = smul.u32 16, %s23
          %p252 = scmp.lt.s32.totalorder %s22, 1
          %s253 = scalar_select %p252, %s22, 1
          %p254 = scmp.lt.s32.totalorder %s251, 31
          %s255 = scalar_select %p254, %s251, 31
          %s256 = smul.addr %s253, 32
          %s257 = sadd.s32 %s255, %s256
          %s258 = smul.addr %s257, 4
          %s259 = scalar_lea.vmem %s0, %s258
          %s260 = smul.u32 16, %s23
        $region28: #{resnet_block.5} parent=23 // pred_fallthru
          _
        // Predicated region
        $region29: #{resnet_block.5} parent=23 // pred_check
          %p261 = pneg %p85
        $region30: #{resnet_block.5} parent=23 // pred_check_branch
          %263 = sbr.rel (%p261) target = $region32
        $region31: #{resnet_block.5} parent=23 // pred_region
          %s264 = smul.u32 %s23, 8
          %s265 = ssub.s32 %s264, 1
          %p266 = scmp.gt.s32.totalorder %s265, 0
          %s267 = scalar_select %p266, %s265, 0
          %s268 = smul.u32 2, %s267
          %p269 = scmp.lt.s32.totalorder %s22, 1
          %s270 = scalar_select %p269, %s22, 1
          %p271 = scmp.lt.s32.totalorder %s268, 31
          %s272 = scalar_select %p271, %s268, 31
          %s273 = smul.addr %s270, 32
          %s274 = sadd.s32 %s272, %s273
          %s275 = smul.addr %s274, 4
          %s276 = scalar_lea.vmem %s1, %s275
          %s277 = smul.u32 %s23, 8
          %s278 = ssub.s32 %s277, 1
          %p279 = scmp.gt.s32.totalorder %s278, 0
          %s280 = scalar_select %p279, %s278, 0
          %s281 = smul.u32 2, %s280
        $region32: #{resnet_block.5} parent=23 // pred_fallthru
          _
        // Predicated region
        $region33: #{resnet_block.5} parent=23 // pred_check
          %p282 = pneg %p121
        $region34: #{resnet_block.5} parent=23 // pred_check_branch
          %284 = sbr.rel (%p282) target = $region36
        $region35: #{resnet_block.5} parent=23 // pred_region
          %s285 = sadd.s32 %s23, 1
          %s286 = smul.u32 %s285, 8
          %p287 = scmp.lt.s32.totalorder %s286, 15
          %s288 = scalar_select %p287, %s286, 15
          %s289 = smul.u32 2, %s288
          %p290 = scmp.lt.s32.totalorder %s22, 1
          %s291 = scalar_select %p290, %s22, 1
          %p292 = scmp.lt.s32.totalorder %s289, 31
          %s293 = scalar_select %p292, %s289, 31
          %s294 = smul.addr %s291, 32
          %s295 = sadd.s32 %s293, %s294
          %s296 = smul.addr %s295, 4
          %s297 = scalar_lea.vmem %s2, %s296
          %s298 = sadd.s32 %s23, 1
          %s299 = smul.u32 %s298, 8
          %p300 = scmp.lt.s32.totalorder %s299, 15
          %s301 = scalar_select %p300, %s299, 15
          %s302 = smul.u32 2, %s301
        $region36: #{resnet_block.5} parent=23 // pred_fallthru
          _
        // Predicated region
        $region37: #{resnet_block.5} parent=23 // pred_check
          %p303 = pneg %p147
        $region38: #{resnet_block.5} parent=23 // pred_check_branch
          %305 = sbr.rel (%p303) target = $region40
        $region39: #{resnet_block.5} parent=23 // pred_region
          %p306 = scmp.lt.s32.totalorder %s22, 1
          %s307 = scalar_select %p306, %s22, 1
          %s308 = smul.addr %s307, 2
          %s309 = scalar_lea.vmem %s3, %s308
        $region40: #{resnet_block.5} parent=23 // pred_fallthru
          _
      $region24: #{resnet_block.5} parent=5 // pred_fallthru
        _
      %p310 = scmp.le.s32.totalorder 1, %s15
      %p311 = scmp.lt.s32.totalorder %s15, 5
      %p312 = pnand %p310, %p311
      %p313 = pneg %p312
      // Predicated region
      $region41: #{resnet_block.5} parent=5 // pred_check
        _
      $region42: #{resnet_block.5} parent=5 // pred_check_branch
        %315 = sbr.rel (%p312) target = $region44
      $region43: #{resnet_block.5} parent=5 // pred_region
        %s316 = ssub.s32 %s15, 1
        %s317 = smul.u32 16, %s25
        %p318 = scmp.lt.s32.totalorder %s24, 1
        %s319 = scalar_select %p318, %s24, 1
        %p320 = scmp.lt.s32.totalorder %s317, 31
        %s321 = scalar_select %p320, %s317, 31
        %s322 = smul.addr %s319, 32
        %s323 = sadd.s32 %s321, %s322
        %s324 = smul.addr %s323, 4
        %s325 = scalar_lea.vmem %s0, %s324
        %p326 = pneg %p55
        %p327 = pneg %p52
        %s328 = smul.u32 %s25, 8
        %s329 = ssub.s32 %s328, 1
        %p330 = scmp.gt.s32.totalorder %s329, 0
        %s331 = scalar_select %p330, %s329, 0
        %s332 = smul.u32 2, %s331
        %p333 = scmp.lt.s32.totalorder %s24, 1
        %s334 = scalar_select %p333, %s24, 1
        %p335 = scmp.lt.s32.totalorder %s332, 31
        %s336 = scalar_select %p335, %s332, 31
        %s337 = smul.addr %s334, 32
        %s338 = sadd.s32 %s336, %s337
        %s339 = smul.addr %s338, 4
        %s340 = scalar_lea.vmem %s1, %s339
        %p341 = pneg %p91
        %p342 = pneg %p88
        %s343 = sadd.s32 %s25, 1
        %s344 = smul.u32 %s343, 8
        %p345 = scmp.lt.s32.totalorder %s344, 15
        %s346 = scalar_select %p345, %s344, 15
        %s347 = smul.u32 2, %s346
        %p348 = scmp.lt.s32.totalorder %s24, 1
        %s349 = scalar_select %p348, %s24, 1
        %p350 = scmp.lt.s32.totalorder %s347, 31
        %s351 = scalar_select %p350, %s347, 31
        %s352 = smul.addr %s349, 32
        %s353 = sadd.s32 %s351, %s352
        %s354 = smul.addr %s353, 4
        %s355 = scalar_lea.vmem %s2, %s354
        %p356 = pneg %p127
        %p357 = pneg %p124
        %p358 = scmp.lt.s32.totalorder %s24, 1
        %s359 = scalar_select %p358, %s24, 1
        %s360 = smul.addr %s359, 2
        %s361 = scalar_lea.vmem %s3, %s360
        %p362 = pneg %p153
        %p363 = pneg %p150
        %p364 = pneg %p174
        %p365 = pneg %p171
        %p366 = pneg %p195
        %p367 = pneg %p192
        %p368 = pneg %p223
        %p369 = pneg %p220
        %s370 = sand.u32 %s210, 1
        %s371 = scalar_lea.sflag [#allocation3], %s370
        %s372 = sand.u32 %s210, 1
        %s373 = smul.addr %s372, 64
        %s374 = scalar_lea.vmem [#allocation2], %s373
        %s375 = smul.u32 16, %s25
        %p376 = scmp.lt.s32.totalorder %s24, 1
        %s377 = scalar_select %p376, %s24, 1
        %p378 = scmp.lt.s32.totalorder %s375, 31
        %s379 = scalar_select %p378, %s375, 31
        %s380 = smul.addr %s377, 32
        %s381 = sadd.s32 %s379, %s380
        %s382 = smul.addr %s381, 4
        %s383 = scalar_lea.vmem %s0, %s382
        %s384 = smul.u32 16, %s25
        %s385 = smul.u32 %s25, 8
        %s386 = ssub.s32 %s385, 1
        %p387 = scmp.gt.s32.totalorder %s386, 0
        %s388 = scalar_select %p387, %s386, 0
        %s389 = smul.u32 2, %s388
        %p390 = scmp.lt.s32.totalorder %s24, 1
        %s391 = scalar_select %p390, %s24, 1
        %p392 = scmp.lt.s32.totalorder %s389, 31
        %s393 = scalar_select %p392, %s389, 31
        %s394 = smul.addr %s391, 32
        %s395 = sadd.s32 %s393, %s394
        %s396 = smul.addr %s395, 4
        %s397 = scalar_lea.vmem %s1, %s396
        %s398 = smul.u32 %s25, 8
        %s399 = ssub.s32 %s398, 1
        %p400 = scmp.gt.s32.totalorder %s399, 0
        %s401 = scalar_select %p400, %s399, 0
        %s402 = smul.u32 2, %s401
        %s403 = sadd.s32 %s25, 1
        %s404 = smul.u32 %s403, 8
        %p405 = scmp.lt.s32.totalorder %s404, 15
        %s406 = scalar_select %p405, %s404, 15
        %s407 = smul.u32 2, %s406
        %p408 = scmp.lt.s32.totalorder %s24, 1
        %s409 = scalar_select %p408, %s24, 1
        %p410 = scmp.lt.s32.totalorder %s407, 31
        %s411 = scalar_select %p410, %s407, 31
        %s412 = smul.addr %s409, 32
        %s413 = sadd.s32 %s411, %s412
        %s414 = smul.addr %s413, 4
        %s415 = scalar_lea.vmem %s2, %s414
        %s416 = sadd.s32 %s25, 1
        %s417 = smul.u32 %s416, 8
        %p418 = scmp.lt.s32.totalorder %s417, 15
        %s419 = scalar_select %p418, %s417, 15
        %s420 = smul.u32 2, %s419
        %p421 = scmp.lt.s32.totalorder %s24, 1
        %s422 = scalar_select %p421, %s24, 1
        %s423 = smul.addr %s422, 2
        %s424 = scalar_lea.vmem %s3, %s423
        %s425 = smul.u32 16, %s25
        %v427 = vld [vmem:[%s424] sm:$0x1]
        %v428 = vld [vmem:[%s424 + $0x1] sm:$0x1]
        %v429 = vld [vmem:[%s397] sm:$0xf]
        %v430 = vld [vmem:[%s397 + $0x4] sm:$0xf]
        %v431 = vunpack.c.l.bf16 %v429
        %v432 = vunpack.c.l.bf16 %v430
        %v433 = vlaneseq
        %v434 = vshrl.u32 %v433, 7
        %v435 = vsub.s32 0, %v434
        %v436 = vrot.slane %v427, %v435
        %v437 = vmul.f32 %v431, %v436
        %v438 = vmul.f32 %v432, %v436
        %v439 = vlaneseq
        %v440 = vshrl.u32 %v439, 7
        %v441 = vsub.s32 0, %v440
        %v442 = vrot.slane %v428, %v441
        %v443 = vadd.f32 %v437, %v442
        %v444 = vadd.f32 %v438, %v442
        %v445 = vxor.u32 %v443, 2147483648
        %v446 = vxor.u32 %v444, 2147483648
        %v447 = vmul.f32 %v445, 1.442695
        %v448 = vpow.pop %v447
        %v449 = vmul.f32 %v446, 1.442695
        %v450 = vpow.pop %v449
        %v451 = vadd.f32 %v448, 1.0
        %v452 = vadd.f32 %v450, 1.0
        %v453 = vrcp.pop %v451
        %v454 = vmul.f32 1.0, %v453
        %v455 = vrcp.pop %v452
        %v456 = vmul.f32 1.0, %v455
        %v457 = vmul.f32 %v443, %v454
        %v458 = vmul.f32 %v444, %v456
        %p459 = scmp.gt.s32.totalorder %s25, 0
        %s460 = scalar_select %p459, 1, 0
        %s461 = scvt.s32.f32 %s460
        %v462 = vstv %s461
        %v463 = vmul.f32 %v457, %v462
        %v464 = vmul.f32 %v458, %v462
        %v465 = vld [vmem:[%s415] sm:$0xf]
        %v466 = vld [vmem:[%s415 + $0x4] sm:$0xf]
        %v467 = vunpack.c.l.bf16 %v465
        %v468 = vunpack.c.l.bf16 %v466
        %v469 = vmul.f32 %v467, %v436
        %v470 = vmul.f32 %v468, %v436
        %v471 = vadd.f32 %v469, %v442
        %v472 = vadd.f32 %v470, %v442
        %v473 = vxor.u32 %v471, 2147483648
        %v474 = vxor.u32 %v472, 2147483648
        %v475 = vmul.f32 %v473, 1.442695
        %v476 = vpow.pop %v475
        %v477 = vmul.f32 %v474, 1.442695
        %v478 = vpow.pop %v477
        %v479 = vadd.f32 %v476, 1.0
        %v480 = vadd.f32 %v478, 1.0
        %v481 = vrcp.pop %v479
        %v482 = vmul.f32 1.0, %v481
        %v483 = vrcp.pop %v480
        %v484 = vmul.f32 1.0, %v483
        %v485 = vmul.f32 %v471, %v482
        %v486 = vmul.f32 %v472, %v484
        %p487 = scmp.lt.s32.totalorder %s25, 1
        %s488 = scalar_select %p487, 1, 0
        %s489 = scvt.s32.f32 %s488
        %v490 = vstv %s489
        %v491 = vmul.f32 %v485, %v490
        %v492 = vmul.f32 %v486, %v490
        %v493 = vld [vmem:[%s383] sm:$0xf]
        %v494 = vld [vmem:[%s383 + $0x4] sm:$0xf]
        %v495 = vld [vmem:[%s383 + $0x8] sm:$0xf]
        %v496 = vld [vmem:[%s383 + $0xc] sm:$0xf]
        %v497 = vld [vmem:[%s383 + $0x10] sm:$0xf]
        %v498 = vld [vmem:[%s383 + $0x14] sm:$0xf]
        %v499 = vld [vmem:[%s383 + $0x18] sm:$0xf]
        %v500 = vld [vmem:[%s383 + $0x1c] sm:$0xf]
        %v501 = vld [vmem:[%s383 + $0x20] sm:$0xf]
        %v502 = vld [vmem:[%s383 + $0x24] sm:$0xf]
        %v503 = vld [vmem:[%s383 + $0x28] sm:$0xf]
        %v504 = vld [vmem:[%s383 + $0x2c] sm:$0xf]
        %v505 = vld [vmem:[%s383 + $0x30] sm:$0xf]
        %v506 = vld [vmem:[%s383 + $0x34] sm:$0xf]
        %v507 = vld [vmem:[%s383 + $0x38] sm:$0xf]
        %v508 = vld [vmem:[%s383 + $0x3c] sm:$0xf]
        %v509 = vunpack.c.l.bf16 %v493
        %v510 = vunpack.c.l.bf16 %v494
        %v511 = vunpack.c.l.bf16 %v495
        %v512 = vunpack.c.l.bf16 %v496
        %v513 = vunpack.c.l.bf16 %v497
        %v514 = vunpack.c.l.bf16 %v498
        %v515 = vunpack.c.l.bf16 %v499
        %v516 = vunpack.c.l.bf16 %v500
        %v517 = vunpack.c.l.bf16 %v501
        %v518 = vunpack.c.l.bf16 %v502
        %v519 = vunpack.c.l.bf16 %v503
        %v520 = vunpack.c.l.bf16 %v504
        %v521 = vunpack.c.l.bf16 %v505
        %v522 = vunpack.c.l.bf16 %v506
        %v523 = vunpack.c.l.bf16 %v507
        %v524 = vunpack.c.l.bf16 %v508
        %v525 = vmul.f32 %v509, %v436
        %v526 = vmul.f32 %v510, %v436
        %v527 = vmul.f32 %v511, %v436
        %v528 = vmul.f32 %v512, %v436
        %v529 = vmul.f32 %v513, %v436
        %v530 = vmul.f32 %v514, %v436
        %v531 = vmul.f32 %v515, %v436
        %v532 = vmul.f32 %v516, %v436
        %v533 = vmul.f32 %v517, %v436
        %v534 = vmul.f32 %v518, %v436
        %v535 = vmul.f32 %v519, %v436
        %v536 = vmul.f32 %v520, %v436
        %v537 = vmul.f32 %v521, %v436
        %v538 = vmul.f32 %v522, %v436
        %v539 = vmul.f32 %v523, %v436
        %v540 = vmul.f32 %v524, %v436
        %v541 = vadd.f32 %v525, %v442
        %v542 = vadd.f32 %v526, %v442
        %v543 = vadd.f32 %v527, %v442
        %v544 = vadd.f32 %v528, %v442
        %v545 = vadd.f32 %v529, %v442
        %v546 = vadd.f32 %v530, %v442
        %v547 = vadd.f32 %v531, %v442
        %v548 = vadd.f32 %v532, %v442
        %v549 = vadd.f32 %v533, %v442
        %v550 = vadd.f32 %v534, %v442
        %v551 = vadd.f32 %v535, %v442
        %v552 = vadd.f32 %v536, %v442
        %v553 = vadd.f32 %v537, %v442
        %v554 = vadd.f32 %v538, %v442
        %v555 = vadd.f32 %v539, %v442
        %v556 = vadd.f32 %v540, %v442
        %v557 = vxor.u32 %v541, 2147483648
        %v558 = vxor.u32 %v542, 2147483648
        %v559 = vxor.u32 %v543, 2147483648
        %v560 = vxor.u32 %v544, 2147483648
        %v561 = vxor.u32 %v545, 2147483648
        %v562 = vxor.u32 %v546, 2147483648
        %v563 = vxor.u32 %v547, 2147483648
        %v564 = vxor.u32 %v548, 2147483648
        %v565 = vxor.u32 %v549, 2147483648
        %v566 = vxor.u32 %v550, 2147483648
        %v567 = vxor.u32 %v551, 2147483648
        %v568 = vxor.u32 %v552, 2147483648
        %v569 = vxor.u32 %v553, 2147483648
        %v570 = vxor.u32 %v554, 2147483648
        %v571 = vxor.u32 %v555, 2147483648
        %v572 = vxor.u32 %v556, 2147483648
        %v573 = vmul.f32 %v557, 1.442695
        %v574 = vpow.pop %v573
        %v575 = vmul.f32 %v558, 1.442695
        %v576 = vpow.pop %v575
        %v577 = vmul.f32 %v559, 1.442695
        %v578 = vpow.pop %v577
        %v579 = vmul.f32 %v560, 1.442695
        %v580 = vpow.pop %v579
        %v581 = vmul.f32 %v561, 1.442695
        %v582 = vpow.pop %v581
        %v583 = vmul.f32 %v562, 1.442695
        %v584 = vpow.pop %v583
        %v585 = vmul.f32 %v563, 1.442695
        %v586 = vpow.pop %v585
        %v587 = vmul.f32 %v564, 1.442695
        %v588 = vpow.pop %v587
        %v589 = vmul.f32 %v565, 1.442695
        %v590 = vpow.pop %v589
        %v591 = vmul.f32 %v566, 1.442695
        %v592 = vpow.pop %v591
        %v593 = vmul.f32 %v567, 1.442695
        %v594 = vpow.pop %v593
        %v595 = vmul.f32 %v568, 1.442695
        %v596 = vpow.pop %v595
        %v597 = vmul.f32 %v569, 1.442695
        %v598 = vpow.pop %v597
        %v599 = vmul.f32 %v570, 1.442695
        %v600 = vpow.pop %v599
        %v601 = vmul.f32 %v571, 1.442695
        %v602 = vpow.pop %v601
        %v603 = vmul.f32 %v572, 1.442695
        %v604 = vpow.pop %v603
        %v605 = vadd.f32 %v574, 1.0
        %v606 = vadd.f32 %v576, 1.0
        %v607 = vadd.f32 %v578, 1.0
        %v608 = vadd.f32 %v580, 1.0
        %v609 = vadd.f32 %v582, 1.0
        %v610 = vadd.f32 %v584, 1.0
        %v611 = vadd.f32 %v586, 1.0
        %v612 = vadd.f32 %v588, 1.0
        %v613 = vadd.f32 %v590, 1.0
        %v614 = vadd.f32 %v592, 1.0
        %v615 = vadd.f32 %v594, 1.0
        %v616 = vadd.f32 %v596, 1.0
        %v617 = vadd.f32 %v598, 1.0
        %v618 = vadd.f32 %v600, 1.0
        %v619 = vadd.f32 %v602, 1.0
        %v620 = vadd.f32 %v604, 1.0
        %v621 = vrcp.pop %v605
        %v622 = vmul.f32 1.0, %v621
        %v623 = vrcp.pop %v606
        %v624 = vmul.f32 1.0, %v623
        %v625 = vrcp.pop %v607
        %v626 = vmul.f32 1.0, %v625
        %v627 = vrcp.pop %v608
        %v628 = vmul.f32 1.0, %v627
        %v629 = vrcp.pop %v609
        %v630 = vmul.f32 1.0, %v629
        %v631 = vrcp.pop %v610
        %v632 = vmul.f32 1.0, %v631
        %v633 = vrcp.pop %v611
        %v634 = vmul.f32 1.0, %v633
        %v635 = vrcp.pop %v612
        %v636 = vmul.f32 1.0, %v635
        %v637 = vrcp.pop %v613
        %v638 = vmul.f32 1.0, %v637
        %v639 = vrcp.pop %v614
        %v640 = vmul.f32 1.0, %v639
        %v641 = vrcp.pop %v615
        %v642 = vmul.f32 1.0, %v641
        %v643 = vrcp.pop %v616
        %v644 = vmul.f32 1.0, %v643
        %v645 = vrcp.pop %v617
        %v646 = vmul.f32 1.0, %v645
        %v647 = vrcp.pop %v618
        %v648 = vmul.f32 1.0, %v647
        %v649 = vrcp.pop %v619
        %v650 = vmul.f32 1.0, %v649
        %v651 = vrcp.pop %v620
        %v652 = vmul.f32 1.0, %v651
        %v653 = vmul.f32 %v541, %v622
        %v654 = vmul.f32 %v542, %v624
        %v655 = vmul.f32 %v543, %v626
        %v656 = vmul.f32 %v544, %v628
        %v657 = vmul.f32 %v545, %v630
        %v658 = vmul.f32 %v546, %v632
        %v659 = vmul.f32 %v547, %v634
        %v660 = vmul.f32 %v548, %v636
        %v661 = vmul.f32 %v549, %v638
        %v662 = vmul.f32 %v550, %v640
        %v663 = vmul.f32 %v551, %v642
        %v664 = vmul.f32 %v552, %v644
        %v665 = vmul.f32 %v553, %v646
        %v666 = vmul.f32 %v554, %v648
        %v667 = vmul.f32 %v555, %v650
        %v668 = vmul.f32 %v556, %v652
        %vm689 = vcmask 1040384
        %v690 = vrot.slane %v463, 7
        %v691 = vrot.slane %v464, 7
        %v692 = vsel %vm689, %v690, %v691
        %v693 = vrot.slane %v653, 7
        %v694 = vsel %vm689, %v691, %v693
        %v695 = vrot.slane %v654, 7
        %v696 = vsel %vm689, %v693, %v695
        %v697 = vrot.slane %v655, 7
        %v698 = vsel %vm689, %v695, %v697
        %v699 = vrot.slane %v656, 7
        %v700 = vsel %vm689, %v697, %v699
        %v701 = vrot.slane %v657, 7
        %v702 = vsel %vm689, %v699, %v701
        %v703 = vrot.slane %v658, 7
        %v704 = vsel %vm689, %v701, %v703
        %v705 = vrot.slane %v659, 7
        %v706 = vsel %vm689, %v703, %v705
        %v707 = vrot.slane %v660, 7
        %v708 = vsel %vm689, %v705, %v707
        %v709 = vrot.slane %v661, 7
        %v710 = vsel %vm689, %v707, %v709
        %v711 = vrot.slane %v662, 7
        %v712 = vsel %vm689, %v709, %v711
        %v713 = vrot.slane %v663, 7
        %v714 = vsel %vm689, %v711, %v713
        %v715 = vrot.slane %v664, 7
        %v716 = vsel %vm689, %v713, %v715
        %v717 = vrot.slane %v665, 7
        %v718 = vsel %vm689, %v715, %v717
        %v719 = vrot.slane %v666, 7
        %v720 = vsel %vm689, %v717, %v719
        %v721 = vrot.slane %v667, 7
        %v722 = vsel %vm689, %v719, %v721
        %v723 = vrot.slane %v668, 7
        %v724 = vsel %vm689, %v721, %v723
        %v725 = vrot.slane %v491, 7
        %v726 = vsel %vm689, %v723, %v725
        %v727 = vrot.slane %v492, 7
        %v728 = vsel %vm689, %v725, %v727
        %v749 = vsel %vm689, 0.0, %v690
        %vm750 = vcmask 1046528
        %v751 = vrot.slane %v463, 1
        %v752 = vrot.slane %v464, 1
        %v753 = vsel %vm750, %v751, %v752
        %v754 = vrot.slane %v653, 1
        %v755 = vsel %vm750, %v752, %v754
        %v756 = vrot.slane %v654, 1
        %v757 = vsel %vm750, %v754, %v756
        %v758 = vrot.slane %v655, 1
        %v759 = vsel %vm750, %v756, %v758
        %v760 = vrot.slane %v656, 1
        %v761 = vsel %vm750, %v758, %v760
        %v762 = vrot.slane %v657, 1
        %v763 = vsel %vm750, %v760, %v762
        %v764 = vrot.slane %v658, 1
        %v765 = vsel %vm750, %v762, %v764
        %v766 = vrot.slane %v659, 1
        %v767 = vsel %vm750, %v764, %v766
        %v768 = vrot.slane %v660, 1
        %v769 = vsel %vm750, %v766, %v768
        %v770 = vrot.slane %v661, 1
        %v771 = vsel %vm750, %v768, %v770
        %v772 = vrot.slane %v662, 1
        %v773 = vsel %vm750, %v770, %v772
        %v774 = vrot.slane %v663, 1
        %v775 = vsel %vm750, %v772, %v774
        %v776 = vrot.slane %v664, 1
        %v777 = vsel %vm750, %v774, %v776
        %v778 = vrot.slane %v665, 1
        %v779 = vsel %vm750, %v776, %v778
        %v780 = vrot.slane %v666, 1
        %v781 = vsel %vm750, %v778, %v780
        %v782 = vrot.slane %v667, 1
        %v783 = vsel %vm750, %v780, %v782
        %v784 = vrot.slane %v668, 1
        %v785 = vsel %vm750, %v782, %v784
        %v786 = vrot.slane %v491, 1
        %v787 = vsel %vm750, %v784, %v786
        %v788 = vrot.slane %v492, 1
        %v789 = vsel %vm750, %v786, %v788
        %v810 = vsel %vm750, %v788, 0.0
        %v811 = vlaneseq
        %v812 = vshrl.u32 %v811, 7
        %v813 = vadd.s32 %v812, 8
        %v814 = vadd.s32 %v812, 16
        %v815 = vadd.s32 %v812, 24
        %v816 = vadd.s32 %v812, 32
        %v817 = vadd.s32 %v812, 40
        %v818 = vadd.s32 %v812, 48
        %v819 = vadd.s32 %v812, 56
        %v820 = vadd.s32 %v812, 64
        %v821 = vadd.s32 %v812, 72
        %v822 = vadd.s32 %v812, 80
        %v823 = vadd.s32 %v812, 88
        %v824 = vadd.s32 %v812, 96
        %v825 = vadd.s32 %v812, 104
        %v826 = vadd.s32 %v812, 112
        %v827 = vadd.s32 %v812, 120
        %v828 = vadd.s32 %v812, 128
        %v829 = vadd.s32 %v812, 136
        %v830 = vadd.s32 %v812, 144
        %v831 = vadd.s32 %v812, 152
        %vm832 = vcmp.lt.s32.totalorder %v812, 0
        %v833 = vsub.s32 0, %v812
        %v834 = vsel %vm832, %v833, %v812
        %v835 = vshrl.u32 %v834, 4
        %v836 = vand.u32 %v834, 15
        %v837 = vsub.s32 0, %v836
        %v838 = vsel %vm832, %v837, %v836
        %vm839 = vcmp.lt.s32.totalorder %v813, 0
        %v840 = vsub.s32 0, %v813
        %v841 = vsel %vm839, %v840, %v813
        %v842 = vshrl.u32 %v841, 4
        %v843 = vand.u32 %v841, 15
        %v844 = vsub.s32 0, %v843
        %v845 = vsel %vm839, %v844, %v843
        %vm846 = vcmp.lt.s32.totalorder %v814, 0
        %v847 = vsub.s32 0, %v814
        %v848 = vsel %vm846, %v847, %v814
        %v849 = vshrl.u32 %v848, 4
        %v850 = vand.u32 %v848, 15
        %v851 = vsub.s32 0, %v850
        %v852 = vsel %vm846, %v851, %v850
        %vm853 = vcmp.lt.s32.totalorder %v815, 0
        %v854 = vsub.s32 0, %v815
        %v855 = vsel %vm853, %v854, %v815
        %v856 = vshrl.u32 %v855, 4
        %v857 = vand.u32 %v855, 15
        %v858 = vsub.s32 0, %v857
        %v859 = vsel %vm853, %v858, %v857
        %vm860 = vcmp.lt.s32.totalorder %v816, 0
        %v861 = vsub.s32 0, %v816
        %v862 = vsel %vm860, %v861, %v816
        %v863 = vshrl.u32 %v862, 4
        %v864 = vand.u32 %v862, 15
        %v865 = vsub.s32 0, %v864
        %v866 = vsel %vm860, %v865, %v864
        %vm867 = vcmp.lt.s32.totalorder %v817, 0
        %v868 = vsub.s32 0, %v817
        %v869 = vsel %vm867, %v868, %v817
        %v870 = vshrl.u32 %v869, 4
        %v871 = vand.u32 %v869, 15
        %v872 = vsub.s32 0, %v871
        %v873 = vsel %vm867, %v872, %v871
        %vm874 = vcmp.lt.s32.totalorder %v818, 0
        %v875 = vsub.s32 0, %v818
        %v876 = vsel %vm874, %v875, %v818
        %v877 = vshrl.u32 %v876, 4
        %v878 = vand.u32 %v876, 15
        %v879 = vsub.s32 0, %v878
        %v880 = vsel %vm874, %v879, %v878
        %vm881 = vcmp.lt.s32.totalorder %v819, 0
        %v882 = vsub.s32 0, %v819
        %v883 = vsel %vm881, %v882, %v819
        %v884 = vshrl.u32 %v883, 4
        %v885 = vand.u32 %v883, 15
        %v886 = vsub.s32 0, %v885
        %v887 = vsel %vm881, %v886, %v885
        %vm888 = vcmp.lt.s32.totalorder %v820, 0
        %v889 = vsub.s32 0, %v820
        %v890 = vsel %vm888, %v889, %v820
        %v891 = vshrl.u32 %v890, 4
        %v892 = vand.u32 %v890, 15
        %v893 = vsub.s32 0, %v892
        %v894 = vsel %vm888, %v893, %v892
        %vm895 = vcmp.lt.s32.totalorder %v821, 0
        %v896 = vsub.s32 0, %v821
        %v897 = vsel %vm895, %v896, %v821
        %v898 = vshrl.u32 %v897, 4
        %v899 = vand.u32 %v897, 15
        %v900 = vsub.s32 0, %v899
        %v901 = vsel %vm895, %v900, %v899
        %vm902 = vcmp.lt.s32.totalorder %v822, 0
        %v903 = vsub.s32 0, %v822
        %v904 = vsel %vm902, %v903, %v822
        %v905 = vshrl.u32 %v904, 4
        %v906 = vand.u32 %v904, 15
        %v907 = vsub.s32 0, %v906
        %v908 = vsel %vm902, %v907, %v906
        %vm909 = vcmp.lt.s32.totalorder %v823, 0
        %v910 = vsub.s32 0, %v823
        %v911 = vsel %vm909, %v910, %v823
        %v912 = vshrl.u32 %v911, 4
        %v913 = vand.u32 %v911, 15
        %v914 = vsub.s32 0, %v913
        %v915 = vsel %vm909, %v914, %v913
        %vm916 = vcmp.lt.s32.totalorder %v824, 0
        %v917 = vsub.s32 0, %v824
        %v918 = vsel %vm916, %v917, %v824
        %v919 = vshrl.u32 %v918, 4
        %v920 = vand.u32 %v918, 15
        %v921 = vsub.s32 0, %v920
        %v922 = vsel %vm916, %v921, %v920
        %vm923 = vcmp.lt.s32.totalorder %v825, 0
        %v924 = vsub.s32 0, %v825
        %v925 = vsel %vm923, %v924, %v825
        %v926 = vshrl.u32 %v925, 4
        %v927 = vand.u32 %v925, 15
        %v928 = vsub.s32 0, %v927
        %v929 = vsel %vm923, %v928, %v927
        %vm930 = vcmp.lt.s32.totalorder %v826, 0
        %v931 = vsub.s32 0, %v826
        %v932 = vsel %vm930, %v931, %v826
        %v933 = vshrl.u32 %v932, 4
        %v934 = vand.u32 %v932, 15
        %v935 = vsub.s32 0, %v934
        %v936 = vsel %vm930, %v935, %v934
        %vm937 = vcmp.lt.s32.totalorder %v827, 0
        %v938 = vsub.s32 0, %v827
        %v939 = vsel %vm937, %v938, %v827
        %v940 = vshrl.u32 %v939, 4
        %v941 = vand.u32 %v939, 15
        %v942 = vsub.s32 0, %v941
        %v943 = vsel %vm937, %v942, %v941
        %vm944 = vcmp.lt.s32.totalorder %v828, 0
        %v945 = vsub.s32 0, %v828
        %v946 = vsel %vm944, %v945, %v828
        %v947 = vshrl.u32 %v946, 4
        %v948 = vand.u32 %v946, 15
        %v949 = vsub.s32 0, %v948
        %v950 = vsel %vm944, %v949, %v948
        %vm951 = vcmp.lt.s32.totalorder %v829, 0
        %v952 = vsub.s32 0, %v829
        %v953 = vsel %vm951, %v952, %v829
        %v954 = vshrl.u32 %v953, 4
        %v955 = vand.u32 %v953, 15
        %v956 = vsub.s32 0, %v955
        %v957 = vsel %vm951, %v956, %v955
        %vm958 = vcmp.lt.s32.totalorder %v830, 0
        %v959 = vsub.s32 0, %v830
        %v960 = vsel %vm958, %v959, %v830
        %v961 = vshrl.u32 %v960, 4
        %v962 = vand.u32 %v960, 15
        %v963 = vsub.s32 0, %v962
        %v964 = vsel %vm958, %v963, %v962
        %vm965 = vcmp.lt.s32.totalorder %v831, 0
        %v966 = vsub.s32 0, %v831
        %v967 = vsel %vm965, %v966, %v831
        %v968 = vshrl.u32 %v967, 4
        %v969 = vand.u32 %v967, 15
        %v970 = vsub.s32 0, %v969
        %v971 = vsel %vm965, %v970, %v969
        %vm972 = vcmp.ne.s32.totalorder %v838, 0
        %vm973 = vcmp.ne.s32.totalorder %v845, 0
        %vm974 = vcmp.ne.s32.totalorder %v852, 0
        %vm975 = vcmp.ne.s32.totalorder %v859, 0
        %vm976 = vcmp.ne.s32.totalorder %v866, 0
        %vm977 = vcmp.ne.s32.totalorder %v873, 0
        %vm978 = vcmp.ne.s32.totalorder %v880, 0
        %vm979 = vcmp.ne.s32.totalorder %v887, 0
        %vm980 = vcmp.ne.s32.totalorder %v894, 0
        %vm981 = vcmp.ne.s32.totalorder %v901, 0
        %vm982 = vcmp.ne.s32.totalorder %v908, 0
        %vm983 = vcmp.ne.s32.totalorder %v915, 0
        %vm984 = vcmp.ne.s32.totalorder %v922, 0
        %vm985 = vcmp.ne.s32.totalorder %v929, 0
        %vm986 = vcmp.ne.s32.totalorder %v936, 0
        %vm987 = vcmp.ne.s32.totalorder %v943, 0
        %vm988 = vcmp.ne.s32.totalorder %v950, 0
        %vm989 = vcmp.ne.s32.totalorder %v957, 0
        %vm990 = vcmp.ne.s32.totalorder %v964, 0
        %vm991 = vcmp.ne.s32.totalorder %v971, 0
        %vm992 = vcmp.lt.s32.totalorder %v838, 0
        %vm993 = vcmp.lt.s32.totalorder %v845, 0
        %vm994 = vcmp.lt.s32.totalorder %v852, 0
        %vm995 = vcmp.lt.s32.totalorder %v859, 0
        %vm996 = vcmp.lt.s32.totalorder %v866, 0
        %vm997 = vcmp.lt.s32.totalorder %v873, 0
        %vm998 = vcmp.lt.s32.totalorder %v880, 0
        %vm999 = vcmp.lt.s32.totalorder %v887, 0
        %vm1000 = vcmp.lt.s32.totalorder %v894, 0
        %vm1001 = vcmp.lt.s32.totalorder %v901, 0
        %vm1002 = vcmp.lt.s32.totalorder %v908, 0
        %vm1003 = vcmp.lt.s32.totalorder %v915, 0
        %vm1004 = vcmp.lt.s32.totalorder %v922, 0
        %vm1005 = vcmp.lt.s32.totalorder %v929, 0
        %vm1006 = vcmp.lt.s32.totalorder %v936, 0
        %vm1007 = vcmp.lt.s32.totalorder %v943, 0
        %vm1008 = vcmp.lt.s32.totalorder %v950, 0
        %vm1009 = vcmp.lt.s32.totalorder %v957, 0
        %vm1010 = vcmp.lt.s32.totalorder %v964, 0
        %vm1011 = vcmp.lt.s32.totalorder %v971, 0
        %vm1012 = vmand %vm992, %vm972
        %vm1013 = vmand %vm993, %vm973
        %vm1014 = vmand %vm994, %vm974
        %vm1015 = vmand %vm995, %vm975
        %vm1016 = vmand %vm996, %vm976
        %vm1017 = vmand %vm997, %vm977
        %vm1018 = vmand %vm998, %vm978
        %vm1019 = vmand %vm999, %vm979
        %vm1020 = vmand %vm1000, %vm980
        %vm1021 = vmand %vm1001, %vm981
        %vm1022 = vmand %vm1002, %vm982
        %vm1023 = vmand %vm1003, %vm983
        %vm1024 = vmand %vm1004, %vm984
        %vm1025 = vmand %vm1005, %vm985
        %vm1026 = vmand %vm1006, %vm986
        %vm1027 = vmand %vm1007, %vm987
        %vm1028 = vmand %vm1008, %vm988
        %vm1029 = vmand %vm1009, %vm989
        %vm1030 = vmand %vm1010, %vm990
        %vm1031 = vmand %vm1011, %vm991
        %v1032 = vadd.s32 %v838, 16
        %v1033 = vadd.s32 %v845, 16
        %v1034 = vadd.s32 %v852, 16
        %v1035 = vadd.s32 %v859, 16
        %v1036 = vadd.s32 %v866, 16
        %v1037 = vadd.s32 %v873, 16
        %v1038 = vadd.s32 %v880, 16
        %v1039 = vadd.s32 %v887, 16
        %v1040 = vadd.s32 %v894, 16
        %v1041 = vadd.s32 %v901, 16
        %v1042 = vadd.s32 %v908, 16
        %v1043 = vadd.s32 %v915, 16
        %v1044 = vadd.s32 %v922, 16
        %v1045 = vadd.s32 %v929, 16
        %v1046 = vadd.s32 %v936, 16
        %v1047 = vadd.s32 %v943, 16
        %v1048 = vadd.s32 %v950, 16
        %v1049 = vadd.s32 %v957, 16
        %v1050 = vadd.s32 %v964, 16
        %v1051 = vadd.s32 %v971, 16
        %v1052 = vsel %vm1012, %v1032, %v838
        %v1053 = vsel %vm1013, %v1033, %v845
        %v1054 = vsel %vm1014, %v1034, %v852
        %v1055 = vsel %vm1015, %v1035, %v859
        %v1056 = vsel %vm1016, %v1036, %v866
        %v1057 = vsel %vm1017, %v1037, %v873
        %v1058 = vsel %vm1018, %v1038, %v880
        %v1059 = vsel %vm1019, %v1039, %v887
        %v1060 = vsel %vm1020, %v1040, %v894
        %v1061 = vsel %vm1021, %v1041, %v901
        %v1062 = vsel %vm1022, %v1042, %v908
        %v1063 = vsel %vm1023, %v1043, %v915
        %v1064 = vsel %vm1024, %v1044, %v922
        %v1065 = vsel %vm1025, %v1045, %v929
        %v1066 = vsel %vm1026, %v1046, %v936
        %v1067 = vsel %vm1027, %v1047, %v943
        %v1068 = vsel %vm1028, %v1048, %v950
        %v1069 = vsel %vm1029, %v1049, %v957
        %v1070 = vsel %vm1030, %v1050, %v964
        %v1071 = vsel %vm1031, %v1051, %v971
        %vm1072 = vcmp.eq.s32.totalorder %v1052, 0
        %vm1073 = vcmp.eq.s32.totalorder %v1053, 0
        %vm1074 = vcmp.eq.s32.totalorder %v1054, 0
        %vm1075 = vcmp.eq.s32.totalorder %v1055, 0
        %vm1076 = vcmp.eq.s32.totalorder %v1056, 0
        %vm1077 = vcmp.eq.s32.totalorder %v1057, 0
        %vm1078 = vcmp.eq.s32.totalorder %v1058, 0
        %vm1079 = vcmp.eq.s32.totalorder %v1059, 0
        %vm1080 = vcmp.eq.s32.totalorder %v1060, 0
        %vm1081 = vcmp.eq.s32.totalorder %v1061, 0
        %vm1082 = vcmp.eq.s32.totalorder %v1062, 0
        %vm1083 = vcmp.eq.s32.totalorder %v1063, 0
        %vm1084 = vcmp.eq.s32.totalorder %v1064, 0
        %vm1085 = vcmp.eq.s32.totalorder %v1065, 0
        %vm1086 = vcmp.eq.s32.totalorder %v1066, 0
        %vm1087 = vcmp.eq.s32.totalorder %v1067, 0
        %vm1088 = vcmp.eq.s32.totalorder %v1068, 0
        %vm1089 = vcmp.eq.s32.totalorder %v1069, 0
        %vm1090 = vcmp.eq.s32.totalorder %v1070, 0
        %vm1091 = vcmp.eq.s32.totalorder %v1071, 0
        %v1092 = vsel %vm1072, 1, 0
        %v1093 = vsel %vm1073, 1, 0
        %v1094 = vsel %vm1074, 1, 0
        %v1095 = vsel %vm1075, 1, 0
        %v1096 = vsel %vm1076, 1, 0
        %v1097 = vsel %vm1077, 1, 0
        %v1098 = vsel %vm1078, 1, 0
        %v1099 = vsel %vm1079, 1, 0
        %v1100 = vsel %vm1080, 1, 0
        %v1101 = vsel %vm1081, 1, 0
        %v1102 = vsel %vm1082, 1, 0
        %v1103 = vsel %vm1083, 1, 0
        %v1104 = vsel %vm1084, 1, 0
        %v1105 = vsel %vm1085, 1, 0
        %v1106 = vsel %vm1086, 1, 0
        %v1107 = vsel %vm1087, 1, 0
        %v1108 = vsel %vm1088, 1, 0
        %v1109 = vsel %vm1089, 1, 0
        %v1110 = vsel %vm1090, 1, 0
        %v1111 = vsel %vm1091, 1, 0
        %vm1112 = vcmp.eq.s32.totalorder %v1092, 1
        %vm1113 = vcmp.eq.s32.totalorder %v1093, 1
        %vm1114 = vcmp.eq.s32.totalorder %v1094, 1
        %vm1115 = vcmp.eq.s32.totalorder %v1095, 1
        %vm1116 = vcmp.eq.s32.totalorder %v1096, 1
        %vm1117 = vcmp.eq.s32.totalorder %v1097, 1
        %vm1118 = vcmp.eq.s32.totalorder %v1098, 1
        %vm1119 = vcmp.eq.s32.totalorder %v1099, 1
        %vm1120 = vcmp.eq.s32.totalorder %v1100, 1
        %vm1121 = vcmp.eq.s32.totalorder %v1101, 1
        %vm1122 = vcmp.eq.s32.totalorder %v1102, 1
        %vm1123 = vcmp.eq.s32.totalorder %v1103, 1
        %vm1124 = vcmp.eq.s32.totalorder %v1104, 1
        %vm1125 = vcmp.eq.s32.totalorder %v1105, 1
        %vm1126 = vcmp.eq.s32.totalorder %v1106, 1
        %vm1127 = vcmp.eq.s32.totalorder %v1107, 1
        %vm1128 = vcmp.eq.s32.totalorder %v1108, 1
        %vm1129 = vcmp.eq.s32.totalorder %v1109, 1
        %vm1130 = vcmp.eq.s32.totalorder %v1110, 1
        %vm1131 = vcmp.eq.s32.totalorder %v1111, 1
        %v1132 = vsel %vm1112, 0.0, %v749
        %v1133 = vsel %vm1113, 0.0, %v692
        %v1134 = vsel %vm1114, 0.0, %v694
        %v1135 = vsel %vm1115, 0.0, %v696
        %v1136 = vsel %vm1116, 0.0, %v698
        %v1137 = vsel %vm1117, 0.0, %v700
        %v1138 = vsel %vm1118, 0.0, %v702
        %v1139 = vsel %vm1119, 0.0, %v704
        %v1140 = vsel %vm1120, 0.0, %v706
        %v1141 = vsel %vm1121, 0.0, %v708
        %v1142 = vsel %vm1122, 0.0, %v710
        %v1143 = vsel %vm1123, 0.0, %v712
        %v1144 = vsel %vm1124, 0.0, %v714
        %v1145 = vsel %vm1125, 0.0, %v716
        %v1146 = vsel %vm1126, 0.0, %v718
        %v1147 = vsel %vm1127, 0.0, %v720
        %v1148 = vsel %vm1128, 0.0, %v722
        %v1149 = vsel %vm1129, 0.0, %v724
        %v1150 = vsel %vm1130, 0.0, %v726
        %v1151 = vsel %vm1131, 0.0, %v728
        %v1152 = vpack.c.bf16 %v1133, %v1132
        %v1153 = vpack.c.bf16 %v1135, %v1134
        %v1154 = vpack.c.bf16 %v1137, %v1136
        %v1155 = vpack.c.bf16 %v1139, %v1138
        %v1156 = vpack.c.bf16 %v1141, %v1140
        %v1157 = vpack.c.bf16 %v1143, %v1142
        %v1158 = vpack.c.bf16 %v1145, %v1144
        %v1159 = vpack.c.bf16 %v1147, %v1146
        %v1160 = vpack.c.bf16 %v1149, %v1148
        %v1161 = vpack.c.bf16 %v1151, %v1150
        %vm1162 = vcmp.eq.s32.totalorder %v1052, 15
        %vm1163 = vcmp.eq.s32.totalorder %v1053, 15
        %vm1164 = vcmp.eq.s32.totalorder %v1054, 15
        %vm1165 = vcmp.eq.s32.totalorder %v1055, 15
        %vm1166 = vcmp.eq.s32.totalorder %v1056, 15
        %vm1167 = vcmp.eq.s32.totalorder %v1057, 15
        %vm1168 = vcmp.eq.s32.totalorder %v1058, 15
        %vm1169 = vcmp.eq.s32.totalorder %v1059, 15
        %vm1170 = vcmp.eq.s32.totalorder %v1060, 15
        %vm1171 = vcmp.eq.s32.totalorder %v1061, 15
        %vm1172 = vcmp.eq.s32.totalorder %v1062, 15
        %vm1173 = vcmp.eq.s32.totalorder %v1063, 15
        %vm1174 = vcmp.eq.s32.totalorder %v1064, 15
        %vm1175 = vcmp.eq.s32.totalorder %v1065, 15
        %vm1176 = vcmp.eq.s32.totalorder %v1066, 15
        %vm1177 = vcmp.eq.s32.totalorder %v1067, 15
        %vm1178 = vcmp.eq.s32.totalorder %v1068, 15
        %vm1179 = vcmp.eq.s32.totalorder %v1069, 15
        %vm1180 = vcmp.eq.s32.totalorder %v1070, 15
        %vm1181 = vcmp.eq.s32.totalorder %v1071, 15
        %v1182 = vsel %vm1162, 1, 0
        %v1183 = vsel %vm1163, 1, 0
        %v1184 = vsel %vm1164, 1, 0
        %v1185 = vsel %vm1165, 1, 0
        %v1186 = vsel %vm1166, 1, 0
        %v1187 = vsel %vm1167, 1, 0
        %v1188 = vsel %vm1168, 1, 0
        %v1189 = vsel %vm1169, 1, 0
        %v1190 = vsel %vm1170, 1, 0
        %v1191 = vsel %vm1171, 1, 0
        %v1192 = vsel %vm1172, 1, 0
        %v1193 = vsel %vm1173, 1, 0
        %v1194 = vsel %vm1174, 1, 0
        %v1195 = vsel %vm1175, 1, 0
        %v1196 = vsel %vm1176, 1, 0
        %v1197 = vsel %vm1177, 1, 0
        %v1198 = vsel %vm1178, 1, 0
        %v1199 = vsel %vm1179, 1, 0
        %v1200 = vsel %vm1180, 1, 0
        %v1201 = vsel %vm1181, 1, 0
        %vm1202 = vcmp.eq.s32.totalorder %v1182, 1
        %vm1203 = vcmp.eq.s32.totalorder %v1183, 1
        %vm1204 = vcmp.eq.s32.totalorder %v1184, 1
        %vm1205 = vcmp.eq.s32.totalorder %v1185, 1
        %vm1206 = vcmp.eq.s32.totalorder %v1186, 1
        %vm1207 = vcmp.eq.s32.totalorder %v1187, 1
        %vm1208 = vcmp.eq.s32.totalorder %v1188, 1
        %vm1209 = vcmp.eq.s32.totalorder %v1189, 1
        %vm1210 = vcmp.eq.s32.totalorder %v1190, 1
        %vm1211 = vcmp.eq.s32.totalorder %v1191, 1
        %vm1212 = vcmp.eq.s32.totalorder %v1192, 1
        %vm1213 = vcmp.eq.s32.totalorder %v1193, 1
        %vm1214 = vcmp.eq.s32.totalorder %v1194, 1
        %vm1215 = vcmp.eq.s32.totalorder %v1195, 1
        %vm1216 = vcmp.eq.s32.totalorder %v1196, 1
        %vm1217 = vcmp.eq.s32.totalorder %v1197, 1
        %vm1218 = vcmp.eq.s32.totalorder %v1198, 1
        %vm1219 = vcmp.eq.s32.totalorder %v1199, 1
        %vm1220 = vcmp.eq.s32.totalorder %v1200, 1
        %vm1221 = vcmp.eq.s32.totalorder %v1201, 1
        %v1222 = vsel %vm1202, 0.0, %v753
        %v1223 = vsel %vm1203, 0.0, %v755
        %v1224 = vsel %vm1204, 0.0, %v757
        %v1225 = vsel %vm1205, 0.0, %v759
        %v1226 = vsel %vm1206, 0.0, %v761
        %v1227 = vsel %vm1207, 0.0, %v763
        %v1228 = vsel %vm1208, 0.0, %v765
        %v1229 = vsel %vm1209, 0.0, %v767
        %v1230 = vsel %vm1210, 0.0, %v769
        %v1231 = vsel %vm1211, 0.0, %v771
        %v1232 = vsel %vm1212, 0.0, %v773
        %v1233 = vsel %vm1213, 0.0, %v775
        %v1234 = vsel %vm1214, 0.0, %v777
        %v1235 = vsel %vm1215, 0.0, %v779
        %v1236 = vsel %vm1216, 0.0, %v781
        %v1237 = vsel %vm1217, 0.0, %v783
        %v1238 = vsel %vm1218, 0.0, %v785
        %v1239 = vsel %vm1219, 0.0, %v787
        %v1240 = vsel %vm1220, 0.0, %v789
        %v1241 = vsel %vm1221, 0.0, %v810
        %v1242 = vpack.c.bf16 %v1223, %v1222
        %v1243 = vpack.c.bf16 %v1225, %v1224
        %v1244 = vpack.c.bf16 %v1227, %v1226
        %v1245 = vpack.c.bf16 %v1229, %v1228
        %v1246 = vpack.c.bf16 %v1231, %v1230
        %v1247 = vpack.c.bf16 %v1233, %v1232
        %v1248 = vpack.c.bf16 %v1235, %v1234
        %v1249 = vpack.c.bf16 %v1237, %v1236
        %v1250 = vpack.c.bf16 %v1239, %v1238
        %v1251 = vpack.c.bf16 %v1241, %v1240
        %v1252 = vpack.c.bf16 %v464, %v463
        %v1253 = vpack.c.bf16 %v654, %v653
        %v1254 = vpack.c.bf16 %v656, %v655
        %v1255 = vpack.c.bf16 %v658, %v657
        %v1256 = vpack.c.bf16 %v660, %v659
        %v1257 = vpack.c.bf16 %v662, %v661
        %v1258 = vpack.c.bf16 %v664, %v663
        %v1259 = vpack.c.bf16 %v666, %v665
        %v1260 = vpack.c.bf16 %v668, %v667
        %v1261 = vpack.c.bf16 %v492, %v491
        %1272 = vrot.lane.b32.xlu0 %v1252, 64
        %v1273 = vpop.permute.xlu0 %1272
        %1274 = vrot.lane.b32.xlu0 %v1253, 64
        %v1275 = vpop.permute.xlu0 %1274
        %1276 = vrot.lane.b32.xlu0 %v1254, 64
        %v1277 = vpop.permute.xlu0 %1276
        %1278 = vrot.lane.b32.xlu0 %v1255, 64
        %v1279 = vpop.permute.xlu0 %1278
        %1280 = vrot.lane.b32.xlu0 %v1256, 64
        %v1281 = vpop.permute.xlu0 %1280
        %1282 = vrot.lane.b32.xlu0 %v1257, 64
        %v1283 = vpop.permute.xlu0 %1282
        %1284 = vrot.lane.b32.xlu0 %v1258, 64
        %v1285 = vpop.permute.xlu0 %1284
        %1286 = vrot.lane.b32.xlu0 %v1259, 64
        %v1287 = vpop.permute.xlu0 %1286
        %1288 = vrot.lane.b32.xlu0 %v1260, 64
        %v1289 = vpop.permute.xlu0 %1288
        %1290 = vrot.lane.b32.xlu0 %v1261, 64
        %v1291 = vpop.permute.xlu0 %1290
        %vm1292 = vcmask 523264
        %v1295 = vsel %vm1292, %v1152, %v1273
        %v1299 = vsel %vm1292, %v1153, %v1275
        %v1303 = vsel %vm1292, %v1154, %v1277
        %v1307 = vsel %vm1292, %v1155, %v1279
        %v1311 = vsel %vm1292, %v1156, %v1281
        %v1315 = vsel %vm1292, %v1157, %v1283
        %v1319 = vsel %vm1292, %v1158, %v1285
        %v1323 = vsel %vm1292, %v1159, %v1287
        %v1327 = vsel %vm1292, %v1160, %v1289
        %v1331 = vsel %vm1292, %v1161, %v1291
        %v1333 = vld [vmem:[%s4] sm:$0xf]
        %v1334 = vld [vmem:[%s4 + $0x4] sm:$0xf]
        %v1335 = vld [vmem:[%s4 + $0x8] sm:$0xf]
        %v1336 = vld [vmem:[%s4 + $0xc] sm:$0xf]
        %v1337 = vld [vmem:[%s4 + $0x10] sm:$0xf]
        %v1338 = vld [vmem:[%s4 + $0x14] sm:$0xf]
        %v1339 = vld [vmem:[%s4 + $0x18] sm:$0xf]
        %v1340 = vld [vmem:[%s4 + $0x1c] sm:$0xf]
        %v1341 = vld [vmem:[%s4 + $0x20] sm:$0xf]
        %v1342 = vld [vmem:[%s4 + $0x24] sm:$0xf]
        %v1343 = vld [vmem:[%s4 + $0x28] sm:$0xf]
        %v1344 = vld [vmem:[%s4 + $0x2c] sm:$0xf]
        %v1345 = vld [vmem:[%s4 + $0x30] sm:$0xf]
        %v1346 = vld [vmem:[%s4 + $0x34] sm:$0xf]
        %v1347 = vld [vmem:[%s4 + $0x38] sm:$0xf]
        %v1348 = vld [vmem:[%s4 + $0x3c] sm:$0xf]
        %v1349 = vld [vmem:[%s4 + $0x40] sm:$0xf]
        %v1350 = vld [vmem:[%s4 + $0x44] sm:$0xf]
        %v1351 = vld [vmem:[%s4 + $0x48] sm:$0xf]
        %v1352 = vld [vmem:[%s4 + $0x4c] sm:$0xf]
        %v1353 = vld [vmem:[%s4 + $0x50] sm:$0xf]
        %v1354 = vld [vmem:[%s4 + $0x54] sm:$0xf]
        %v1355 = vld [vmem:[%s4 + $0x58] sm:$0xf]
        %v1356 = vld [vmem:[%s4 + $0x5c] sm:$0xf]
        %s1357 = scalar_lea.vmem %s4, 96
        %v1358 = vld [vmem:[%s1357] sm:$0xf]
        %v1359 = vld [vmem:[%s1357 + $0x4] sm:$0xf]
        %v1360 = vld [vmem:[%s1357 + $0x8] sm:$0xf]
        %v1361 = vld [vmem:[%s1357 + $0xc] sm:$0xf]
        %v1362 = vld [vmem:[%s1357 + $0x10] sm:$0xf]
        %v1363 = vld [vmem:[%s1357 + $0x14] sm:$0xf]
        %v1364 = vld [vmem:[%s1357 + $0x18] sm:$0xf]
        %v1365 = vld [vmem:[%s1357 + $0x1c] sm:$0xf]
        %v1366 = vld [vmem:[%s1357 + $0x20] sm:$0xf]
        %v1367 = vld [vmem:[%s1357 + $0x24] sm:$0xf]
        %v1368 = vld [vmem:[%s1357 + $0x28] sm:$0xf]
        %v1369 = vld [vmem:[%s1357 + $0x2c] sm:$0xf]
        %v1370 = vld [vmem:[%s1357 + $0x30] sm:$0xf]
        %v1371 = vld [vmem:[%s1357 + $0x34] sm:$0xf]
        %v1372 = vld [vmem:[%s1357 + $0x38] sm:$0xf]
        %v1373 = vld [vmem:[%s1357 + $0x3c] sm:$0xf]
        %v1374 = vld [vmem:[%s1357 + $0x40] sm:$0xf]
        %v1375 = vld [vmem:[%s1357 + $0x44] sm:$0xf]
        %v1376 = vld [vmem:[%s1357 + $0x48] sm:$0xf]
        %v1377 = vld [vmem:[%s1357 + $0x4c] sm:$0xf]
        %v1378 = vld [vmem:[%s1357 + $0x50] sm:$0xf]
        %v1379 = vld [vmem:[%s1357 + $0x54] sm:$0xf]
        %v1380 = vld [vmem:[%s1357 + $0x58] sm:$0xf]
        %v1381 = vld [vmem:[%s1357 + $0x5c] sm:$0xf]
        %v1406 = vunpack.c.l.b16 %v1358
        %v1407 = vunpack.c.l.b16 %v1359
        %v1408 = vunpack.c.l.b16 %v1360
        %v1409 = vunpack.c.l.b16 %v1361
        %v1410 = vunpack.c.l.b16 %v1362
        %v1411 = vunpack.c.l.b16 %v1363
        %v1412 = vunpack.c.l.b16 %v1364
        %v1413 = vunpack.c.l.b16 %v1365
        %v1414 = vunpack.c.l.b16 %v1366
        %v1415 = vunpack.c.l.b16 %v1367
        %v1416 = vunpack.c.l.b16 %v1368
        %v1417 = vunpack.c.l.b16 %v1369
        %v1418 = vunpack.c.l.b16 %v1370
        %v1419 = vunpack.c.l.b16 %v1371
        %v1420 = vunpack.c.l.b16 %v1372
        %v1421 = vunpack.c.l.b16 %v1373
        %v1422 = vunpack.c.l.b16 %v1374
        %v1423 = vunpack.c.l.b16 %v1375
        %v1424 = vunpack.c.l.b16 %v1376
        %v1425 = vunpack.c.l.b16 %v1377
        %v1426 = vunpack.c.l.b16 %v1378
        %v1427 = vunpack.c.l.b16 %v1379
        %v1428 = vunpack.c.l.b16 %v1380
        %v1429 = vunpack.c.l.b16 %v1381
        %v1430 = vpack.c.b16 %v1407, %v1406
        %v1431 = vpack.c.b16 %v1409, %v1408
        %v1432 = vpack.c.b16 %v1411, %v1410
        %v1433 = vpack.c.b16 %v1413, %v1412
        %v1434 = vpack.c.b16 %v1415, %v1414
        %v1435 = vpack.c.b16 %v1417, %v1416
        %v1436 = vpack.c.b16 %v1419, %v1418
        %v1437 = vpack.c.b16 %v1421, %v1420
        %v1438 = vpack.c.b16 %v1423, %v1422
        %v1439 = vpack.c.b16 %v1425, %v1424
        %v1440 = vpack.c.b16 %v1427, %v1426
        %v1441 = vpack.c.b16 %v1429, %v1428
        %v1455 = vsel %vm1292, %v1243, 0
        %v1458 = vsel %vm1292, %v1244, 0
        %v1461 = vsel %vm1292, %v1245, 0
        %v1464 = vsel %vm1292, %v1246, 0
        %v1467 = vsel %vm1292, %v1247, 0
        %v1470 = vsel %vm1292, %v1248, 0
        %v1473 = vsel %vm1292, %v1249, 0
        %v1476 = vsel %vm1292, %v1250, 0
        %1478 = vmatprep.subr.bf16.mxu0 0
        %1479 = vmatpush1.bf16.msra.mxu0 %v1430
        %1480 = vmatprep.subr.bf16.mxu0 0
        %1481 = vmatpush1.bf16.msra.mxu0 %v1431
        %1482 = vmatprep.subr.bf16.mxu0 0
        %1483 = vmatpush1.bf16.msra.mxu0 %v1432
        %1484 = vmatprep.subr.bf16.mxu0 0
        %1485 = vmatpush1.bf16.msra.mxu0 %v1433
        %1486 = vmatprep.subr.bf16.mxu0 0
        %1487 = vmatpush1.bf16.msra.mxu0 %v1434
        %1488 = vmatprep.subr.bf16.mxu0 0
        %1489 = vmatpush1.bf16.msra.mxu0 %v1435
        %1490 = vmatprep.subr.bf16.mxu0 0
        %1491 = vmatpush1.bf16.msra.mxu0 %v1436
        %1492 = vmatprep.subr.bf16.mxu0 0
        %1493 = vmatpush1.bf16.msra.mxu0 %v1437
        %1494 = vmatprep.subr.bf16.mxu0 0
        %1495 = vmatpush1.bf16.msra.mxu0 %v1438
        %1496 = vmatprep.subr.bf16.mxu0 0
        %1497 = vmatpush1.bf16.msra.mxu0 %v1439
        %1498 = vmatprep.subr.bf16.mxu0 0
        %1499 = vmatpush1.bf16.msra.mxu0 %v1440
        %1500 = vmatprep.subr.bf16.mxu0 0
        %1501 = vmatpush1.bf16.msra.mxu0 %v1441
        %1502 = vmatprep.subr.bf16.mxu0 0
        %1503 = vmatpush1.bf16.msra.mxu0 0
        %1504 = vmatprep.subr.bf16.mxu0 0
        %1505 = vmatpush1.bf16.msra.mxu0 0
        %1506 = vmatprep.subr.bf16.mxu0 0
        %1507 = vmatpush1.bf16.msra.mxu0 0
        %1508 = vmatprep.subr.bf16.mxu0 0
        %1509 = vmatpush1.bf16.msra.mxu0 0
        %1510 = vmatprep.mubr.bf16.mxu0 %v1455
        %1511 = vmatmul.mubr.bf16.gmra.mrb[0].mxu0 %v1299
        %v1512 = vpop.f32.mrb[0].mxu0
        %v1513 = vadd.f32 0.0, %v1512
        %v1514 = vpop.f32.mrb[0].mxu0
        %v1515 = vpop.f32.mrb[0].mxu0
        %v1516 = vadd.f32 0.0, %v1515
        %v1517 = vpop.f32.mrb[0].mxu0
        %1518 = vmatprep.mubr.bf16.mxu0 %v1458
        %1519 = vmatmul.mubr.bf16.gmra.mrb[0].mxu0 %v1303
        %v1520 = vpop.f32.mrb[0].mxu0
        %v1521 = vadd.f32 0.0, %v1520
        %v1522 = vpop.f32.mrb[0].mxu0
        %v1523 = vpop.f32.mrb[0].mxu0
        %v1524 = vadd.f32 0.0, %v1523
        %v1525 = vpop.f32.mrb[0].mxu0
        %1526 = vmatprep.mubr.bf16.mxu0 %v1461
        %1527 = vmatmul.mubr.bf16.gmra.mrb[0].mxu0 %v1307
        %v1528 = vpop.f32.mrb[0].mxu0
        %v1529 = vadd.f32 0.0, %v1528
        %v1530 = vpop.f32.mrb[0].mxu0
        %v1531 = vpop.f32.mrb[0].mxu0
        %v1532 = vadd.f32 0.0, %v1531
        %v1533 = vpop.f32.mrb[0].mxu0
        %1534 = vmatprep.mubr.bf16.mxu0 %v1464
        %1535 = vmatmul.mubr.bf16.gmra.mrb[0].mxu0 %v1311
        %v1536 = vpop.f32.mrb[0].mxu0
        %v1537 = vadd.f32 0.0, %v1536
        %v1538 = vpop.f32.mrb[0].mxu0
        %v1539 = vpop.f32.mrb[0].mxu0
        %v1540 = vadd.f32 0.0, %v1539
        %v1541 = vpop.f32.mrb[0].mxu0
        %1542 = vmatprep.mubr.bf16.mxu0 %v1467
        %1543 = vmatmul.mubr.bf16.gmra.mrb[0].mxu0 %v1315
        %v1544 = vpop.f32.mrb[0].mxu0
        %v1545 = vadd.f32 0.0, %v1544
        %v1546 = vpop.f32.mrb[0].mxu0
        %v1547 = vpop.f32.mrb[0].mxu0
        %v1548 = vadd.f32 0.0, %v1547
        %v1549 = vpop.f32.mrb[0].mxu0
        %1550 = vmatprep.mubr.bf16.mxu0 %v1470
        %1551 = vmatmul.mubr.bf16.gmra.mrb[0].mxu0 %v1319
        %v1552 = vpop.f32.mrb[0].mxu0
        %v1553 = vadd.f32 0.0, %v1552
        %v1554 = vpop.f32.mrb[0].mxu0
        %v1555 = vpop.f32.mrb[0].mxu0
        %v1556 = vadd.f32 0.0, %v1555
        %v1557 = vpop.f32.mrb[0].mxu0
        %1558 = vmatprep.mubr.bf16.mxu0 %v1473
        %1559 = vmatmul.mubr.bf16.gmra.mrb[0].mxu0 %v1323
        %v1560 = vpop.f32.mrb[0].mxu0
        %v1561 = vadd.f32 0.0, %v1560
        %v1562 = vpop.f32.mrb[0].mxu0
        %v1563 = vpop.f32.mrb[0].mxu0
        %v1564 = vadd.f32 0.0, %v1563
        %v1565 = vpop.f32.mrb[0].mxu0
        %1566 = vmatprep.mubr.bf16.mxu0 %v1476
        %1567 = vmatmul.mubr.bf16.gmra.mrb[0].mxu0 %v1327
        %v1568 = vpop.f32.mrb[0].mxu0
        %v1569 = vadd.f32 0.0, %v1568
        %v1570 = vpop.f32.mrb[0].mxu0
        %v1571 = vpop.f32.mrb[0].mxu0
        %v1572 = vadd.f32 0.0, %v1571
        %v1573 = vpop.f32.mrb[0].mxu0
        %1574 = vdwg.mxu0
        %v1599 = vunpack.c.l.b16 %v1333
        %v1600 = vunpack.c.l.b16 %v1334
        %v1601 = vunpack.c.l.b16 %v1335
        %v1602 = vunpack.c.l.b16 %v1336
        %v1603 = vunpack.c.l.b16 %v1337
        %v1604 = vunpack.c.l.b16 %v1338
        %v1605 = vunpack.c.l.b16 %v1339
        %v1606 = vunpack.c.l.b16 %v1340
        %v1607 = vunpack.c.l.b16 %v1341
        %v1608 = vunpack.c.l.b16 %v1342
        %v1609 = vunpack.c.l.b16 %v1343
        %v1610 = vunpack.c.l.b16 %v1344
        %v1611 = vunpack.c.l.b16 %v1345
        %v1612 = vunpack.c.l.b16 %v1346
        %v1613 = vunpack.c.l.b16 %v1347
        %v1614 = vunpack.c.l.b16 %v1348
        %v1615 = vunpack.c.l.b16 %v1349
        %v1616 = vunpack.c.l.b16 %v1350
        %v1617 = vunpack.c.l.b16 %v1351
        %v1618 = vunpack.c.l.b16 %v1352
        %v1619 = vunpack.c.l.b16 %v1353
        %v1620 = vunpack.c.l.b16 %v1354
        %v1621 = vunpack.c.l.b16 %v1355
        %v1622 = vunpack.c.l.b16 %v1356
        %v1623 = vpack.c.b16 %v1600, %v1599
        %v1624 = vpack.c.b16 %v1602, %v1601
        %v1625 = vpack.c.b16 %v1604, %v1603
        %v1626 = vpack.c.b16 %v1606, %v1605
        %v1627 = vpack.c.b16 %v1608, %v1607
        %v1628 = vpack.c.b16 %v1610, %v1609
        %v1629 = vpack.c.b16 %v1612, %v1611
        %v1630 = vpack.c.b16 %v1614, %v1613
        %v1631 = vpack.c.b16 %v1616, %v1615
        %v1632 = vpack.c.b16 %v1618, %v1617
        %v1633 = vpack.c.b16 %v1620, %v1619
        %v1634 = vpack.c.b16 %v1622, %v1621
        %v1648 = vsel %vm1292, %v1242, 0
        %1650 = vmatprep.subr.bf16.mxu0 0
        %1651 = vmatpush1.bf16.msra.mxu0 %v1623
        %1652 = vmatprep.subr.bf16.mxu0 0
        %1653 = vmatpush1.bf16.msra.mxu0 %v1624
        %1654 = vmatprep.subr.bf16.mxu0 0
        %1655 = vmatpush1.bf16.msra.mxu0 %v1625
        %1656 = vmatprep.subr.bf16.mxu0 0
        %1657 = vmatpush1.bf16.msra.mxu0 %v1626
        %1658 = vmatprep.subr.bf16.mxu0 0
        %1659 = vmatpush1.bf16.msra.mxu0 %v1627
        %1660 = vmatprep.subr.bf16.mxu0 0
        %1661 = vmatpush1.bf16.msra.mxu0 %v1628
        %1662 = vmatprep.subr.bf16.mxu0 0
        %1663 = vmatpush1.bf16.msra.mxu0 %v1629
        %1664 = vmatprep.subr.bf16.mxu0 0
        %1665 = vmatpush1.bf16.msra.mxu0 %v1630
        %1666 = vmatprep.subr.bf16.mxu0 0
        %1667 = vmatpush1.bf16.msra.mxu0 %v1631
        %1668 = vmatprep.subr.bf16.mxu0 0
        %1669 = vmatpush1.bf16.msra.mxu0 %v1632
        %1670 = vmatprep.subr.bf16.mxu0 0
        %1671 = vmatpush1.bf16.msra.mxu0 %v1633
        %1672 = vmatprep.subr.bf16.mxu0 0
        %1673 = vmatpush1.bf16.msra.mxu0 %v1634
        %1674 = vmatprep.subr.bf16.mxu0 0
        %1675 = vmatpush1.bf16.msra.mxu0 0
        %1676 = vmatprep.subr.bf16.mxu0 0
        %1677 = vmatpush1.bf16.msra.mxu0 0
        %1678 = vmatprep.subr.bf16.mxu0 0
        %1679 = vmatpush1.bf16.msra.mxu0 0
        %1680 = vmatprep.subr.bf16.mxu0 0
        %1681 = vmatpush1.bf16.msra.mxu0 0
        %1682 = vmatprep.mubr.bf16.mxu0 %v1648
        %1683 = vmatmul.mubr.bf16.gmra.mrb[0].mxu0 %v1295
        %v1684 = vpop.f32.mrb[0].mxu0
        %v1685 = vadd.f32 %v1513, %v1684
        %v1686 = vpop.f32.mrb[0].mxu0
        %v1687 = vpop.f32.mrb[0].mxu0
        %v1688 = vadd.f32 %v1516, %v1687
        %v1689 = vpop.f32.mrb[0].mxu0
        %1690 = vmatprep.mubr.bf16.mxu0 %v1455
        %1691 = vmatmul.mubr.bf16.gmra.mrb[0].mxu0 %v1299
        %v1692 = vpop.f32.mrb[0].mxu0
        %v1693 = vadd.f32 %v1521, %v1692
        %v1694 = vpop.f32.mrb[0].mxu0
        %v1695 = vpop.f32.mrb[0].mxu0
        %v1696 = vadd.f32 %v1524, %v1695
        %v1697 = vpop.f32.mrb[0].mxu0
        %1698 = vmatprep.mubr.bf16.mxu0 %v1458
        %1699 = vmatmul.mubr.bf16.gmra.mrb[0].mxu0 %v1303
        %v1700 = vpop.f32.mrb[0].mxu0
        %v1701 = vadd.f32 %v1529, %v1700
        %v1702 = vpop.f32.mrb[0].mxu0
        %v1703 = vpop.f32.mrb[0].mxu0
        %v1704 = vadd.f32 %v1532, %v1703
        %v1705 = vpop.f32.mrb[0].mxu0
        %1706 = vmatprep.mubr.bf16.mxu0 %v1461
        %1707 = vmatmul.mubr.bf16.gmra.mrb[0].mxu0 %v1307
        %v1708 = vpop.f32.mrb[0].mxu0
        %v1709 = vadd.f32 %v1537, %v1708
        %v1710 = vpop.f32.mrb[0].mxu0
        %v1711 = vpop.f32.mrb[0].mxu0
        %v1712 = vadd.f32 %v1540, %v1711
        %v1713 = vpop.f32.mrb[0].mxu0
        %1714 = vmatprep.mubr.bf16.mxu0 %v1464
        %1715 = vmatmul.mubr.bf16.gmra.mrb[0].mxu0 %v1311
        %v1716 = vpop.f32.mrb[0].mxu0
        %v1717 = vadd.f32 %v1545, %v1716
        %v1718 = vpop.f32.mrb[0].mxu0
        %v1719 = vpop.f32.mrb[0].mxu0
        %v1720 = vadd.f32 %v1548, %v1719
        %v1721 = vpop.f32.mrb[0].mxu0
        %1722 = vmatprep.mubr.bf16.mxu0 %v1467
        %1723 = vmatmul.mubr.bf16.gmra.mrb[0].mxu0 %v1315
        %v1724 = vpop.f32.mrb[0].mxu0
        %v1725 = vadd.f32 %v1553, %v1724
        %v1726 = vpop.f32.mrb[0].mxu0
        %v1727 = vpop.f32.mrb[0].mxu0
        %v1728 = vadd.f32 %v1556, %v1727
        %v1729 = vpop.f32.mrb[0].mxu0
        %1730 = vmatprep.mubr.bf16.mxu0 %v1470
        %1731 = vmatmul.mubr.bf16.gmra.mrb[0].mxu0 %v1319
        %v1732 = vpop.f32.mrb[0].mxu0
        %v1733 = vadd.f32 %v1561, %v1732
        %v1734 = vpop.f32.mrb[0].mxu0
        %v1735 = vpop.f32.mrb[0].mxu0
        %v1736 = vadd.f32 %v1564, %v1735
        %v1737 = vpop.f32.mrb[0].mxu0
        %1738 = vmatprep.mubr.bf16.mxu0 %v1473
        %1739 = vmatmul.mubr.bf16.gmra.mrb[0].mxu0 %v1323
        %v1740 = vpop.f32.mrb[0].mxu0
        %v1741 = vadd.f32 %v1569, %v1740
        %v1742 = vpop.f32.mrb[0].mxu0
        %v1743 = vpop.f32.mrb[0].mxu0
        %v1744 = vadd.f32 %v1572, %v1743
        %v1745 = vpop.f32.mrb[0].mxu0
        %1746 = vdwg.mxu0
        %s1747 = scalar_lea.vmem %s4, 192
        %v1748 = vld [vmem:[%s1747] sm:$0xf]
        %v1749 = vld [vmem:[%s1747 + $0x4] sm:$0xf]
        %v1750 = vld [vmem:[%s1747 + $0x8] sm:$0xf]
        %v1751 = vld [vmem:[%s1747 + $0xc] sm:$0xf]
        %v1752 = vld [vmem:[%s1747 + $0x10] sm:$0xf]
        %v1753 = vld [vmem:[%s1747 + $0x14] sm:$0xf]
        %v1754 = vld [vmem:[%s1747 + $0x18] sm:$0xf]
        %v1755 = vld [vmem:[%s1747 + $0x1c] sm:$0xf]
        %v1756 = vld [vmem:[%s1747 + $0x20] sm:$0xf]
        %v1757 = vld [vmem:[%s1747 + $0x24] sm:$0xf]
        %v1758 = vld [vmem:[%s1747 + $0x28] sm:$0xf]
        %v1759 = vld [vmem:[%s1747 + $0x2c] sm:$0xf]
        %v1760 = vld [vmem:[%s1747 + $0x30] sm:$0xf]
        %v1761 = vld [vmem:[%s1747 + $0x34] sm:$0xf]
        %v1762 = vld [vmem:[%s1747 + $0x38] sm:$0xf]
        %v1763 = vld [vmem:[%s1747 + $0x3c] sm:$0xf]
        %v1764 = vld [vmem:[%s1747 + $0x40] sm:$0xf]
        %v1765 = vld [vmem:[%s1747 + $0x44] sm:$0xf]
        %v1766 = vld [vmem:[%s1747 + $0x48] sm:$0xf]
        %v1767 = vld [vmem:[%s1747 + $0x4c] sm:$0xf]
        %v1768 = vld [vmem:[%s1747 + $0x50] sm:$0xf]
        %v1769 = vld [vmem:[%s1747 + $0x54] sm:$0xf]
        %v1770 = vld [vmem:[%s1747 + $0x58] sm:$0xf]
        %v1771 = vld [vmem:[%s1747 + $0x5c] sm:$0xf]
        %v1796 = vunpack.c.l.b16 %v1748
        %v1797 = vunpack.c.l.b16 %v1749
        %v1798 = vunpack.c.l.b16 %v1750
        %v1799 = vunpack.c.l.b16 %v1751
        %v1800 = vunpack.c.l.b16 %v1752
        %v1801 = vunpack.c.l.b16 %v1753
        %v1802 = vunpack.c.l.b16 %v1754
        %v1803 = vunpack.c.l.b16 %v1755
        %v1804 = vunpack.c.l.b16 %v1756
        %v1805 = vunpack.c.l.b16 %v1757
        %v1806 = vunpack.c.l.b16 %v1758
        %v1807 = vunpack.c.l.b16 %v1759
        %v1808 = vunpack.c.l.b16 %v1760
        %v1809 = vunpack.c.l.b16 %v1761
        %v1810 = vunpack.c.l.b16 %v1762
        %v1811 = vunpack.c.l.b16 %v1763
        %v1812 = vunpack.c.l.b16 %v1764
        %v1813 = vunpack.c.l.b16 %v1765
        %v1814 = vunpack.c.l.b16 %v1766
        %v1815 = vunpack.c.l.b16 %v1767
        %v1816 = vunpack.c.l.b16 %v1768
        %v1817 = vunpack.c.l.b16 %v1769
        %v1818 = vunpack.c.l.b16 %v1770
        %v1819 = vunpack.c.l.b16 %v1771
        %v1820 = vpack.c.b16 %v1797, %v1796
        %v1821 = vpack.c.b16 %v1799, %v1798
        %v1822 = vpack.c.b16 %v1801, %v1800
        %v1823 = vpack.c.b16 %v1803, %v1802
        %v1824 = vpack.c.b16 %v1805, %v1804
        %v1825 = vpack.c.b16 %v1807, %v1806
        %v1826 = vpack.c.b16 %v1809, %v1808
        %v1827 = vpack.c.b16 %v1811, %v1810
        %v1828 = vpack.c.b16 %v1813, %v1812
        %v1829 = vpack.c.b16 %v1815, %v1814
        %v1830 = vpack.c.b16 %v1817, %v1816
        %v1831 = vpack.c.b16 %v1819, %v1818
        %v1845 = vsel %vm1292, %v1251, 0
        %1847 = vmatprep.subr.bf16.mxu0 0
        %1848 = vmatpush1.bf16.msra.mxu0 %v1820
        %1849 = vmatprep.subr.bf16.mxu0 0
        %1850 = vmatpush1.bf16.msra.mxu0 %v1821
        %1851 = vmatprep.subr.bf16.mxu0 0
        %1852 = vmatpush1.bf16.msra.mxu0 %v1822
        %1853 = vmatprep.subr.bf16.mxu0 0
        %1854 = vmatpush1.bf16.msra.mxu0 %v1823
        %1855 = vmatprep.subr.bf16.mxu0 0
        %1856 = vmatpush1.bf16.msra.mxu0 %v1824
        %1857 = vmatprep.subr.bf16.mxu0 0
        %1858 = vmatpush1.bf16.msra.mxu0 %v1825
        %1859 = vmatprep.subr.bf16.mxu0 0
        %1860 = vmatpush1.bf16.msra.mxu0 %v1826
        %1861 = vmatprep.subr.bf16.mxu0 0
        %1862 = vmatpush1.bf16.msra.mxu0 %v1827
        %1863 = vmatprep.subr.bf16.mxu0 0
        %1864 = vmatpush1.bf16.msra.mxu0 %v1828
        %1865 = vmatprep.subr.bf16.mxu0 0
        %1866 = vmatpush1.bf16.msra.mxu0 %v1829
        %1867 = vmatprep.subr.bf16.mxu0 0
        %1868 = vmatpush1.bf16.msra.mxu0 %v1830
        %1869 = vmatprep.subr.bf16.mxu0 0
        %1870 = vmatpush1.bf16.msra.mxu0 %v1831
        %1871 = vmatprep.subr.bf16.mxu0 0
        %1872 = vmatpush1.bf16.msra.mxu0 0
        %1873 = vmatprep.subr.bf16.mxu0 0
        %1874 = vmatpush1.bf16.msra.mxu0 0
        %1875 = vmatprep.subr.bf16.mxu0 0
        %1876 = vmatpush1.bf16.msra.mxu0 0
        %1877 = vmatprep.subr.bf16.mxu0 0
        %1878 = vmatpush1.bf16.msra.mxu0 0
        %1879 = vmatprep.mubr.bf16.mxu0 %v1458
        %1880 = vmatmul.mubr.bf16.gmra.mrb[0].mxu0 %v1303
        %v1881 = vpop.f32.mrb[0].mxu0
        %v1882 = vadd.f32 0.0, %v1881
        %v1883 = vpop.f32.mrb[0].mxu0
        %v1884 = vpop.f32.mrb[0].mxu0
        %v1885 = vadd.f32 0.0, %v1884
        %v1886 = vpop.f32.mrb[0].mxu0
        %1887 = vmatprep.mubr.bf16.mxu0 %v1461
        %1888 = vmatmul.mubr.bf16.gmra.mrb[0].mxu0 %v1307
        %v1889 = vpop.f32.mrb[0].mxu0
        %v1890 = vadd.f32 0.0, %v1889
        %v1891 = vpop.f32.mrb[0].mxu0
        %v1892 = vpop.f32.mrb[0].mxu0
        %v1893 = vadd.f32 0.0, %v1892
        %v1894 = vpop.f32.mrb[0].mxu0
        %1895 = vmatprep.mubr.bf16.mxu0 %v1464
        %1896 = vmatmul.mubr.bf16.gmra.mrb[0].mxu0 %v1311
        %v1897 = vpop.f32.mrb[0].mxu0
        %v1898 = vadd.f32 0.0, %v1897
        %v1899 = vpop.f32.mrb[0].mxu0
        %v1900 = vpop.f32.mrb[0].mxu0
        %v1901 = vadd.f32 0.0, %v1900
        %v1902 = vpop.f32.mrb[0].mxu0
        %1903 = vmatprep.mubr.bf16.mxu0 %v1467
        %1904 = vmatmul.mubr.bf16.gmra.mrb[0].mxu0 %v1315
        %v1905 = vpop.f32.mrb[0].mxu0
        %v1906 = vadd.f32 0.0, %v1905
        %v1907 = vpop.f32.mrb[0].mxu0
        %v1908 = vpop.f32.mrb[0].mxu0
        %v1909 = vadd.f32 0.0, %v1908
        %v1910 = vpop.f32.mrb[0].mxu0
        %1911 = vmatprep.mubr.bf16.mxu0 %v1470
        %1912 = vmatmul.mubr.bf16.gmra.mrb[0].mxu0 %v1319
        %v1913 = vpop.f32.mrb[0].mxu0
        %v1914 = vadd.f32 0.0, %v1913
        %v1915 = vpop.f32.mrb[0].mxu0
        %v1916 = vpop.f32.mrb[0].mxu0
        %v1917 = vadd.f32 0.0, %v1916
        %v1918 = vpop.f32.mrb[0].mxu0
        %1919 = vmatprep.mubr.bf16.mxu0 %v1473
        %1920 = vmatmul.mubr.bf16.gmra.mrb[0].mxu0 %v1323
        %v1921 = vpop.f32.mrb[0].mxu0
        %v1922 = vadd.f32 0.0, %v1921
        %v1923 = vpop.f32.mrb[0].mxu0
        %v1924 = vpop.f32.mrb[0].mxu0
        %v1925 = vadd.f32 0.0, %v1924
        %v1926 = vpop.f32.mrb[0].mxu0
        %1927 = vmatprep.mubr.bf16.mxu0 %v1476
        %1928 = vmatmul.mubr.bf16.gmra.mrb[0].mxu0 %v1327
        %v1929 = vpop.f32.mrb[0].mxu0
        %v1930 = vadd.f32 0.0, %v1929
        %v1931 = vpop.f32.mrb[0].mxu0
        %v1932 = vpop.f32.mrb[0].mxu0
        %v1933 = vadd.f32 0.0, %v1932
        %v1934 = vpop.f32.mrb[0].mxu0
        %1935 = vmatprep.mubr.bf16.mxu0 %v1845
        %1936 = vmatmul.mubr.bf16.gmra.mrb[0].mxu0 %v1331
        %v1937 = vpop.f32.mrb[0].mxu0
        %v1938 = vadd.f32 0.0, %v1937
        %v1939 = vpop.f32.mrb[0].mxu0
        %v1940 = vpop.f32.mrb[0].mxu0
        %v1941 = vadd.f32 0.0, %v1940
        %v1942 = vpop.f32.mrb[0].mxu0
        %1943 = vdwg.mxu0
        %v1944 = vadd.f32 %v1685, %v1882
        %v1945 = vadd.f32 %v1688, %v1885
        %v1946 = vadd.f32 %v1693, %v1890
        %v1947 = vadd.f32 %v1696, %v1893
        %v1948 = vadd.f32 %v1701, %v1898
        %v1949 = vadd.f32 %v1704, %v1901
        %v1950 = vadd.f32 %v1709, %v1906
        %v1951 = vadd.f32 %v1712, %v1909
        %v1952 = vadd.f32 %v1717, %v1914
        %v1953 = vadd.f32 %v1720, %v1917
        %v1954 = vadd.f32 %v1725, %v1922
        %v1955 = vadd.f32 %v1728, %v1925
        %v1956 = vadd.f32 %v1733, %v1930
        %v1957 = vadd.f32 %v1736, %v1933
        %v1958 = vadd.f32 %v1741, %v1938
        %v1959 = vadd.f32 %v1744, %v1941
        %v1960 = vld [vmem:[%s5] sm:$0x1]
        %v1962 = vlaneseq
        %v1963 = vshrl.u32 %v1962, 7
        %v1964 = vsub.s32 0, %v1963
        %v1965 = vrot.slane %v1960, %v1964
        %v1967 = vadd.f32 %v1944, %v1965
        %v1968 = vadd.f32 %v1945, %v1965
        %v1969 = vadd.f32 %v1946, %v1965
        %v1970 = vadd.f32 %v1947, %v1965
        %v1971 = vadd.f32 %v1948, %v1965
        %v1972 = vadd.f32 %v1949, %v1965
        %v1973 = vadd.f32 %v1950, %v1965
        %v1974 = vadd.f32 %v1951, %v1965
        %v1975 = vadd.f32 %v1952, %v1965
        %v1976 = vadd.f32 %v1953, %v1965
        %v1977 = vadd.f32 %v1954, %v1965
        %v1978 = vadd.f32 %v1955, %v1965
        %v1979 = vadd.f32 %v1956, %v1965
        %v1980 = vadd.f32 %v1957, %v1965
        %v1981 = vadd.f32 %v1958, %v1965
        %v1982 = vadd.f32 %v1959, %v1965
        %v1983 = vpack.c.bf16 %v1968, %v1967
        %v1984 = vpack.c.bf16 %v1970, %v1969
        %v1985 = vpack.c.bf16 %v1972, %v1971
        %v1986 = vpack.c.bf16 %v1974, %v1973
        %v1987 = vpack.c.bf16 %v1976, %v1975
        %v1988 = vpack.c.bf16 %v1978, %v1977
        %v1989 = vpack.c.bf16 %v1980, %v1979
        %v1990 = vpack.c.bf16 %v1982, %v1981
        %v1999 = vunpack.c.l.b16 %v1983
        %v2000 = vunpack.c.h.b16 %v1983
        %v2001 = vunpack.c.l.b16 %v1984
        %v2002 = vunpack.c.h.b16 %v1984
        %v2003 = vunpack.c.l.b16 %v1985
        %v2004 = vunpack.c.h.b16 %v1985
        %v2005 = vunpack.c.l.b16 %v1986
        %v2006 = vunpack.c.h.b16 %v1986
        %v2007 = vunpack.c.l.b16 %v1987
        %v2008 = vunpack.c.h.b16 %v1987
        %v2009 = vunpack.c.l.b16 %v1988
        %v2010 = vunpack.c.h.b16 %v1988
        %v2011 = vunpack.c.l.b16 %v1989
        %v2012 = vunpack.c.h.b16 %v1989
        %v2013 = vunpack.c.l.b16 %v1990
        %v2014 = vunpack.c.h.b16 %v1990
        %v2015 = vpack.c.b16 %v1999, %v1999
        %v2016 = vpack.c.b16 %v2000, %v2000
        %v2017 = vpack.c.b16 %v2001, %v2001
        %v2018 = vpack.c.b16 %v2002, %v2002
        %v2019 = vpack.c.b16 %v2003, %v2003
        %v2020 = vpack.c.b16 %v2004, %v2004
        %v2021 = vpack.c.b16 %v2005, %v2005
        %v2022 = vpack.c.b16 %v2006, %v2006
        %v2023 = vpack.c.b16 %v2007, %v2007
        %v2024 = vpack.c.b16 %v2008, %v2008
        %v2025 = vpack.c.b16 %v2009, %v2009
        %v2026 = vpack.c.b16 %v2010, %v2010
        %v2027 = vpack.c.b16 %v2011, %v2011
        %v2028 = vpack.c.b16 %v2012, %v2012
        %v2029 = vpack.c.b16 %v2013, %v2013
        %v2030 = vpack.c.b16 %v2014, %v2014
        %vm2047 = vcmask 519168
        %2048 = vst.msk [vmem:[%s374] sm:$0xf] %vm2047, %v2015
        %2049 = vst.msk [vmem:[%s374 + $0x4] sm:$0xf] %vm2047, %v2016
        %2050 = vst.msk [vmem:[%s374 + $0x8] sm:$0xf] %vm2047, %v2017
        %2051 = vst.msk [vmem:[%s374 + $0xc] sm:$0xf] %vm2047, %v2018
        %2052 = vst.msk [vmem:[%s374 + $0x10] sm:$0xf] %vm2047, %v2019
        %2053 = vst.msk [vmem:[%s374 + $0x14] sm:$0xf] %vm2047, %v2020
        %2054 = vst.msk [vmem:[%s374 + $0x18] sm:$0xf] %vm2047, %v2021
        %2055 = vst.msk [vmem:[%s374 + $0x1c] sm:$0xf] %vm2047, %v2022
        %2056 = vst.msk [vmem:[%s374 + $0x20] sm:$0xf] %vm2047, %v2023
        %2057 = vst.msk [vmem:[%s374 + $0x24] sm:$0xf] %vm2047, %v2024
        %2058 = vst.msk [vmem:[%s374 + $0x28] sm:$0xf] %vm2047, %v2025
        %2059 = vst.msk [vmem:[%s374 + $0x2c] sm:$0xf] %vm2047, %v2026
        %2060 = vst.msk [vmem:[%s374 + $0x30] sm:$0xf] %vm2047, %v2027
        %2061 = vst.msk [vmem:[%s374 + $0x34] sm:$0xf] %vm2047, %v2028
        %2062 = vst.msk [vmem:[%s374 + $0x38] sm:$0xf] %vm2047, %v2029
        %2063 = vst.msk [vmem:[%s374 + $0x3c] sm:$0xf] %vm2047, %v2030
        %s2064 = sand.u32 %s210, 1
        %s2065 = scalar_lea.sflag [#allocation3], %s2064
        %s2066 = sand.u32 %s210, 1
        %s2067 = smul.addr %s2066, 64
        %s2068 = scalar_lea.vmem [#allocation2], %s2067
        // Predicated region
        $region45: #{resnet_block.5} parent=43 // pred_check
          %p2069 = pneg %p220
        $region46: #{resnet_block.5} parent=43 // pred_check_branch
          %2071 = sbr.rel (%p2069) target = $region48
        $region47: #{resnet_block.5} parent=43 // pred_region
          %s2072 = smul.u32 16, %s25
          %s2074 = ssub.s32 1024, 1024
          %2075 = vsyncadd %s2065, %s2074
          %s2076 = smul.addr %s24, 32
          %s2077 = sadd.s32 %s2072, %s2076
          %s2078 = smul.addr %s2077, 64
          %s2079 = scalar_lea.hbm %s6, %s2078
          %s2080 = sshll.u32 %s2068, 4
          %s2081 = int_to_ptr.vmem [resolvable:$true] %s2080
          %2086 = dma.vmem_to_hbm [thread:$0]  %s2081, 1024, %s2079, %s2065, 64, 64, 4
        $region48: #{resnet_block.5} parent=43 // pred_fallthru
          _
      $region44: #{resnet_block.5} parent=5 // pred_fallthru
        _
      %p2087 = scmp.le.s32.totalorder 2, %s15
      // Predicated region
      $region49: #{resnet_block.5} parent=5 // pred_check
        %p2088 = pneg %p2087
      $region50: #{resnet_block.5} parent=5 // pred_check_branch
        %2090 = sbr.rel (%p2088) target = $region52
      $region51: #{resnet_block.5} parent=5 // pred_region
        %s2091 = ssub.s32 %s15, 2
        // Predicated region
        $region53: #{resnet_block.5} parent=51 // pred_check
          %p2092 = pneg %p226
        $region54: #{resnet_block.5} parent=51 // pred_check_branch
          %2094 = sbr.rel (%p2092) target = $region56
        $region55: #{resnet_block.5} parent=51 // pred_region
          %s2095 = sand.u32 %s211, 1
          %s2096 = scalar_lea.sflag [#allocation3], %s2095
          %s2097 = sand.u32 %s211, 1
          %s2098 = smul.addr %s2097, 64
          %s2099 = scalar_lea.vmem [#allocation2], %s2098
          %2100 = dma.done %s2096, 1024
        $region56: #{resnet_block.5} parent=51 // pred_fallthru
          _
      $region52: #{resnet_block.5} parent=5 // pred_fallthru
        _
    $region6: #{resnet_block.5} parent=1 // loop_footer
      %s19 = sadd.s32 1, %s15
    $region7: #{resnet_block.5} parent=1 // loop_footer_branch
      %14 = sbr.rel target = $region3
    $region8: #{resnet_block.5} parent=1 // loop_exit
      _
    %2101 = vsyncpa [#allocation3], 1
    %s2102 = scalar_lea.sflag [#allocation3], 1
    %2103 = vsyncpa %s2102, 1

</llo_original>
